<compile_context>
chip_gen: v7x
topology: tpu7x:2x2x1
jax: 0.10.0
libtpu: 0.0.40
codegen_flags: <defaults>
</compile_context>

<pallas_src>
import math

import jax
import jax.numpy as jnp
import numpy as np
from jax.experimental import pallas as pl
from jax.experimental.pallas import tpu as pltpu

# ----- module hyper-parameters (LinearAttention defaults, small dim) -----
DIM = 32            # channels
HEADS = 4
DIM_HEAD = 32
NUM_MEM_KV = 4
HIDDEN = HEADS * DIM_HEAD          # 128
ATT_SCALE = DIM_HEAD ** (-0.5)
NORM_SCALE = DIM ** 0.5
EPS = 1e-12                        # F.normalize eps


def linear_attention_kernel(x_ref, g1_ref, wqkv_ref, memk_ref, memv_ref,
                            wout_ref, bout_ref, g2_ref, o_ref):
    # x_ref block: (Bt, C, N), channel-major (pixels on the lane axis).
    bt = x_ref.shape[0]

    g1s = g1_ref[...].astype(jnp.float32)        # (C, 1), already * sqrt(dim)
    g2s = g2_ref[...].astype(jnp.float32)        # (C, 1), already * sqrt(dim)
    bout = bout_ref[...].astype(jnp.float32)     # (C, 1)
    wqkv = wqkv_ref[...].astype(jnp.float32)     # (3*HIDDEN, C)
    memk = memk_ref[...].astype(jnp.float32)     # (HIDDEN, M)
    memv = memv_ref[...].astype(jnp.float32)     # (HIDDEN, M)

    # mem-k row maxima are image-independent -> hoist out of the image loop.
    mk_max = jnp.max(memk, axis=-1, keepdims=True)          # (HIDDEN, 1)

    for img in range(bt):                                    # small static unroll
        x = x_ref[img].astype(jnp.float32)                   # (C, N)

        # RMSNorm #1: F.normalize over channels (sublane axis), * g * sqrt(dim).
        ss = jnp.sum(x * x, axis=0, keepdims=True)           # (1, N)
        xn = x * jax.lax.rsqrt(jnp.maximum(ss, EPS * EPS)) * g1s

        # to_qkv 1x1 conv == channel matmul; pixels stay on the lane axis.
        qkv = jnp.dot(wqkv, xn, preferred_element_type=jnp.float32)   # (384, N)
        q_all = qkv[0:HIDDEN]                                 # (128, N)
        k_all = qkv[HIDDEN:2 * HIDDEN]                        # (128, N)
        v_all = qkv[2 * HIDDEN:3 * HIDDEN]                    # (128, N)

        # k softmax over the sequence dim of cat(mem_k, k) -- no physical concat:
        # shared per-(head, d)-row max and denominator.
        m_all = jnp.maximum(jnp.max(k_all, axis=-1, keepdims=True), mk_max)
        e_sp = jnp.exp(k_all - m_all)                         # (128, N)
        e_mem = jnp.exp(memk - m_all)                         # (128, M)
        inv_den = pl.reciprocal(
            jnp.sum(e_sp, axis=-1, keepdims=True)
            + jnp.sum(e_mem, axis=-1, keepdims=True),
            approx=True)                                      # (128, 1)
        k_sp = e_sp * inv_den                                 # (128, N)
        k_mem = e_mem * inv_den                               # (128, M)

        # q softmax over the head-dim (32 sublanes per head); scale is folded
        # into the out-projection weights in the wrapper.
        n = q_all.shape[-1]
        q3 = q_all.reshape(HEADS, DIM_HEAD, n)                # (4, 32, N)
        qm = jnp.max(q3, axis=1, keepdims=True)
        qe = jnp.exp(q3 - qm)
        q_sm = (qe * pl.reciprocal(jnp.sum(qe, axis=1, keepdims=True),
                                   approx=True)).reshape(HIDDEN, n)   # (128, N)

        # Per-head context fused with the output projection:
        #   ctx_h[d, e] = sum_n k[d, n] v[e, n]           (spatial + mem)
        #   M_h[c, d]   = sum_e (scale * Wout_h[c, e]) ctx_h[d, e]
        m_blocks = []
        for hd in range(HEADS):                               # unrolled (HEADS=4)
            lo = hd * DIM_HEAD
            hi = lo + DIM_HEAD
            ctx = (jax.lax.dot_general(
                       k_sp[lo:hi], v_all[lo:hi],
                       (((1,), (1,)), ((), ())),
                       preferred_element_type=jnp.float32)
                   + jax.lax.dot_general(
                       k_mem[lo:hi], memv[lo:hi],
                       (((1,), (1,)), ((), ())),
                       preferred_element_type=jnp.float32))   # (D, D)
            m_blocks.append(jax.lax.dot_general(
                wout_ref[hd].astype(jnp.float32), ctx,        # (C, D) x (D, D)^T_e
                (((1,), (1,)), ((), ())),
                preferred_element_type=jnp.float32))          # (C, D)
        m_stack = jnp.concatenate(m_blocks, axis=-1)          # (C, HIDDEN)

        # Single K=HIDDEN matmul produces every head's out-proj contribution.
        y = jnp.dot(m_stack, q_sm, preferred_element_type=jnp.float32) + bout

        # RMSNorm #2
        ss2 = jnp.sum(y * y, axis=0, keepdims=True)
        o_ref[img] = (y * jax.lax.rsqrt(jnp.maximum(ss2, EPS * EPS))
                      * g2s).astype(o_ref.dtype)


def linear_attention_pallas(x_nchw, params, *, batch_tile=None):
    b, c, h, w = x_nchw.shape
    n = h * w
    # NCHW -> (B, C, N): pure reshape, no transpose pass over HBM.
    x_bcn = x_nchw.reshape(b, c, n)

    # Fold constants into the (tiny) weights on the host/XLA side.
    g1s = (params["g1"] * NORM_SCALE).reshape(c, 1)
    g2s = (params["g2"] * NORM_SCALE).reshape(c, 1)
    bout = params["bout"].reshape(c, 1)
    wqkv = params["wqkv"]                                    # (3*HIDDEN, C)
    memk = params["mem_k"].reshape(HIDDEN, NUM_MEM_KV)       # (128, M)
    memv = params["mem_v"].reshape(HIDDEN, NUM_MEM_KV)       # (128, M)
    # (C, HIDDEN) -> per-head slabs (HEADS, C, D), attention scale folded in.
    wout_heads = (params["wout"].reshape(c, HEADS, DIM_HEAD)
                  .transpose(1, 0, 2) * ATT_SCALE)

    if batch_tile is None:
        # Amortize the ~0.35us/step pipeline cost by packing images per step,
        # but keep the per-step working set modest (the f32 qkv intermediate
        # dominates) and keep >=2 grid steps so both v7x TensorCores get work.
        per_img_bytes = (2 * 3 * HIDDEN + 4 * c) * n * 4
        cap = max(1, int((12 * 2 ** 20) // max(per_img_bytes, 1)))
        bt = max(1, min(cap, max(1, b // 2)))
        while b % bt:
            bt -= 1
        batch_tile = bt
    # TODO(synk): for very large spatial sizes on v7x (64 MiB VMEM), tile N with
    # an extra 'arbitrary' grid axis (two-phase ctx accumulation) instead of
    # keeping the whole-image qkv intermediate resident.

    grid = (b // batch_tile,)
    out_bcn = pl.pallas_call(
        linear_attention_kernel,
        out_shape=jax.ShapeDtypeStruct((b, c, n), x_nchw.dtype),
        grid_spec=pltpu.PrefetchScalarGridSpec(
            num_scalar_prefetch=0,
            grid=grid,
            in_specs=[
                pl.BlockSpec((batch_tile, c, n), lambda i: (i, 0, 0)),     # x
                pl.BlockSpec((c, 1), lambda i: (0, 0)),                    # g1*sqrt(dim)
                pl.BlockSpec((3 * HIDDEN, c), lambda i: (0, 0)),           # Wqkv
                pl.BlockSpec((HIDDEN, NUM_MEM_KV), lambda i: (0, 0)),      # mem_k
                pl.BlockSpec((HIDDEN, NUM_MEM_KV), lambda i: (0, 0)),      # mem_v
                pl.BlockSpec((HEADS, c, DIM_HEAD), lambda i: (0, 0, 0)),   # Wout/head*scale
                pl.BlockSpec((c, 1), lambda i: (0, 0)),                    # conv bias
                pl.BlockSpec((c, 1), lambda i: (0, 0)),                    # g2*sqrt(dim)
            ],
            out_specs=pl.BlockSpec((batch_tile, c, n), lambda i: (i, 0, 0)),
        ),
        compiler_params=pltpu.CompilerParams(dimension_semantics=("parallel",)),
    )(x_bcn, g1s, wqkv, memk, memv, wout_heads, bout, g2s)

    # (B, C, N) -> NCHW: pure reshape.
    return out_bcn.reshape(b, c, h, w)


def linear_attention_reference(x_nchw, params):
    """Pure-JAX mirror of the PyTorch forward (NCHW, torch op order)."""
    b, c, h, w = x_nchw.shape
    nrm = jnp.sqrt(jnp.sum(x_nchw ** 2, axis=1, keepdims=True))
    xn = (x_nchw / jnp.maximum(nrm, EPS)
          * params["g1"][None, :, None, None] * NORM_SCALE)
    qkv = jnp.einsum("oc,bchw->bohw", params["wqkv"], xn)
    q, k, v = jnp.split(qkv, 3, axis=1)
    q, k, v = (t.reshape(b, HEADS, DIM_HEAD, h * w) for t in (q, k, v))
    mk = jnp.broadcast_to(params["mem_k"][None], (b, HEADS, DIM_HEAD, NUM_MEM_KV))
    mv = jnp.broadcast_to(params["mem_v"][None], (b, HEADS, DIM_HEAD, NUM_MEM_KV))
    k = jnp.concatenate([mk, k], axis=-1)
    v = jnp.concatenate([mv, v], axis=-1)
    q = jax.nn.softmax(q, axis=-2) * ATT_SCALE
    k = jax.nn.softmax(k, axis=-1)
    ctx = jnp.einsum("bhdn,bhen->bhde", k, v)
    out = jnp.einsum("bhde,bhdn->bhen", ctx, q)
    out = out.reshape(b, HIDDEN, h, w)
    y = (jnp.einsum("oc,bchw->bohw", params["wout"], out)
         + params["bout"][None, :, None, None])
    nrm2 = jnp.sqrt(jnp.sum(y ** 2, axis=1, keepdims=True))
    return y / jnp.maximum(nrm2, EPS) * params["g2"][None, :, None, None] * NORM_SCALE


def make_params(key):
    k_mem, k_qkv, k_out, k_b = jax.random.split(key, 4)
    mem_kv = jax.random.normal(k_mem, (2, HEADS, DIM_HEAD, NUM_MEM_KV), jnp.float32)
    return {
        "g1": jnp.ones((DIM,), jnp.float32),
        "mem_k": mem_kv[0],
        "mem_v": mem_kv[1],
        "wqkv": jax.random.normal(k_qkv, (3 * HIDDEN, DIM), jnp.float32)
                * (1.0 / math.sqrt(DIM)),
        "wout": jax.random.normal(k_out, (DIM, HIDDEN), jnp.float32)
                * (1.0 / math.sqrt(HIDDEN)),
        "bout": jax.random.normal(k_b, (DIM,), jnp.float32) * 0.1,
        "g2": jnp.ones((DIM,), jnp.float32),
    }


if __name__ == "__main__":
    key = jax.random.PRNGKey(0)
    k_x, k_p = jax.random.split(key)
    B, H, W = 2, 16, 16                 # N = 256 -> lane-dense (multiple of 128)
    x = jax.random.normal(k_x, (B, DIM, H, W), jnp.float32)   # NCHW, like torch
    params = make_params(k_p)

    out = jax.block_until_ready(linear_attention_pallas(x, params))
    ref = jax.block_until_ready(linear_attention_reference(x, params))

    # slightly relaxed tolerance: approx EUP reciprocals (~2e-4 rel) in softmax
    np.testing.assert_allclose(np.asarray(out), np.asarray(ref),
                               rtol=2e-3, atol=2e-3)
    print("KERNEL_OK")
</pallas_src>

<mosaic_0001>
module attributes {stable_mosaic.version = 11 : i64} {
  func.func @linear_attention_kernel(%arg0: i32, %arg1: memref<1x32x256xf32, #tpu.memory_space<vmem>>, %arg2: memref<32x1xf32, #tpu.memory_space<vmem>>, %arg3: memref<384x32xf32, #tpu.memory_space<vmem>>, %arg4: memref<128x4xf32, #tpu.memory_space<vmem>>, %arg5: memref<128x4xf32, #tpu.memory_space<vmem>>, %arg6: memref<4x32x32xf32, #tpu.memory_space<vmem>>, %arg7: memref<32x1xf32, #tpu.memory_space<vmem>>, %arg8: memref<32x1xf32, #tpu.memory_space<vmem>>, %arg9: memref<1x32x256xf32, #tpu.memory_space<vmem>>) attributes {dimension_semantics = [#tpu.dimension_semantics<parallel>], iteration_bounds = array<i64: 2>, scalar_prefetch = 0 : i64, scratch_operands = 0 : i64, tpu.core_type = #tpu.core_type<tc>, window_params = [{transform_indices = @transform_0, window_bounds = array<i64: 1, 32, 256>}, {pipeline_mode = #tpu.pipeline_mode<synchronous>, transform_indices = @transform_1, window_bounds = array<i64: 32, 1>}, {pipeline_mode = #tpu.pipeline_mode<synchronous>, transform_indices = @transform_2, window_bounds = array<i64: 384, 32>}, {pipeline_mode = #tpu.pipeline_mode<synchronous>, transform_indices = @transform_3, window_bounds = array<i64: 128, 4>}, {pipeline_mode = #tpu.pipeline_mode<synchronous>, transform_indices = @transform_4, window_bounds = array<i64: 128, 4>}, {pipeline_mode = #tpu.pipeline_mode<synchronous>, transform_indices = @transform_5, window_bounds = array<i64: 4, 32, 32>}, {pipeline_mode = #tpu.pipeline_mode<synchronous>, transform_indices = @transform_6, window_bounds = array<i64: 32, 1>}, {pipeline_mode = #tpu.pipeline_mode<synchronous>, transform_indices = @transform_7, window_bounds = array<i64: 32, 1>}, {transform_indices = @transform_8, window_bounds = array<i64: 1, 32, 256>}]} {
    %c0 = arith.constant 0 : index
    %c0_0 = arith.constant 0 : index
    %0 = vector.load %arg2[%c0, %c0_0] : memref<32x1xf32, #tpu.memory_space<vmem>>, vector<32x1xf32>
    %c0_1 = arith.constant 0 : index
    %c0_2 = arith.constant 0 : index
    %1 = vector.load %arg8[%c0_1, %c0_2] : memref<32x1xf32, #tpu.memory_space<vmem>>, vector<32x1xf32>
    %c0_3 = arith.constant 0 : index
    %c0_4 = arith.constant 0 : index
    %2 = vector.load %arg7[%c0_3, %c0_4] : memref<32x1xf32, #tpu.memory_space<vmem>>, vector<32x1xf32>
    %c0_5 = arith.constant 0 : index
    %c0_6 = arith.constant 0 : index
    %3 = vector.load %arg3[%c0_5, %c0_6] : memref<384x32xf32, #tpu.memory_space<vmem>>, vector<384x32xf32>
    %c0_7 = arith.constant 0 : index
    %c0_8 = arith.constant 0 : index
    %4 = vector.load %arg4[%c0_7, %c0_8] : memref<128x4xf32, #tpu.memory_space<vmem>>, vector<128x4xf32>
    %c0_9 = arith.constant 0 : index
    %c0_10 = arith.constant 0 : index
    %5 = vector.load %arg5[%c0_9, %c0_10] : memref<128x4xf32, #tpu.memory_space<vmem>>, vector<128x4xf32>
    %cst = arith.constant dense<0xFF800000> : vector<128xf32>
    %6 = vector.multi_reduction <maximumf>, %4, %cst [1] : vector<128x4xf32> to vector<128xf32>
    %7 = vector.shape_cast %6 : vector<128xf32> to vector<128x1xf32>
    %c0_11 = arith.constant 0 : index
    %c0_12 = arith.constant 0 : index
    %c0_13 = arith.constant 0 : index
    %8 = vector.load %arg1[%c0_11, %c0_12, %c0_13] : memref<1x32x256xf32, #tpu.memory_space<vmem>>, vector<1x32x256xf32>
    %9 = vector.shape_cast %8 : vector<1x32x256xf32> to vector<32x256xf32>
    %10 = arith.mulf %9, %9 : vector<32x256xf32>
    %cst_14 = arith.constant dense<0.000000e+00> : vector<256xf32>
    %11 = vector.multi_reduction <add>, %10, %cst_14 [0] : vector<32x256xf32> to vector<256xf32>
    %12 = vector.shape_cast %11 : vector<256xf32> to vector<1x256xf32>
    %cst_15 = arith.constant 1.000000e-24 : f32
    %13 = vector.broadcast %cst_15 : f32 to vector<1x256xf32>
    %14 = arith.maximumf %12, %13 : vector<1x256xf32>
    %15 = math.rsqrt %14 : vector<1x256xf32>
    %16 = vector.broadcast %15 : vector<1x256xf32> to vector<32x256xf32>
    %17 = arith.mulf %9, %16 : vector<32x256xf32>
    %18 = vector.broadcast %0 : vector<32x1xf32> to vector<32x256xf32>
    %19 = arith.mulf %17, %18 : vector<32x256xf32>
    %cst_16 = arith.constant dense<0.000000e+00> : vector<384x256xf32>
    %20 = tpu.matmul %3, %19, %cst_16 {dimension_numbers = #tpu.dot_dimension_numbers<[1], [0], [0], [1], [0, 0, 1, 1], [], []>} : vector<384x32xf32>, vector<32x256xf32>, vector<384x256xf32> -> vector<384x256xf32>
    %21 = vector.extract_strided_slice %20 {offsets = [0, 0], sizes = [128, 256], strides = [1, 1]} : vector<384x256xf32> to vector<128x256xf32>
    %22 = vector.extract_strided_slice %20 {offsets = [128, 0], sizes = [128, 256], strides = [1, 1]} : vector<384x256xf32> to vector<128x256xf32>
    %23 = vector.extract_strided_slice %20 {offsets = [256, 0], sizes = [128, 256], strides = [1, 1]} : vector<384x256xf32> to vector<128x256xf32>
    %cst_17 = arith.constant dense<0xFF800000> : vector<128xf32>
    %24 = vector.multi_reduction <maximumf>, %22, %cst_17 [1] : vector<128x256xf32> to vector<128xf32>
    %25 = vector.shape_cast %24 : vector<128xf32> to vector<128x1xf32>
    %26 = arith.maximumf %25, %7 : vector<128x1xf32>
    %27 = vector.broadcast %26 : vector<128x1xf32> to vector<128x256xf32>
    %28 = arith.subf %22, %27 : vector<128x256xf32>
    %29 = math.exp %28 : vector<128x256xf32>
    %30 = vector.broadcast %26 : vector<128x1xf32> to vector<128x4xf32>
    %31 = arith.subf %4, %30 : vector<128x4xf32>
    %32 = math.exp %31 : vector<128x4xf32>
    %cst_18 = arith.constant dense<0.000000e+00> : vector<128xf32>
    %33 = vector.multi_reduction <add>, %29, %cst_18 [1] : vector<128x256xf32> to vector<128xf32>
    %34 = vector.shape_cast %33 : vector<128xf32> to vector<128x1xf32>
    %cst_19 = arith.constant dense<0.000000e+00> : vector<128xf32>
    %35 = vector.multi_reduction <add>, %32, %cst_19 [1] : vector<128x4xf32> to vector<128xf32>
    %36 = vector.shape_cast %35 : vector<128xf32> to vector<128x1xf32>
    %37 = arith.addf %34, %36 : vector<128x1xf32>
    %38 = tpu.reciprocal %37 {approx = true} : vector<128x1xf32> -> vector<128x1xf32>
    %39 = vector.broadcast %38 : vector<128x1xf32> to vector<128x256xf32>
    %40 = arith.mulf %29, %39 : vector<128x256xf32>
    %41 = vector.broadcast %38 : vector<128x1xf32> to vector<128x4xf32>
    %42 = arith.mulf %32, %41 : vector<128x4xf32>
    %43 = vector.shape_cast %21 : vector<128x256xf32> to vector<4x32x256xf32>
    %cst_20 = arith.constant dense<0xFF800000> : vector<4x256xf32>
    %44 = vector.multi_reduction <maximumf>, %43, %cst_20 [1] : vector<4x32x256xf32> to vector<4x256xf32>
    %45 = vector.shape_cast %44 : vector<4x256xf32> to vector<4x1x256xf32>
    %46 = vector.broadcast %45 : vector<4x1x256xf32> to vector<4x32x256xf32>
    %47 = arith.subf %43, %46 : vector<4x32x256xf32>
    %48 = math.exp %47 : vector<4x32x256xf32>
    %cst_21 = arith.constant dense<0.000000e+00> : vector<4x256xf32>
    %49 = vector.multi_reduction <add>, %48, %cst_21 [1] : vector<4x32x256xf32> to vector<4x256xf32>
    %50 = vector.shape_cast %49 : vector<4x256xf32> to vector<4x1x256xf32>
    %51 = tpu.reciprocal %50 {approx = true} : vector<4x1x256xf32> -> vector<4x1x256xf32>
    %52 = vector.broadcast %51 : vector<4x1x256xf32> to vector<4x32x256xf32>
    %53 = arith.mulf %48, %52 : vector<4x32x256xf32>
    %54 = vector.shape_cast %53 : vector<4x32x256xf32> to vector<128x256xf32>
    %55 = vector.extract_strided_slice %40 {offsets = [0, 0], sizes = [32, 256], strides = [1, 1]} : vector<128x256xf32> to vector<32x256xf32>
    %56 = vector.extract_strided_slice %23 {offsets = [0, 0], sizes = [32, 256], strides = [1, 1]} : vector<128x256xf32> to vector<32x256xf32>
    %cst_22 = arith.constant dense<0.000000e+00> : vector<32x32xf32>
    %57 = tpu.matmul %55, %56, %cst_22 {dimension_numbers = #tpu.dot_dimension_numbers<[1], [1], [0], [0], [0, 0, 1, 0], [], []>} : vector<32x256xf32>, vector<32x256xf32>, vector<32x32xf32> -> vector<32x32xf32>
    %58 = vector.extract_strided_slice %42 {offsets = [0, 0], sizes = [32, 4], strides = [1, 1]} : vector<128x4xf32> to vector<32x4xf32>
    %59 = vector.extract_strided_slice %5 {offsets = [0, 0], sizes = [32, 4], strides = [1, 1]} : vector<128x4xf32> to vector<32x4xf32>
    %cst_23 = arith.constant dense<0.000000e+00> : vector<32x32xf32>
    %60 = tpu.matmul %58, %59, %cst_23 {dimension_numbers = #tpu.dot_dimension_numbers<[1], [1], [0], [0], [0, 0, 1, 0], [], []>} : vector<32x4xf32>, vector<32x4xf32>, vector<32x32xf32> -> vector<32x32xf32>
    %61 = arith.addf %57, %60 : vector<32x32xf32>
    %c0_24 = arith.constant 0 : index
    %c0_25 = arith.constant 0 : index
    %c0_26 = arith.constant 0 : index
    %62 = vector.load %arg6[%c0_24, %c0_25, %c0_26] : memref<4x32x32xf32, #tpu.memory_space<vmem>>, vector<1x32x32xf32>
    %63 = vector.shape_cast %62 : vector<1x32x32xf32> to vector<32x32xf32>
    %cst_27 = arith.constant dense<0.000000e+00> : vector<32x32xf32>
    %64 = tpu.matmul %63, %61, %cst_27 {dimension_numbers = #tpu.dot_dimension_numbers<[1], [1], [0], [0], [0, 0, 1, 0], [], []>} : vector<32x32xf32>, vector<32x32xf32>, vector<32x32xf32> -> vector<32x32xf32>
    %65 = vector.extract_strided_slice %40 {offsets = [32, 0], sizes = [32, 256], strides = [1, 1]} : vector<128x256xf32> to vector<32x256xf32>
    %66 = vector.extract_strided_slice %23 {offsets = [32, 0], sizes = [32, 256], strides = [1, 1]} : vector<128x256xf32> to vector<32x256xf32>
    %cst_28 = arith.constant dense<0.000000e+00> : vector<32x32xf32>
    %67 = tpu.matmul %65, %66, %cst_28 {dimension_numbers = #tpu.dot_dimension_numbers<[1], [1], [0], [0], [0, 0, 1, 0], [], []>} : vector<32x256xf32>, vector<32x256xf32>, vector<32x32xf32> -> vector<32x32xf32>
    %68 = vector.extract_strided_slice %42 {offsets = [32, 0], sizes = [32, 4], strides = [1, 1]} : vector<128x4xf32> to vector<32x4xf32>
    %69 = vector.extract_strided_slice %5 {offsets = [32, 0], sizes = [32, 4], strides = [1, 1]} : vector<128x4xf32> to vector<32x4xf32>
    %cst_29 = arith.constant dense<0.000000e+00> : vector<32x32xf32>
    %70 = tpu.matmul %68, %69, %cst_29 {dimension_numbers = #tpu.dot_dimension_numbers<[1], [1], [0], [0], [0, 0, 1, 0], [], []>} : vector<32x4xf32>, vector<32x4xf32>, vector<32x32xf32> -> vector<32x32xf32>
    %71 = arith.addf %67, %70 : vector<32x32xf32>
    %c1 = arith.constant 1 : index
    %c0_30 = arith.constant 0 : index
    %c0_31 = arith.constant 0 : index
    %72 = vector.load %arg6[%c1, %c0_30, %c0_31] : memref<4x32x32xf32, #tpu.memory_space<vmem>>, vector<1x32x32xf32>
    %73 = vector.shape_cast %72 : vector<1x32x32xf32> to vector<32x32xf32>
    %cst_32 = arith.constant dense<0.000000e+00> : vector<32x32xf32>
    %74 = tpu.matmul %73, %71, %cst_32 {dimension_numbers = #tpu.dot_dimension_numbers<[1], [1], [0], [0], [0, 0, 1, 0], [], []>} : vector<32x32xf32>, vector<32x32xf32>, vector<32x32xf32> -> vector<32x32xf32>
    %75 = vector.extract_strided_slice %40 {offsets = [64, 0], sizes = [32, 256], strides = [1, 1]} : vector<128x256xf32> to vector<32x256xf32>
    %76 = vector.extract_strided_slice %23 {offsets = [64, 0], sizes = [32, 256], strides = [1, 1]} : vector<128x256xf32> to vector<32x256xf32>
    %cst_33 = arith.constant dense<0.000000e+00> : vector<32x32xf32>
    %77 = tpu.matmul %75, %76, %cst_33 {dimension_numbers = #tpu.dot_dimension_numbers<[1], [1], [0], [0], [0, 0, 1, 0], [], []>} : vector<32x256xf32>, vector<32x256xf32>, vector<32x32xf32> -> vector<32x32xf32>
    %78 = vector.extract_strided_slice %42 {offsets = [64, 0], sizes = [32, 4], strides = [1, 1]} : vector<128x4xf32> to vector<32x4xf32>
    %79 = vector.extract_strided_slice %5 {offsets = [64, 0], sizes = [32, 4], strides = [1, 1]} : vector<128x4xf32> to vector<32x4xf32>
    %cst_34 = arith.constant dense<0.000000e+00> : vector<32x32xf32>
    %80 = tpu.matmul %78, %79, %cst_34 {dimension_numbers = #tpu.dot_dimension_numbers<[1], [1], [0], [0], [0, 0, 1, 0], [], []>} : vector<32x4xf32>, vector<32x4xf32>, vector<32x32xf32> -> vector<32x32xf32>
    %81 = arith.addf %77, %80 : vector<32x32xf32>
    %c2 = arith.constant 2 : index
    %c0_35 = arith.constant 0 : index
    %c0_36 = arith.constant 0 : index
    %82 = vector.load %arg6[%c2, %c0_35, %c0_36] : memref<4x32x32xf32, #tpu.memory_space<vmem>>, vector<1x32x32xf32>
    %83 = vector.shape_cast %82 : vector<1x32x32xf32> to vector<32x32xf32>
    %cst_37 = arith.constant dense<0.000000e+00> : vector<32x32xf32>
    %84 = tpu.matmul %83, %81, %cst_37 {dimension_numbers = #tpu.dot_dimension_numbers<[1], [1], [0], [0], [0, 0, 1, 0], [], []>} : vector<32x32xf32>, vector<32x32xf32>, vector<32x32xf32> -> vector<32x32xf32>
    %85 = vector.extract_strided_slice %40 {offsets = [96, 0], sizes = [32, 256], strides = [1, 1]} : vector<128x256xf32> to vector<32x256xf32>
    %86 = vector.extract_strided_slice %23 {offsets = [96, 0], sizes = [32, 256], strides = [1, 1]} : vector<128x256xf32> to vector<32x256xf32>
    %cst_38 = arith.constant dense<0.000000e+00> : vector<32x32xf32>
    %87 = tpu.matmul %85, %86, %cst_38 {dimension_numbers = #tpu.dot_dimension_numbers<[1], [1], [0], [0], [0, 0, 1, 0], [], []>} : vector<32x256xf32>, vector<32x256xf32>, vector<32x32xf32> -> vector<32x32xf32>
    %88 = vector.extract_strided_slice %42 {offsets = [96, 0], sizes = [32, 4], strides = [1, 1]} : vector<128x4xf32> to vector<32x4xf32>
    %89 = vector.extract_strided_slice %5 {offsets = [96, 0], sizes = [32, 4], strides = [1, 1]} : vector<128x4xf32> to vector<32x4xf32>
    %cst_39 = arith.constant dense<0.000000e+00> : vector<32x32xf32>
    %90 = tpu.matmul %88, %89, %cst_39 {dimension_numbers = #tpu.dot_dimension_numbers<[1], [1], [0], [0], [0, 0, 1, 0], [], []>} : vector<32x4xf32>, vector<32x4xf32>, vector<32x32xf32> -> vector<32x32xf32>
    %91 = arith.addf %87, %90 : vector<32x32xf32>
    %c3 = arith.constant 3 : index
    %c0_40 = arith.constant 0 : index
    %c0_41 = arith.constant 0 : index
    %92 = vector.load %arg6[%c3, %c0_40, %c0_41] : memref<4x32x32xf32, #tpu.memory_space<vmem>>, vector<1x32x32xf32>
    %93 = vector.shape_cast %92 : vector<1x32x32xf32> to vector<32x32xf32>
    %cst_42 = arith.constant dense<0.000000e+00> : vector<32x32xf32>
    %94 = tpu.matmul %93, %91, %cst_42 {dimension_numbers = #tpu.dot_dimension_numbers<[1], [1], [0], [0], [0, 0, 1, 0], [], []>} : vector<32x32xf32>, vector<32x32xf32>, vector<32x32xf32> -> vector<32x32xf32>
    %95 = tpu.concatenate %64, %74, %84, %94 in 1 : vector<32x32xf32>, vector<32x32xf32>, vector<32x32xf32>, vector<32x32xf32> -> vector<32x128xf32>
    %cst_43 = arith.constant dense<0.000000e+00> : vector<32x256xf32>
    %96 = tpu.matmul %95, %54, %cst_43 {dimension_numbers = #tpu.dot_dimension_numbers<[1], [0], [0], [1], [0, 0, 1, 1], [], []>} : vector<32x128xf32>, vector<128x256xf32>, vector<32x256xf32> -> vector<32x256xf32>
    %97 = vector.broadcast %2 : vector<32x1xf32> to vector<32x256xf32>
    %98 = arith.addf %96, %97 : vector<32x256xf32>
    %99 = arith.mulf %98, %98 : vector<32x256xf32>
    %cst_44 = arith.constant dense<0.000000e+00> : vector<256xf32>
    %100 = vector.multi_reduction <add>, %99, %cst_44 [0] : vector<32x256xf32> to vector<256xf32>
    %101 = vector.shape_cast %100 : vector<256xf32> to vector<1x256xf32>
    %cst_45 = arith.constant 1.000000e-24 : f32
    %102 = vector.broadcast %cst_45 : f32 to vector<1x256xf32>
    %103 = arith.maximumf %101, %102 : vector<1x256xf32>
    %104 = math.rsqrt %103 : vector<1x256xf32>
    %105 = vector.broadcast %104 : vector<1x256xf32> to vector<32x256xf32>
    %106 = arith.mulf %98, %105 : vector<32x256xf32>
    %107 = vector.broadcast %1 : vector<32x1xf32> to vector<32x256xf32>
    %108 = arith.mulf %106, %107 : vector<32x256xf32>
    %c0_46 = arith.constant 0 : index
    %c0_47 = arith.constant 0 : index
    %c0_48 = arith.constant 0 : index
    %109 = vector.load %arg9[%c0_46, %c0_47, %c0_48] : memref<1x32x256xf32, #tpu.memory_space<vmem>>, vector<1x32x256xf32>
    %110 = vector.shape_cast %109 : vector<1x32x256xf32> to vector<32x256xf32>
    %111 = vector.shape_cast %108 : vector<32x256xf32> to vector<1x32x256xf32>
    tpu.vector_store %arg9[%c0_46, %c0_47, %c0_48], %111 {strides = array<i32>} : memref<1x32x256xf32, #tpu.memory_space<vmem>>, vector<1x32x256xf32>,
    return
  }
  func.func @transform_0(%arg0: i32) -> (i32, i32, i32) {
    %c0_i32 = arith.constant 0 : i32
    %c0_i32_0 = arith.constant 0 : i32
    %c0_i32_1 = arith.constant 0 : i32
    return %arg0, %c0_i32, %c0_i32_0 : i32, i32, i32
  }
  func.func @transform_1(%arg0: i32) -> (i32, i32) {
    %c0_i32 = arith.constant 0 : i32
    %c0_i32_0 = arith.constant 0 : i32
    %c0_i32_1 = arith.constant 0 : i32
    return %c0_i32, %c0_i32_0 : i32, i32
  }
  func.func @transform_2(%arg0: i32) -> (i32, i32) {
    %c0_i32 = arith.constant 0 : i32
    %c0_i32_0 = arith.constant 0 : i32
    %c0_i32_1 = arith.constant 0 : i32
    return %c0_i32, %c0_i32_0 : i32, i32
  }
  func.func @transform_3(%arg0: i32) -> (i32, i32) {
    %c0_i32 = arith.constant 0 : i32
    %c0_i32_0 = arith.constant 0 : i32
    %c0_i32_1 = arith.constant 0 : i32
    return %c0_i32, %c0_i32_0 : i32, i32
  }
  func.func @transform_4(%arg0: i32) -> (i32, i32) {
    %c0_i32 = arith.constant 0 : i32
    %c0_i32_0 = arith.constant 0 : i32
    %c0_i32_1 = arith.constant 0 : i32
    return %c0_i32, %c0_i32_0 : i32, i32
  }
  func.func @transform_5(%arg0: i32) -> (i32, i32, i32) {
    %c0_i32 = arith.constant 0 : i32
    %c0_i32_0 = arith.constant 0 : i32
    %c0_i32_1 = arith.constant 0 : i32
    %c0_i32_2 = arith.constant 0 : i32
    return %c0_i32, %c0_i32_0, %c0_i32_1 : i32, i32, i32
  }
  func.func @transform_6(%arg0: i32) -> (i32, i32) {
    %c0_i32 = arith.constant 0 : i32
    %c0_i32_0 = arith.constant 0 : i32
    %c0_i32_1 = arith.constant 0 : i32
    return %c0_i32, %c0_i32_0 : i32, i32
  }
  func.func @transform_7(%arg0: i32) -> (i32, i32) {
    %c0_i32 = arith.constant 0 : i32
    %c0_i32_0 = arith.constant 0 : i32
    %c0_i32_1 = arith.constant 0 : i32
    return %c0_i32, %c0_i32_0 : i32, i32
  }
  func.func @transform_8(%arg0: i32) -> (i32, i32, i32) {
    %c0_i32 = arith.constant 0 : i32
    %c0_i32_0 = arith.constant 0 : i32
    %c0_i32_1 = arith.constant 0 : i32
    return %arg0, %c0_i32, %c0_i32_0 : i32, i32, i32
  }
}

</mosaic_0001>

<llo_original>
// kernel: tpu_custom_call.1
$region0: #{tpu_custom_call.1}
  #allocation0 [shape = 'u32[]', space=smem, size = 0x4, offset = 0x4, fixed_abs, tag = 'smem constant byte address 0x4 - core index']
  #allocation1 [shape = 'u32[144,128]{1,0:T(1,128)}', space=vmem, size = 0x12000, scoped, tag = 'internal scratch']
  %s0 = inlined_call_operand.vmem [shape: f32[2,32,256], index: 0, kind: input, shape index: {}]
  %s1 = inlined_call_operand.vmem [shape: f32[32,1], index: 1, kind: input, shape index: {}]
  %s2 = inlined_call_operand.vmem [shape: f32[384,32], index: 2, kind: input, shape index: {}]
  %s3 = inlined_call_operand.vmem [shape: f32[128,4], index: 3, kind: input, shape index: {}]
  %s4 = inlined_call_operand.vmem [shape: f32[128,4], index: 4, kind: input, shape index: {}]
  %s5 = inlined_call_operand.vmem [shape: f32[4,32,32], index: 5, kind: input, shape index: {}]
  %s6 = inlined_call_operand.vmem [shape: f32[32,1], index: 6, kind: input, shape index: {}]
  %s7 = inlined_call_operand.vmem [shape: f32[32,1], index: 7, kind: input, shape index: {}]
  %s8 = inlined_call_operand.hbm [shape: f32[2,32,256], index: 8, kind: output, shape index: {}]
  %s9 = sld [smem:[#allocation0]]
  $region65: #{tpu_custom_call.1} parent=0
    _
  %s11 = ssub.s32 1, %s9
  %s12 = scalar_select 0, %s11, %s9
  $region1: #{tpu_custom_call.1} parent=0
    #allocation2 [shape = 'u8[65536]{0}', space=vmem, size = 0x10000, scoped, tag = 'output window, operand 0']
    #allocation3 [shape = 's32[2]{0}', space=sflag, size = 0x8, scoped, tag = 'scoped memory for tpu_custom_call.1']
    %13 = vsyncpa [#allocation3], 0
    %s14 = scalar_lea.sflag [#allocation3], 1
    %15 = vsyncpa %s14, 0
    loop: start=0, step=1, limit=4
    $region2: #{tpu_custom_call.1} parent=1 // loop_pre_header
      _
    $region3: #{tpu_custom_call.1} parent=1 // loop_header
      %s17 = sphi 0, %s21
      %p18 = scmp.ge.s32.totalorder %s17, 4
      %s27 = sphi 0, %s29
      %s30 = sphi 0, %s27
      %s31 = sphi 0, %s30
      %s47 = sphi 0, %s31
      %s51 = sphi 0, %s51
      %s53 = sphi 0, %s51
      %s54 = sphi 0, %s53
      %s68 = sphi 0, %s54
      %s72 = sphi 0, %s72
      %s74 = sphi 0, %s72
      %s75 = sphi 0, %s74
      %s89 = sphi 0, %s75
      %s93 = sphi 0, %s93
      %s95 = sphi 0, %s93
      %s96 = sphi 0, %s95
      %s110 = sphi 0, %s96
      %s114 = sphi 0, %s114
      %s116 = sphi 0, %s114
      %s117 = sphi 0, %s116
      %s131 = sphi 0, %s117
      %s135 = sphi 0, %s135
      %s137 = sphi 0, %s135
      %s138 = sphi 0, %s137
      %s152 = sphi 0, %s138
      %s156 = sphi 0, %s156
      %s158 = sphi 0, %s156
      %s159 = sphi 0, %s158
      %s173 = sphi 0, %s159
      %s177 = sphi 0, %s177
      %s179 = sphi 0, %s177
      %s180 = sphi 0, %s179
      %s194 = sphi 0, %s180
      %s200 = sphi 0, %s202
      %s203 = sphi 0, %s200
      %s204 = sphi 0, %s203
      %s220 = sphi 0, %s204
    $region4: #{tpu_custom_call.1} parent=1 // loop_header_branch
      %20 = sbr.rel (%p18) target = $region8
    $region5: #{tpu_custom_call.1} parent=1 // loop_body
      %s22 = ssub.s32 %s17, 1
      %s23 = ssub.s32 %s17, 2
      %s24 = sadd.s32 %s17, 1
      %s25 = ssub.s32 %s17, %s24
      %p26 = scmp.eq.s32.totalorder %s25, 0
      %s28 = sadd.s32 %s27, 1
      %s29 = scalar_select %p26, %s27, %s28
      %p32 = pneg %p26
      %p33 = scmp.eq.s32.totalorder %s17, 1
      %p34 = por %p32, %p33
      %p35 = scmp.ne.s32.totalorder %s27, %s30
      %p36 = scmp.eq.s32.totalorder %s17, 0
      %p37 = por %p35, %p36
      %p38 = scmp.ne.s32.totalorder %s27, %s30
      %p39 = scmp.eq.s32.totalorder %s22, 1
      %p40 = por %p38, %p39
      %p41 = scmp.ne.s32.totalorder %s30, %s31
      %p42 = scmp.eq.s32.totalorder %s22, 0
      %p43 = por %p41, %p42
      %p44 = scmp.ne.s32.totalorder %s30, %s31
      %p45 = scmp.eq.s32.totalorder %s23, 1
      %p46 = por %p44, %p45
      %p48 = scmp.ne.s32.totalorder %s31, %s47
      %p49 = scmp.eq.s32.totalorder %s23, 0
      %p50 = por %p48, %p49
      %s52 = sadd.s32 %s51, 1
      %p55 = scmp.eq.s32.totalorder %s17, 1
      %p56 = scmp.ne.s32.totalorder %s51, %s53
      %p57 = scmp.eq.s32.totalorder %s17, 0
      %p58 = por %p56, %p57
      %p59 = scmp.ne.s32.totalorder %s51, %s53
      %p60 = scmp.eq.s32.totalorder %s22, 1
      %p61 = por %p59, %p60
      %p62 = scmp.ne.s32.totalorder %s53, %s54
      %p63 = scmp.eq.s32.totalorder %s22, 0
      %p64 = por %p62, %p63
      %p65 = scmp.ne.s32.totalorder %s53, %s54
      %p66 = scmp.eq.s32.totalorder %s23, 1
      %p67 = por %p65, %p66
      %p69 = scmp.ne.s32.totalorder %s54, %s68
      %p70 = scmp.eq.s32.totalorder %s23, 0
      %p71 = por %p69, %p70
      %s73 = sadd.s32 %s72, 1
      %p76 = scmp.eq.s32.totalorder %s17, 1
      %p77 = scmp.ne.s32.totalorder %s72, %s74
      %p78 = scmp.eq.s32.totalorder %s17, 0
      %p79 = por %p77, %p78
      %p80 = scmp.ne.s32.totalorder %s72, %s74
      %p81 = scmp.eq.s32.totalorder %s22, 1
      %p82 = por %p80, %p81
      %p83 = scmp.ne.s32.totalorder %s74, %s75
      %p84 = scmp.eq.s32.totalorder %s22, 0
      %p85 = por %p83, %p84
      %p86 = scmp.ne.s32.totalorder %s74, %s75
      %p87 = scmp.eq.s32.totalorder %s23, 1
      %p88 = por %p86, %p87
      %p90 = scmp.ne.s32.totalorder %s75, %s89
      %p91 = scmp.eq.s32.totalorder %s23, 0
      %p92 = por %p90, %p91
      %s94 = sadd.s32 %s93, 1
      %p97 = scmp.eq.s32.totalorder %s17, 1
      %p98 = scmp.ne.s32.totalorder %s93, %s95
      %p99 = scmp.eq.s32.totalorder %s17, 0
      %p100 = por %p98, %p99
      %p101 = scmp.ne.s32.totalorder %s93, %s95
      %p102 = scmp.eq.s32.totalorder %s22, 1
      %p103 = por %p101, %p102
      %p104 = scmp.ne.s32.totalorder %s95, %s96
      %p105 = scmp.eq.s32.totalorder %s22, 0
      %p106 = por %p104, %p105
      %p107 = scmp.ne.s32.totalorder %s95, %s96
      %p108 = scmp.eq.s32.totalorder %s23, 1
      %p109 = por %p107, %p108
      %p111 = scmp.ne.s32.totalorder %s96, %s110
      %p112 = scmp.eq.s32.totalorder %s23, 0
      %p113 = por %p111, %p112
      %s115 = sadd.s32 %s114, 1
      %p118 = scmp.eq.s32.totalorder %s17, 1
      %p119 = scmp.ne.s32.totalorder %s114, %s116
      %p120 = scmp.eq.s32.totalorder %s17, 0
      %p121 = por %p119, %p120
      %p122 = scmp.ne.s32.totalorder %s114, %s116
      %p123 = scmp.eq.s32.totalorder %s22, 1
      %p124 = por %p122, %p123
      %p125 = scmp.ne.s32.totalorder %s116, %s117
      %p126 = scmp.eq.s32.totalorder %s22, 0
      %p127 = por %p125, %p126
      %p128 = scmp.ne.s32.totalorder %s116, %s117
      %p129 = scmp.eq.s32.totalorder %s23, 1
      %p130 = por %p128, %p129
      %p132 = scmp.ne.s32.totalorder %s117, %s131
      %p133 = scmp.eq.s32.totalorder %s23, 0
      %p134 = por %p132, %p133
      %s136 = sadd.s32 %s135, 1
      %p139 = scmp.eq.s32.totalorder %s17, 1
      %p140 = scmp.ne.s32.totalorder %s135, %s137
      %p141 = scmp.eq.s32.totalorder %s17, 0
      %p142 = por %p140, %p141
      %p143 = scmp.ne.s32.totalorder %s135, %s137
      %p144 = scmp.eq.s32.totalorder %s22, 1
      %p145 = por %p143, %p144
      %p146 = scmp.ne.s32.totalorder %s137, %s138
      %p147 = scmp.eq.s32.totalorder %s22, 0
      %p148 = por %p146, %p147
      %p149 = scmp.ne.s32.totalorder %s137, %s138
      %p150 = scmp.eq.s32.totalorder %s23, 1
      %p151 = por %p149, %p150
      %p153 = scmp.ne.s32.totalorder %s138, %s152
      %p154 = scmp.eq.s32.totalorder %s23, 0
      %p155 = por %p153, %p154
      %s157 = sadd.s32 %s156, 1
      %p160 = scmp.eq.s32.totalorder %s17, 1
      %p161 = scmp.ne.s32.totalorder %s156, %s158
      %p162 = scmp.eq.s32.totalorder %s17, 0
      %p163 = por %p161, %p162
      %p164 = scmp.ne.s32.totalorder %s156, %s158
      %p165 = scmp.eq.s32.totalorder %s22, 1
      %p166 = por %p164, %p165
      %p167 = scmp.ne.s32.totalorder %s158, %s159
      %p168 = scmp.eq.s32.totalorder %s22, 0
      %p169 = por %p167, %p168
      %p170 = scmp.ne.s32.totalorder %s158, %s159
      %p171 = scmp.eq.s32.totalorder %s23, 1
      %p172 = por %p170, %p171
      %p174 = scmp.ne.s32.totalorder %s159, %s173
      %p175 = scmp.eq.s32.totalorder %s23, 0
      %p176 = por %p174, %p175
      %s178 = sadd.s32 %s177, 1
      %p181 = scmp.eq.s32.totalorder %s17, 1
      %p182 = scmp.ne.s32.totalorder %s177, %s179
      %p183 = scmp.eq.s32.totalorder %s17, 0
      %p184 = por %p182, %p183
      %p185 = scmp.ne.s32.totalorder %s177, %s179
      %p186 = scmp.eq.s32.totalorder %s22, 1
      %p187 = por %p185, %p186
      %p188 = scmp.ne.s32.totalorder %s179, %s180
      %p189 = scmp.eq.s32.totalorder %s22, 0
      %p190 = por %p188, %p189
      %p191 = scmp.ne.s32.totalorder %s179, %s180
      %p192 = scmp.eq.s32.totalorder %s23, 1
      %p193 = por %p191, %p192
      %p195 = scmp.ne.s32.totalorder %s180, %s194
      %p196 = scmp.eq.s32.totalorder %s23, 0
      %p197 = por %p195, %p196
      %s198 = ssub.s32 %s17, %s24
      %p199 = scmp.eq.s32.totalorder %s198, 0
      %s201 = sadd.s32 %s200, 1
      %s202 = scalar_select %p199, %s200, %s201
      %p205 = pneg %p199
      %p206 = scmp.eq.s32.totalorder %s17, 1
      %p207 = por %p205, %p206
      %p208 = scmp.ne.s32.totalorder %s200, %s203
      %p209 = scmp.eq.s32.totalorder %s17, 0
      %p210 = por %p208, %p209
      %p211 = scmp.ne.s32.totalorder %s200, %s203
      %p212 = scmp.eq.s32.totalorder %s22, 1
      %p213 = por %p211, %p212
      %p214 = scmp.ne.s32.totalorder %s203, %s204
      %p215 = scmp.eq.s32.totalorder %s22, 0
      %p216 = por %p214, %p215
      %p217 = scmp.ne.s32.totalorder %s203, %s204
      %p218 = scmp.eq.s32.totalorder %s23, 1
      %p219 = por %p217, %p218
      %p221 = scmp.ne.s32.totalorder %s204, %s220
      %p222 = scmp.eq.s32.totalorder %s23, 0
      %p223 = por %p221, %p222
      %p224 = scmp.le.s32.totalorder 1, %s17
      %p225 = scmp.lt.s32.totalorder %s17, 3
      %p226 = pnand %p224, %p225
      %p227 = pneg %p226
      // Predicated region
      $region9: #{tpu_custom_call.1} parent=5 // pred_check
        _
      $region10: #{tpu_custom_call.1} parent=5 // pred_check_branch
        %229 = sbr.rel (%p226) target = $region12
      $region11: #{tpu_custom_call.1} parent=5 // pred_region
        %s230 = ssub.s32 %s17, 1
        // Predicated region
        $region13: #{tpu_custom_call.1} parent=11 // pred_check
          %p231 = pneg %p64
        $region14: #{tpu_custom_call.1} parent=11 // pred_check_branch
          %233 = sbr.rel (%p231) target = $region16
        $region15: #{tpu_custom_call.1} parent=11 // pred_region
          _
        $region16: #{tpu_custom_call.1} parent=11 // pred_fallthru
          _
        // Predicated region
        $region17: #{tpu_custom_call.1} parent=11 // pred_check
          %p234 = pneg %p85
        $region18: #{tpu_custom_call.1} parent=11 // pred_check_branch
          %236 = sbr.rel (%p234) target = $region20
        $region19: #{tpu_custom_call.1} parent=11 // pred_region
          _
        $region20: #{tpu_custom_call.1} parent=11 // pred_fallthru
          _
        // Predicated region
        $region21: #{tpu_custom_call.1} parent=11 // pred_check
          %p237 = pneg %p106
        $region22: #{tpu_custom_call.1} parent=11 // pred_check_branch
          %239 = sbr.rel (%p237) target = $region24
        $region23: #{tpu_custom_call.1} parent=11 // pred_region
          _
        $region24: #{tpu_custom_call.1} parent=11 // pred_fallthru
          _
        // Predicated region
        $region25: #{tpu_custom_call.1} parent=11 // pred_check
          %p240 = pneg %p127
        $region26: #{tpu_custom_call.1} parent=11 // pred_check_branch
          %242 = sbr.rel (%p240) target = $region28
        $region27: #{tpu_custom_call.1} parent=11 // pred_region
          _
        $region28: #{tpu_custom_call.1} parent=11 // pred_fallthru
          _
        // Predicated region
        $region29: #{tpu_custom_call.1} parent=11 // pred_check
          %p243 = pneg %p148
        $region30: #{tpu_custom_call.1} parent=11 // pred_check_branch
          %245 = sbr.rel (%p243) target = $region32
        $region31: #{tpu_custom_call.1} parent=11 // pred_region
          _
        $region32: #{tpu_custom_call.1} parent=11 // pred_fallthru
          _
        // Predicated region
        $region33: #{tpu_custom_call.1} parent=11 // pred_check
          %p246 = pneg %p169
        $region34: #{tpu_custom_call.1} parent=11 // pred_check_branch
          %248 = sbr.rel (%p246) target = $region36
        $region35: #{tpu_custom_call.1} parent=11 // pred_region
          _
        $region36: #{tpu_custom_call.1} parent=11 // pred_fallthru
          _
        // Predicated region
        $region37: #{tpu_custom_call.1} parent=11 // pred_check
          %p249 = pneg %p190
        $region38: #{tpu_custom_call.1} parent=11 // pred_check_branch
          %251 = sbr.rel (%p249) target = $region40
        $region39: #{tpu_custom_call.1} parent=11 // pred_region
          _
        $region40: #{tpu_custom_call.1} parent=11 // pred_fallthru
          _
      $region12: #{tpu_custom_call.1} parent=5 // pred_fallthru
        _
      %p252 = scmp.lt.s32.totalorder %s17, 2
      // Predicated region
      $region41: #{tpu_custom_call.1} parent=5 // pred_check
        %p253 = pneg %p252
      $region42: #{tpu_custom_call.1} parent=5 // pred_check_branch
        %255 = sbr.rel (%p253) target = $region44
      $region43: #{tpu_custom_call.1} parent=5 // pred_region
        // Predicated region
        $region45: #{tpu_custom_call.1} parent=43 // pred_check
          %p256 = pneg %p37
        $region46: #{tpu_custom_call.1} parent=43 // pred_check_branch
          %258 = sbr.rel (%p256) target = $region48
        $region47: #{tpu_custom_call.1} parent=43 // pred_region
          %p259 = scmp.lt.s32.totalorder %s17, 1
          %s260 = scalar_select %p259, %s17, 1
          %s261 = smul.addr %s260, 8
          %s262 = smul.addr %s261, 8
          %s263 = scalar_lea.vmem %s0, %s262
        $region48: #{tpu_custom_call.1} parent=43 // pred_fallthru
          _
      $region44: #{tpu_custom_call.1} parent=5 // pred_fallthru
        _
      %p264 = scmp.le.s32.totalorder 1, %s17
      %p265 = scmp.lt.s32.totalorder %s17, 3
      %p266 = pnand %p264, %p265
      %p267 = pneg %p266
      // Predicated region
      $region49: #{tpu_custom_call.1} parent=5 // pred_check
        _
      $region50: #{tpu_custom_call.1} parent=5 // pred_check_branch
        %269 = sbr.rel (%p266) target = $region52
      $region51: #{tpu_custom_call.1} parent=5 // pred_region
        %s270 = ssub.s32 %s17, 1
        %p271 = scmp.lt.s32.totalorder %s22, 1
        %s272 = scalar_select %p271, %s22, 1
        %s273 = smul.addr %s272, 8
        %s274 = smul.addr %s273, 8
        %s275 = scalar_lea.vmem %s0, %s274
        %p276 = pneg %p43
        %p277 = pneg %p40
        %p278 = pneg %p64
        %p279 = pneg %p61
        %p280 = pneg %p85
        %p281 = pneg %p82
        %p282 = pneg %p106
        %p283 = pneg %p103
        %p284 = pneg %p127
        %p285 = pneg %p124
        %p286 = pneg %p148
        %p287 = pneg %p145
        %p288 = pneg %p169
        %p289 = pneg %p166
        %p290 = pneg %p190
        %p291 = pneg %p187
        %p292 = pneg %p216
        %p293 = pneg %p213
        %s294 = sand.u32 %s203, 1
        %s295 = scalar_lea.sflag [#allocation3], %s294
        %s296 = sand.u32 %s203, 1
        %s297 = smul.addr %s296, 64
        %s298 = scalar_lea.vmem [#allocation2], %s297
        %p299 = scmp.lt.s32.totalorder %s22, 1
        %s300 = scalar_select %p299, %s22, 1
        %s301 = smul.addr %s300, 8
        %s302 = smul.addr %s301, 8
        %s303 = scalar_lea.vmem %s0, %s302
        %v304 = vld [vmem:[%s1] sm:$0xff]
        %v305 = vld [vmem:[%s1 + $0x8] sm:$0xff]
        %v306 = vld [vmem:[%s1 + $0x10] sm:$0xff]
        %v307 = vld [vmem:[%s1 + $0x18] sm:$0xff]
        %v308 = vld [vmem:[%s7] sm:$0xff]
        %v309 = vld [vmem:[%s7 + $0x8] sm:$0xff]
        %v310 = vld [vmem:[%s7 + $0x10] sm:$0xff]
        %v311 = vld [vmem:[%s7 + $0x18] sm:$0xff]
        %v312 = vld [vmem:[%s6] sm:$0xff]
        %v313 = vld [vmem:[%s6 + $0x8] sm:$0xff]
        %v314 = vld [vmem:[%s6 + $0x10] sm:$0xff]
        %v315 = vld [vmem:[%s6 + $0x18] sm:$0xff]
        %v316 = vld [vmem:[%s2] sm:$0xff]
        %v317 = vld [vmem:[%s2 + $0x8] sm:$0xff]
        %v318 = vld [vmem:[%s2 + $0x10] sm:$0xff]
        %v319 = vld [vmem:[%s2 + $0x18] sm:$0xff]
        %v320 = vld [vmem:[%s2 + $0x20] sm:$0xff]
        %v321 = vld [vmem:[%s2 + $0x28] sm:$0xff]
        %v322 = vld [vmem:[%s2 + $0x30] sm:$0xff]
        %v323 = vld [vmem:[%s2 + $0x38] sm:$0xff]
        %v324 = vld [vmem:[%s2 + $0x40] sm:$0xff]
        %v325 = vld [vmem:[%s2 + $0x48] sm:$0xff]
        %v326 = vld [vmem:[%s2 + $0x50] sm:$0xff]
        %v327 = vld [vmem:[%s2 + $0x58] sm:$0xff]
        %v328 = vld [vmem:[%s2 + $0x60] sm:$0xff]
        %v329 = vld [vmem:[%s2 + $0x68] sm:$0xff]
        %v330 = vld [vmem:[%s2 + $0x70] sm:$0xff]
        %v331 = vld [vmem:[%s2 + $0x78] sm:$0xff]
        %v332 = vld [vmem:[%s2 + $0x80] sm:$0xff]
        %v333 = vld [vmem:[%s2 + $0x88] sm:$0xff]
        %v334 = vld [vmem:[%s2 + $0x90] sm:$0xff]
        %v335 = vld [vmem:[%s2 + $0x98] sm:$0xff]
        %v336 = vld [vmem:[%s2 + $0xa0] sm:$0xff]
        %v337 = vld [vmem:[%s2 + $0xa8] sm:$0xff]
        %v338 = vld [vmem:[%s2 + $0xb0] sm:$0xff]
        %v339 = vld [vmem:[%s2 + $0xb8] sm:$0xff]
        %v340 = vld [vmem:[%s2 + $0xc0] sm:$0xff]
        %v341 = vld [vmem:[%s2 + $0xc8] sm:$0xff]
        %v342 = vld [vmem:[%s2 + $0xd0] sm:$0xff]
        %v343 = vld [vmem:[%s2 + $0xd8] sm:$0xff]
        %v344 = vld [vmem:[%s2 + $0xe0] sm:$0xff]
        %v345 = vld [vmem:[%s2 + $0xe8] sm:$0xff]
        %v346 = vld [vmem:[%s2 + $0xf0] sm:$0xff]
        %v347 = vld [vmem:[%s2 + $0xf8] sm:$0xff]
        %v348 = vld [vmem:[%s2 + $0x100] sm:$0xff]
        %v349 = vld [vmem:[%s2 + $0x108] sm:$0xff]
        %v350 = vld [vmem:[%s2 + $0x110] sm:$0xff]
        %v351 = vld [vmem:[%s2 + $0x118] sm:$0xff]
        %v352 = vld [vmem:[%s2 + $0x120] sm:$0xff]
        %v353 = vld [vmem:[%s2 + $0x128] sm:$0xff]
        %v354 = vld [vmem:[%s2 + $0x130] sm:$0xff]
        %v355 = vld [vmem:[%s2 + $0x138] sm:$0xff]
        %v356 = vld [vmem:[%s2 + $0x140] sm:$0xff]
        %v357 = vld [vmem:[%s2 + $0x148] sm:$0xff]
        %v358 = vld [vmem:[%s2 + $0x150] sm:$0xff]
        %v359 = vld [vmem:[%s2 + $0x158] sm:$0xff]
        %v360 = vld [vmem:[%s2 + $0x160] sm:$0xff]
        %v361 = vld [vmem:[%s2 + $0x168] sm:$0xff]
        %v362 = vld [vmem:[%s2 + $0x170] sm:$0xff]
        %v363 = vld [vmem:[%s2 + $0x178] sm:$0xff]
        %v364 = vld [vmem:[%s3] sm:$0xff]
        %v365 = vld [vmem:[%s3 + $0x8] sm:$0xff]
        %v366 = vld [vmem:[%s3 + $0x10] sm:$0xff]
        %v367 = vld [vmem:[%s3 + $0x18] sm:$0xff]
        %v368 = vld [vmem:[%s3 + $0x20] sm:$0xff]
        %v369 = vld [vmem:[%s3 + $0x28] sm:$0xff]
        %v370 = vld [vmem:[%s3 + $0x30] sm:$0xff]
        %v371 = vld [vmem:[%s3 + $0x38] sm:$0xff]
        %v372 = vld [vmem:[%s3 + $0x40] sm:$0xff]
        %v373 = vld [vmem:[%s3 + $0x48] sm:$0xff]
        %v374 = vld [vmem:[%s3 + $0x50] sm:$0xff]
        %v375 = vld [vmem:[%s3 + $0x58] sm:$0xff]
        %v376 = vld [vmem:[%s3 + $0x60] sm:$0xff]
        %v377 = vld [vmem:[%s3 + $0x68] sm:$0xff]
        %v378 = vld [vmem:[%s3 + $0x70] sm:$0xff]
        %v379 = vld [vmem:[%s3 + $0x78] sm:$0xff]
        %v380 = vld [vmem:[%s4] sm:$0xff]
        %v381 = vld [vmem:[%s4 + $0x8] sm:$0xff]
        %v382 = vld [vmem:[%s4 + $0x10] sm:$0xff]
        %v383 = vld [vmem:[%s4 + $0x18] sm:$0xff]
        %v384 = vld [vmem:[%s4 + $0x20] sm:$0xff]
        %v385 = vld [vmem:[%s4 + $0x28] sm:$0xff]
        %v386 = vld [vmem:[%s4 + $0x30] sm:$0xff]
        %v387 = vld [vmem:[%s4 + $0x38] sm:$0xff]
        %v388 = vld [vmem:[%s4 + $0x40] sm:$0xff]
        %v389 = vld [vmem:[%s4 + $0x48] sm:$0xff]
        %v390 = vld [vmem:[%s4 + $0x50] sm:$0xff]
        %v391 = vld [vmem:[%s4 + $0x58] sm:$0xff]
        %v392 = vld [vmem:[%s4 + $0x60] sm:$0xff]
        %v393 = vld [vmem:[%s4 + $0x68] sm:$0xff]
        %v394 = vld [vmem:[%s4 + $0x70] sm:$0xff]
        %v395 = vld [vmem:[%s4 + $0x78] sm:$0xff]
        %vm396 = vcmask 31744
        %v397 = vsel %vm396, %v364, -inf
        %398 = vmax.xlane.f32.xlu0 %v397
        %v399 = vpop.xlane.xlu0 %398
        %v400 = vsel %vm396, %v365, -inf
        %401 = vmax.xlane.f32.xlu0 %v400
        %v402 = vpop.xlane.xlu0 %401
        %v403 = vsel %vm396, %v366, -inf
        %404 = vmax.xlane.f32.xlu0 %v403
        %v405 = vpop.xlane.xlu0 %404
        %v406 = vsel %vm396, %v367, -inf
        %407 = vmax.xlane.f32.xlu0 %v406
        %v408 = vpop.xlane.xlu0 %407
        %v409 = vsel %vm396, %v368, -inf
        %410 = vmax.xlane.f32.xlu0 %v409
        %v411 = vpop.xlane.xlu0 %410
        %v412 = vsel %vm396, %v369, -inf
        %413 = vmax.xlane.f32.xlu0 %v412
        %v414 = vpop.xlane.xlu0 %413
        %v415 = vsel %vm396, %v370, -inf
        %416 = vmax.xlane.f32.xlu0 %v415
        %v417 = vpop.xlane.xlu0 %416
        %v418 = vsel %vm396, %v371, -inf
        %419 = vmax.xlane.f32.xlu0 %v418
        %v420 = vpop.xlane.xlu0 %419
        %v421 = vsel %vm396, %v372, -inf
        %422 = vmax.xlane.f32.xlu0 %v421
        %v423 = vpop.xlane.xlu0 %422
        %v424 = vsel %vm396, %v373, -inf
        %425 = vmax.xlane.f32.xlu0 %v424
        %v426 = vpop.xlane.xlu0 %425
        %v427 = vsel %vm396, %v374, -inf
        %428 = vmax.xlane.f32.xlu0 %v427
        %v429 = vpop.xlane.xlu0 %428
        %v430 = vsel %vm396, %v375, -inf
        %431 = vmax.xlane.f32.xlu0 %v430
        %v432 = vpop.xlane.xlu0 %431
        %v433 = vsel %vm396, %v376, -inf
        %434 = vmax.xlane.f32.xlu0 %v433
        %v435 = vpop.xlane.xlu0 %434
        %v436 = vsel %vm396, %v377, -inf
        %437 = vmax.xlane.f32.xlu0 %v436
        %v438 = vpop.xlane.xlu0 %437
        %v439 = vsel %vm396, %v378, -inf
        %440 = vmax.xlane.f32.xlu0 %v439
        %v441 = vpop.xlane.xlu0 %440
        %v442 = vsel %vm396, %v379, -inf
        %443 = vmax.xlane.f32.xlu0 %v442
        %v444 = vpop.xlane.xlu0 %443
        %v445 = vld [vmem:[%s303] sm:$0xff]
        %v446 = vld [vmem:[%s303 + $0x8] sm:$0xff]
        %v447 = vld [vmem:[%s303 + $0x10] sm:$0xff]
        %v448 = vld [vmem:[%s303 + $0x18] sm:$0xff]
        %v449 = vld [vmem:[%s303 + $0x20] sm:$0xff]
        %v450 = vld [vmem:[%s303 + $0x28] sm:$0xff]
        %v451 = vld [vmem:[%s303 + $0x30] sm:$0xff]
        %v452 = vld [vmem:[%s303 + $0x38] sm:$0xff]
        %v453 = vmul.f32 %v445, %v445
        %v454 = vmul.f32 %v446, %v446
        %v455 = vmul.f32 %v447, %v447
        %v456 = vmul.f32 %v448, %v448
        %v457 = vmul.f32 %v449, %v449
        %v458 = vmul.f32 %v450, %v450
        %v459 = vmul.f32 %v451, %v451
        %v460 = vmul.f32 %v452, %v452
        %v461 = vadd.f32 %v453, %v455
        %v462 = vadd.f32 %v461, %v457
        %v463 = vadd.f32 %v462, %v459
        %v464 = vrot.slane %v463, 4
        %v465 = vadd.f32 %v463, %v464
        %v466 = vrot.slane %v465, 2
        %v467 = vadd.f32 %v465, %v466
        %v468 = vrot.slane %v467, 1
        %v469 = vadd.f32 %v467, %v468
        %v470 = vadd.f32 %v454, %v456
        %v471 = vadd.f32 %v470, %v458
        %v472 = vadd.f32 %v471, %v460
        %v473 = vrot.slane %v472, 4
        %v474 = vadd.f32 %v472, %v473
        %v475 = vrot.slane %v474, 2
        %v476 = vadd.f32 %v474, %v475
        %v477 = vrot.slane %v476, 1
        %v478 = vadd.f32 %v476, %v477
        %v479 = vmax.f32 %v469, 1e-24
        %v480 = vmax.f32 %v478, 1e-24
        %v481 = vrsqrt.pop %v479
        %v482 = vrsqrt.pop %v480
        %v483 = vmul.f32 %v445, %v481
        %v484 = vmul.f32 %v446, %v482
        %v485 = vmul.f32 %v447, %v481
        %v486 = vmul.f32 %v448, %v482
        %v487 = vmul.f32 %v449, %v481
        %v488 = vmul.f32 %v450, %v482
        %v489 = vmul.f32 %v451, %v481
        %v490 = vmul.f32 %v452, %v482
        %492 = vset.pattern.permute.xlu0 0
        %493 = vperm.xlu0 %492, %v304
        %v494 = vpop.permute.xlu0 %493
        %497 = vset.pattern.permute.xlu0 0
        %498 = vperm.xlu0 %497, %v305
        %v499 = vpop.permute.xlu0 %498
        %502 = vset.pattern.permute.xlu0 0
        %503 = vperm.xlu0 %502, %v306
        %v504 = vpop.permute.xlu0 %503
        %507 = vset.pattern.permute.xlu0 0
        %508 = vperm.xlu0 %507, %v307
        %v509 = vpop.permute.xlu0 %508
        %v511 = vmul.f32 %v483, %v494
        %v512 = vmul.f32 %v484, %v494
        %v513 = vmul.f32 %v485, %v499
        %v514 = vmul.f32 %v486, %v499
        %v515 = vmul.f32 %v487, %v504
        %v516 = vmul.f32 %v488, %v504
        %v517 = vmul.f32 %v489, %v509
        %v518 = vmul.f32 %v490, %v509
        %vm519 = vcmask 261120
        %v521 = vsel %vm519, %v316, 0
        %v524 = vsel %vm519, %v317, 0
        %v527 = vsel %vm519, %v318, 0
        %v530 = vsel %vm519, %v319, 0
        %v533 = vsel %vm519, %v320, 0
        %v536 = vsel %vm519, %v321, 0
        %v539 = vsel %vm519, %v322, 0
        %v542 = vsel %vm519, %v323, 0
        %v545 = vsel %vm519, %v324, 0
        %v548 = vsel %vm519, %v325, 0
        %v551 = vsel %vm519, %v326, 0
        %v554 = vsel %vm519, %v327, 0
        %v557 = vsel %vm519, %v328, 0
        %v560 = vsel %vm519, %v329, 0
        %v563 = vsel %vm519, %v330, 0
        %v566 = vsel %vm519, %v331, 0
        %v569 = vsel %vm519, %v332, 0
        %v572 = vsel %vm519, %v333, 0
        %v575 = vsel %vm519, %v334, 0
        %v578 = vsel %vm519, %v335, 0
        %v581 = vsel %vm519, %v336, 0
        %v584 = vsel %vm519, %v337, 0
        %v587 = vsel %vm519, %v338, 0
        %v590 = vsel %vm519, %v339, 0
        %v593 = vsel %vm519, %v340, 0
        %v596 = vsel %vm519, %v341, 0
        %v599 = vsel %vm519, %v342, 0
        %v602 = vsel %vm519, %v343, 0
        %v605 = vsel %vm519, %v344, 0
        %v608 = vsel %vm519, %v345, 0
        %v611 = vsel %vm519, %v346, 0
        %v614 = vsel %vm519, %v347, 0
        %v617 = vsel %vm519, %v348, 0
        %v620 = vsel %vm519, %v349, 0
        %v623 = vsel %vm519, %v350, 0
        %v626 = vsel %vm519, %v351, 0
        %v629 = vsel %vm519, %v352, 0
        %v632 = vsel %vm519, %v353, 0
        %v635 = vsel %vm519, %v354, 0
        %v638 = vsel %vm519, %v355, 0
        %v641 = vsel %vm519, %v356, 0
        %v644 = vsel %vm519, %v357, 0
        %v647 = vsel %vm519, %v358, 0
        %v650 = vsel %vm519, %v359, 0
        %v653 = vsel %vm519, %v360, 0
        %v656 = vsel %vm519, %v361, 0
        %v659 = vsel %vm519, %v362, 0
        %v662 = vsel %vm519, %v363, 0
        %664 = vmatprep.subr.mxu0 %v512
        %665 = vmatpush1.msra.mxu0 %v511
        %666 = vmatprep.subr.mxu0 %v514
        %667 = vmatpush1.msra.mxu0 %v513
        %668 = vmatprep.subr.mxu0 %v516
        %669 = vmatpush1.msra.mxu0 %v515
        %670 = vmatprep.subr.mxu0 %v518
        %671 = vmatpush1.msra.mxu0 %v517
        %672 = vmatprep.subr.mxu0 0.0
        %673 = vmatpush1.msra.mxu0 0.0
        %674 = vmatprep.subr.mxu0 0.0
        %675 = vmatpush1.msra.mxu0 0.0
        %676 = vmatprep.subr.mxu0 0.0
        %677 = vmatpush1.msra.mxu0 0.0
        %678 = vmatprep.subr.mxu0 0.0
        %679 = vmatpush1.msra.mxu0 0.0
        %680 = vmatprep.subr.mxu0 0.0
        %681 = vmatpush1.msra.mxu0 0.0
        %682 = vmatprep.subr.mxu0 0.0
        %683 = vmatpush1.msra.mxu0 0.0
        %684 = vmatprep.subr.mxu0 0.0
        %685 = vmatpush1.msra.mxu0 0.0
        %686 = vmatprep.subr.mxu0 0.0
        %687 = vmatpush1.msra.mxu0 0.0
        %688 = vmatprep.subr.mxu0 0.0
        %689 = vmatpush1.msra.mxu0 0.0
        %690 = vmatprep.subr.mxu0 0.0
        %691 = vmatpush1.msra.mxu0 0.0
        %692 = vmatprep.subr.mxu0 0.0
        %693 = vmatpush1.msra.mxu0 0.0
        %694 = vmatprep.subr.mxu0 0.0
        %695 = vmatpush1.msra.mxu0 0.0
        %696 = vmatprep.subr.mxu0 0.0
        %697 = vmatpush1.msra.mxu0 0.0
        %698 = vmatprep.subr.mxu0 0.0
        %699 = vmatpush1.msra.mxu0 0.0
        %700 = vmatprep.subr.mxu0 0.0
        %701 = vmatpush1.msra.mxu0 0.0
        %702 = vmatprep.subr.mxu0 0.0
        %703 = vmatpush1.msra.mxu0 0.0
        %704 = vmatprep.subr.mxu0 0.0
        %705 = vmatpush1.msra.mxu0 0.0
        %706 = vmatprep.subr.mxu0 0.0
        %707 = vmatpush1.msra.mxu0 0.0
        %708 = vmatprep.subr.mxu0 0.0
        %709 = vmatpush1.msra.mxu0 0.0
        %710 = vmatprep.subr.mxu0 0.0
        %711 = vmatpush1.msra.mxu0 0.0
        %712 = vmatprep.subr.mxu0 0.0
        %713 = vmatpush1.msra.mxu0 0.0
        %714 = vmatprep.subr.mxu0 0.0
        %715 = vmatpush1.msra.mxu0 0.0
        %716 = vmatprep.subr.mxu0 0.0
        %717 = vmatpush1.msra.mxu0 0.0
        %718 = vmatprep.subr.mxu0 0.0
        %719 = vmatpush1.msra.mxu0 0.0
        %720 = vmatprep.subr.mxu0 0.0
        %721 = vmatpush1.msra.mxu0 0.0
        %722 = vmatprep.subr.mxu0 0.0
        %723 = vmatpush1.msra.mxu0 0.0
        %724 = vmatprep.subr.mxu0 0.0
        %725 = vmatpush1.msra.mxu0 0.0
        %726 = vmatprep.subr.mxu0 0.0
        %727 = vmatpush1.msra.mxu0 0.0
        %728 = vmatprep.mubr.f32.mxu0 0.0
        %729 = vmatmul.mubr.f32.gmra.mrb[0].mxu0 %v521
        %v730 = vpop.f32.mrb[0].mxu0
        %v731 = vadd.f32 0.0, %v730
        %v732 = vpop.f32.mrb[0].mxu0
        %v733 = vadd.f32 0.0, %v732
        %734 = vmatprep.mubr.f32.mxu0 0.0
        %735 = vmatmul.mubr.f32.gmra.mrb[0].mxu0 %v524
        %v736 = vpop.f32.mrb[0].mxu0
        %v737 = vadd.f32 0.0, %v736
        %v738 = vpop.f32.mrb[0].mxu0
        %v739 = vadd.f32 0.0, %v738
        %740 = vmatprep.mubr.f32.mxu0 0.0
        %741 = vmatmul.mubr.f32.gmra.mrb[0].mxu0 %v527
        %v742 = vpop.f32.mrb[0].mxu0
        %v743 = vadd.f32 0.0, %v742
        %v744 = vpop.f32.mrb[0].mxu0
        %v745 = vadd.f32 0.0, %v744
        %746 = vmatprep.mubr.f32.mxu0 0.0
        %747 = vmatmul.mubr.f32.gmra.mrb[0].mxu0 %v530
        %v748 = vpop.f32.mrb[0].mxu0
        %v749 = vadd.f32 0.0, %v748
        %v750 = vpop.f32.mrb[0].mxu0
        %v751 = vadd.f32 0.0, %v750
        %752 = vmatprep.mubr.f32.mxu0 0.0
        %753 = vmatmul.mubr.f32.gmra.mrb[0].mxu0 %v533
        %v754 = vpop.f32.mrb[0].mxu0
        %v755 = vadd.f32 0.0, %v754
        %v756 = vpop.f32.mrb[0].mxu0
        %v757 = vadd.f32 0.0, %v756
        %758 = vmatprep.mubr.f32.mxu0 0.0
        %759 = vmatmul.mubr.f32.gmra.mrb[0].mxu0 %v536
        %v760 = vpop.f32.mrb[0].mxu0
        %v761 = vadd.f32 0.0, %v760
        %v762 = vpop.f32.mrb[0].mxu0
        %v763 = vadd.f32 0.0, %v762
        %764 = vmatprep.mubr.f32.mxu0 0.0
        %765 = vmatmul.mubr.f32.gmra.mrb[0].mxu0 %v539
        %v766 = vpop.f32.mrb[0].mxu0
        %v767 = vadd.f32 0.0, %v766
        %v768 = vpop.f32.mrb[0].mxu0
        %v769 = vadd.f32 0.0, %v768
        %770 = vmatprep.mubr.f32.mxu0 0.0
        %771 = vmatmul.mubr.f32.gmra.mrb[0].mxu0 %v542
        %v772 = vpop.f32.mrb[0].mxu0
        %v773 = vadd.f32 0.0, %v772
        %v774 = vpop.f32.mrb[0].mxu0
        %v775 = vadd.f32 0.0, %v774
        %776 = vmatprep.mubr.f32.mxu0 0.0
        %777 = vmatmul.mubr.f32.gmra.mrb[0].mxu0 %v545
        %v778 = vpop.f32.mrb[0].mxu0
        %v779 = vadd.f32 0.0, %v778
        %v780 = vpop.f32.mrb[0].mxu0
        %v781 = vadd.f32 0.0, %v780
        %782 = vmatprep.mubr.f32.mxu0 0.0
        %783 = vmatmul.mubr.f32.gmra.mrb[0].mxu0 %v548
        %v784 = vpop.f32.mrb[0].mxu0
        %v785 = vadd.f32 0.0, %v784
        %v786 = vpop.f32.mrb[0].mxu0
        %v787 = vadd.f32 0.0, %v786
        %788 = vmatprep.mubr.f32.mxu0 0.0
        %789 = vmatmul.mubr.f32.gmra.mrb[0].mxu0 %v551
        %v790 = vpop.f32.mrb[0].mxu0
        %v791 = vadd.f32 0.0, %v790
        %v792 = vpop.f32.mrb[0].mxu0
        %v793 = vadd.f32 0.0, %v792
        %794 = vmatprep.mubr.f32.mxu0 0.0
        %795 = vmatmul.mubr.f32.gmra.mrb[0].mxu0 %v554
        %v796 = vpop.f32.mrb[0].mxu0
        %v797 = vadd.f32 0.0, %v796
        %v798 = vpop.f32.mrb[0].mxu0
        %v799 = vadd.f32 0.0, %v798
        %800 = vmatprep.mubr.f32.mxu0 0.0
        %801 = vmatmul.mubr.f32.gmra.mrb[0].mxu0 %v557
        %v802 = vpop.f32.mrb[0].mxu0
        %v803 = vadd.f32 0.0, %v802
        %v804 = vpop.f32.mrb[0].mxu0
        %v805 = vadd.f32 0.0, %v804
        %806 = vmatprep.mubr.f32.mxu0 0.0
        %807 = vmatmul.mubr.f32.gmra.mrb[0].mxu0 %v560
        %v808 = vpop.f32.mrb[0].mxu0
        %v809 = vadd.f32 0.0, %v808
        %v810 = vpop.f32.mrb[0].mxu0
        %v811 = vadd.f32 0.0, %v810
        %812 = vmatprep.mubr.f32.mxu0 0.0
        %813 = vmatmul.mubr.f32.gmra.mrb[0].mxu0 %v563
        %v814 = vpop.f32.mrb[0].mxu0
        %v815 = vadd.f32 0.0, %v814
        %v816 = vpop.f32.mrb[0].mxu0
        %v817 = vadd.f32 0.0, %v816
        %818 = vmatprep.mubr.f32.mxu0 0.0
        %819 = vmatmul.mubr.f32.gmra.mrb[0].mxu0 %v566
        %v820 = vpop.f32.mrb[0].mxu0
        %v821 = vadd.f32 0.0, %v820
        %v822 = vpop.f32.mrb[0].mxu0
        %v823 = vadd.f32 0.0, %v822
        %824 = vmatprep.mubr.f32.mxu0 0.0
        %825 = vmatmul.mubr.f32.gmra.mrb[0].mxu0 %v569
        %v826 = vpop.f32.mrb[0].mxu0
        %v827 = vadd.f32 0.0, %v826
        %v828 = vpop.f32.mrb[0].mxu0
        %v829 = vadd.f32 0.0, %v828
        %830 = vmatprep.mubr.f32.mxu0 0.0
        %831 = vmatmul.mubr.f32.gmra.mrb[0].mxu0 %v572
        %v832 = vpop.f32.mrb[0].mxu0
        %v833 = vadd.f32 0.0, %v832
        %v834 = vpop.f32.mrb[0].mxu0
        %v835 = vadd.f32 0.0, %v834
        %836 = vmatprep.mubr.f32.mxu0 0.0
        %837 = vmatmul.mubr.f32.gmra.mrb[0].mxu0 %v575
        %v838 = vpop.f32.mrb[0].mxu0
        %v839 = vadd.f32 0.0, %v838
        %v840 = vpop.f32.mrb[0].mxu0
        %v841 = vadd.f32 0.0, %v840
        %842 = vmatprep.mubr.f32.mxu0 0.0
        %843 = vmatmul.mubr.f32.gmra.mrb[0].mxu0 %v578
        %v844 = vpop.f32.mrb[0].mxu0
        %v845 = vadd.f32 0.0, %v844
        %v846 = vpop.f32.mrb[0].mxu0
        %v847 = vadd.f32 0.0, %v846
        %848 = vmatprep.mubr.f32.mxu0 0.0
        %849 = vmatmul.mubr.f32.gmra.mrb[0].mxu0 %v581
        %v850 = vpop.f32.mrb[0].mxu0
        %v851 = vadd.f32 0.0, %v850
        %v852 = vpop.f32.mrb[0].mxu0
        %v853 = vadd.f32 0.0, %v852
        %854 = vmatprep.mubr.f32.mxu0 0.0
        %855 = vmatmul.mubr.f32.gmra.mrb[0].mxu0 %v584
        %v856 = vpop.f32.mrb[0].mxu0
        %v857 = vadd.f32 0.0, %v856
        %v858 = vpop.f32.mrb[0].mxu0
        %v859 = vadd.f32 0.0, %v858
        %860 = vmatprep.mubr.f32.mxu0 0.0
        %861 = vmatmul.mubr.f32.gmra.mrb[0].mxu0 %v587
        %v862 = vpop.f32.mrb[0].mxu0
        %v863 = vadd.f32 0.0, %v862
        %v864 = vpop.f32.mrb[0].mxu0
        %v865 = vadd.f32 0.0, %v864
        %866 = vmatprep.mubr.f32.mxu0 0.0
        %867 = vmatmul.mubr.f32.gmra.mrb[0].mxu0 %v590
        %v868 = vpop.f32.mrb[0].mxu0
        %v869 = vadd.f32 0.0, %v868
        %v870 = vpop.f32.mrb[0].mxu0
        %v871 = vadd.f32 0.0, %v870
        %872 = vmatprep.mubr.f32.mxu0 0.0
        %873 = vmatmul.mubr.f32.gmra.mrb[0].mxu0 %v593
        %v874 = vpop.f32.mrb[0].mxu0
        %v875 = vadd.f32 0.0, %v874
        %v876 = vpop.f32.mrb[0].mxu0
        %v877 = vadd.f32 0.0, %v876
        %878 = vmatprep.mubr.f32.mxu0 0.0
        %879 = vmatmul.mubr.f32.gmra.mrb[0].mxu0 %v596
        %v880 = vpop.f32.mrb[0].mxu0
        %v881 = vadd.f32 0.0, %v880
        %v882 = vpop.f32.mrb[0].mxu0
        %v883 = vadd.f32 0.0, %v882
        %884 = vmatprep.mubr.f32.mxu0 0.0
        %885 = vmatmul.mubr.f32.gmra.mrb[0].mxu0 %v599
        %v886 = vpop.f32.mrb[0].mxu0
        %v887 = vadd.f32 0.0, %v886
        %v888 = vpop.f32.mrb[0].mxu0
        %v889 = vadd.f32 0.0, %v888
        %890 = vmatprep.mubr.f32.mxu0 0.0
        %891 = vmatmul.mubr.f32.gmra.mrb[0].mxu0 %v602
        %v892 = vpop.f32.mrb[0].mxu0
        %v893 = vadd.f32 0.0, %v892
        %v894 = vpop.f32.mrb[0].mxu0
        %v895 = vadd.f32 0.0, %v894
        %896 = vmatprep.mubr.f32.mxu0 0.0
        %897 = vmatmul.mubr.f32.gmra.mrb[0].mxu0 %v605
        %v898 = vpop.f32.mrb[0].mxu0
        %v899 = vadd.f32 0.0, %v898
        %v900 = vpop.f32.mrb[0].mxu0
        %v901 = vadd.f32 0.0, %v900
        %902 = vmatprep.mubr.f32.mxu0 0.0
        %903 = vmatmul.mubr.f32.gmra.mrb[0].mxu0 %v608
        %v904 = vpop.f32.mrb[0].mxu0
        %v905 = vadd.f32 0.0, %v904
        %v906 = vpop.f32.mrb[0].mxu0
        %v907 = vadd.f32 0.0, %v906
        %908 = vmatprep.mubr.f32.mxu0 0.0
        %909 = vmatmul.mubr.f32.gmra.mrb[0].mxu0 %v611
        %v910 = vpop.f32.mrb[0].mxu0
        %v911 = vadd.f32 0.0, %v910
        %v912 = vpop.f32.mrb[0].mxu0
        %v913 = vadd.f32 0.0, %v912
        %914 = vmatprep.mubr.f32.mxu0 0.0
        %915 = vmatmul.mubr.f32.gmra.mrb[0].mxu0 %v614
        %v916 = vpop.f32.mrb[0].mxu0
        %v917 = vadd.f32 0.0, %v916
        %v918 = vpop.f32.mrb[0].mxu0
        %v919 = vadd.f32 0.0, %v918
        %920 = vmatprep.mubr.f32.mxu0 0.0
        %921 = vmatmul.mubr.f32.gmra.mrb[0].mxu0 %v617
        %v922 = vpop.f32.mrb[0].mxu0
        %v923 = vadd.f32 0.0, %v922
        %v924 = vpop.f32.mrb[0].mxu0
        %v925 = vadd.f32 0.0, %v924
        %926 = vmatprep.mubr.f32.mxu0 0.0
        %927 = vmatmul.mubr.f32.gmra.mrb[0].mxu0 %v620
        %v928 = vpop.f32.mrb[0].mxu0
        %v929 = vadd.f32 0.0, %v928
        %v930 = vpop.f32.mrb[0].mxu0
        %v931 = vadd.f32 0.0, %v930
        %932 = vmatprep.mubr.f32.mxu0 0.0
        %933 = vmatmul.mubr.f32.gmra.mrb[0].mxu0 %v623
        %v934 = vpop.f32.mrb[0].mxu0
        %v935 = vadd.f32 0.0, %v934
        %v936 = vpop.f32.mrb[0].mxu0
        %v937 = vadd.f32 0.0, %v936
        %938 = vmatprep.mubr.f32.mxu0 0.0
        %939 = vmatmul.mubr.f32.gmra.mrb[0].mxu0 %v626
        %v940 = vpop.f32.mrb[0].mxu0
        %v941 = vadd.f32 0.0, %v940
        %v942 = vpop.f32.mrb[0].mxu0
        %v943 = vadd.f32 0.0, %v942
        %944 = vmatprep.mubr.f32.mxu0 0.0
        %945 = vmatmul.mubr.f32.gmra.mrb[0].mxu0 %v629
        %v946 = vpop.f32.mrb[0].mxu0
        %v947 = vadd.f32 0.0, %v946
        %v948 = vpop.f32.mrb[0].mxu0
        %v949 = vadd.f32 0.0, %v948
        %950 = vmatprep.mubr.f32.mxu0 0.0
        %951 = vmatmul.mubr.f32.gmra.mrb[0].mxu0 %v632
        %v952 = vpop.f32.mrb[0].mxu0
        %v953 = vadd.f32 0.0, %v952
        %v954 = vpop.f32.mrb[0].mxu0
        %v955 = vadd.f32 0.0, %v954
        %956 = vmatprep.mubr.f32.mxu0 0.0
        %957 = vmatmul.mubr.f32.gmra.mrb[0].mxu0 %v635
        %v958 = vpop.f32.mrb[0].mxu0
        %v959 = vadd.f32 0.0, %v958
        %v960 = vpop.f32.mrb[0].mxu0
        %v961 = vadd.f32 0.0, %v960
        %962 = vmatprep.mubr.f32.mxu0 0.0
        %963 = vmatmul.mubr.f32.gmra.mrb[0].mxu0 %v638
        %v964 = vpop.f32.mrb[0].mxu0
        %v965 = vadd.f32 0.0, %v964
        %v966 = vpop.f32.mrb[0].mxu0
        %v967 = vadd.f32 0.0, %v966
        %968 = vmatprep.mubr.f32.mxu0 0.0
        %969 = vmatmul.mubr.f32.gmra.mrb[0].mxu0 %v641
        %v970 = vpop.f32.mrb[0].mxu0
        %v971 = vadd.f32 0.0, %v970
        %v972 = vpop.f32.mrb[0].mxu0
        %v973 = vadd.f32 0.0, %v972
        %974 = vmatprep.mubr.f32.mxu0 0.0
        %975 = vmatmul.mubr.f32.gmra.mrb[0].mxu0 %v644
        %v976 = vpop.f32.mrb[0].mxu0
        %v977 = vadd.f32 0.0, %v976
        %v978 = vpop.f32.mrb[0].mxu0
        %v979 = vadd.f32 0.0, %v978
        %980 = vmatprep.mubr.f32.mxu0 0.0
        %981 = vmatmul.mubr.f32.gmra.mrb[0].mxu0 %v647
        %v982 = vpop.f32.mrb[0].mxu0
        %v983 = vadd.f32 0.0, %v982
        %v984 = vpop.f32.mrb[0].mxu0
        %v985 = vadd.f32 0.0, %v984
        %986 = vmatprep.mubr.f32.mxu0 0.0
        %987 = vmatmul.mubr.f32.gmra.mrb[0].mxu0 %v650
        %v988 = vpop.f32.mrb[0].mxu0
        %v989 = vadd.f32 0.0, %v988
        %v990 = vpop.f32.mrb[0].mxu0
        %v991 = vadd.f32 0.0, %v990
        %992 = vmatprep.mubr.f32.mxu0 0.0
        %993 = vmatmul.mubr.f32.gmra.mrb[0].mxu0 %v653
        %v994 = vpop.f32.mrb[0].mxu0
        %v995 = vadd.f32 0.0, %v994
        %v996 = vpop.f32.mrb[0].mxu0
        %v997 = vadd.f32 0.0, %v996
        %998 = vmatprep.mubr.f32.mxu0 0.0
        %999 = vmatmul.mubr.f32.gmra.mrb[0].mxu0 %v656
        %v1000 = vpop.f32.mrb[0].mxu0
        %v1001 = vadd.f32 0.0, %v1000
        %v1002 = vpop.f32.mrb[0].mxu0
        %v1003 = vadd.f32 0.0, %v1002
        %1004 = vmatprep.mubr.f32.mxu0 0.0
        %1005 = vmatmul.mubr.f32.gmra.mrb[0].mxu0 %v659
        %v1006 = vpop.f32.mrb[0].mxu0
        %v1007 = vadd.f32 0.0, %v1006
        %v1008 = vpop.f32.mrb[0].mxu0
        %v1009 = vadd.f32 0.0, %v1008
        %1010 = vmatprep.mubr.f32.mxu0 0.0
        %1011 = vmatmul.mubr.f32.gmra.mrb[0].mxu0 %v662
        %v1012 = vpop.f32.mrb[0].mxu0
        %v1013 = vadd.f32 0.0, %v1012
        %v1014 = vpop.f32.mrb[0].mxu0
        %v1015 = vadd.f32 0.0, %v1014
        %1016 = vdwg.mxu0
        %v1017 = vmax.f32 %v827, %v829
        %1018 = vmax.xlane.f32.xlu0 %v1017
        %v1019 = vpop.xlane.xlu0 %1018
        %v1020 = vmax.f32 %v833, %v835
        %1021 = vmax.xlane.f32.xlu0 %v1020
        %v1022 = vpop.xlane.xlu0 %1021
        %v1023 = vmax.f32 %v839, %v841
        %1024 = vmax.xlane.f32.xlu0 %v1023
        %v1025 = vpop.xlane.xlu0 %1024
        %v1026 = vmax.f32 %v845, %v847
        %1027 = vmax.xlane.f32.xlu0 %v1026
        %v1028 = vpop.xlane.xlu0 %1027
        %v1029 = vmax.f32 %v851, %v853
        %1030 = vmax.xlane.f32.xlu0 %v1029
        %v1031 = vpop.xlane.xlu0 %1030
        %v1032 = vmax.f32 %v857, %v859
        %1033 = vmax.xlane.f32.xlu0 %v1032
        %v1034 = vpop.xlane.xlu0 %1033
        %v1035 = vmax.f32 %v863, %v865
        %1036 = vmax.xlane.f32.xlu0 %v1035
        %v1037 = vpop.xlane.xlu0 %1036
        %v1038 = vmax.f32 %v869, %v871
        %1039 = vmax.xlane.f32.xlu0 %v1038
        %v1040 = vpop.xlane.xlu0 %1039
        %v1041 = vmax.f32 %v875, %v877
        %1042 = vmax.xlane.f32.xlu0 %v1041
        %v1043 = vpop.xlane.xlu0 %1042
        %v1044 = vmax.f32 %v881, %v883
        %1045 = vmax.xlane.f32.xlu0 %v1044
        %v1046 = vpop.xlane.xlu0 %1045
        %v1047 = vmax.f32 %v887, %v889
        %1048 = vmax.xlane.f32.xlu0 %v1047
        %v1049 = vpop.xlane.xlu0 %1048
        %v1050 = vmax.f32 %v893, %v895
        %1051 = vmax.xlane.f32.xlu0 %v1050
        %v1052 = vpop.xlane.xlu0 %1051
        %v1053 = vmax.f32 %v899, %v901
        %1054 = vmax.xlane.f32.xlu0 %v1053
        %v1055 = vpop.xlane.xlu0 %1054
        %v1056 = vmax.f32 %v905, %v907
        %1057 = vmax.xlane.f32.xlu0 %v1056
        %v1058 = vpop.xlane.xlu0 %1057
        %v1059 = vmax.f32 %v911, %v913
        %1060 = vmax.xlane.f32.xlu0 %v1059
        %v1061 = vpop.xlane.xlu0 %1060
        %v1062 = vmax.f32 %v917, %v919
        %1063 = vmax.xlane.f32.xlu0 %v1062
        %v1064 = vpop.xlane.xlu0 %1063
        %v1065 = vmax.f32 %v1019, %v399
        %v1066 = vmax.f32 %v1022, %v402
        %v1067 = vmax.f32 %v1025, %v405
        %v1068 = vmax.f32 %v1028, %v408
        %v1069 = vmax.f32 %v1031, %v411
        %v1070 = vmax.f32 %v1034, %v414
        %v1071 = vmax.f32 %v1037, %v417
        %v1072 = vmax.f32 %v1040, %v420
        %v1073 = vmax.f32 %v1043, %v423
        %v1074 = vmax.f32 %v1046, %v426
        %v1075 = vmax.f32 %v1049, %v429
        %v1076 = vmax.f32 %v1052, %v432
        %v1077 = vmax.f32 %v1055, %v435
        %v1078 = vmax.f32 %v1058, %v438
        %v1079 = vmax.f32 %v1061, %v441
        %v1080 = vmax.f32 %v1064, %v444
        %v1081 = vsub.f32 %v827, %v1065
        %v1082 = vsub.f32 %v829, %v1065
        %v1083 = vsub.f32 %v833, %v1066
        %v1084 = vsub.f32 %v835, %v1066
        %v1085 = vsub.f32 %v839, %v1067
        %v1086 = vsub.f32 %v841, %v1067
        %v1087 = vsub.f32 %v845, %v1068
        %v1088 = vsub.f32 %v847, %v1068
        %v1089 = vsub.f32 %v851, %v1069
        %v1090 = vsub.f32 %v853, %v1069
        %v1091 = vsub.f32 %v857, %v1070
        %v1092 = vsub.f32 %v859, %v1070
        %v1093 = vsub.f32 %v863, %v1071
        %v1094 = vsub.f32 %v865, %v1071
        %v1095 = vsub.f32 %v869, %v1072
        %v1096 = vsub.f32 %v871, %v1072
        %v1097 = vsub.f32 %v875, %v1073
        %v1098 = vsub.f32 %v877, %v1073
        %v1099 = vsub.f32 %v881, %v1074
        %v1100 = vsub.f32 %v883, %v1074
        %v1101 = vsub.f32 %v887, %v1075
        %v1102 = vsub.f32 %v889, %v1075
        %v1103 = vsub.f32 %v893, %v1076
        %v1104 = vsub.f32 %v895, %v1076
        %v1105 = vsub.f32 %v899, %v1077
        %v1106 = vsub.f32 %v901, %v1077
        %v1107 = vsub.f32 %v905, %v1078
        %v1108 = vsub.f32 %v907, %v1078
        %v1109 = vsub.f32 %v911, %v1079
        %v1110 = vsub.f32 %v913, %v1079
        %v1111 = vsub.f32 %v917, %v1080
        %v1112 = vsub.f32 %v919, %v1080
        %v1113 = vmul.f32 %v1081, 1.442695
        %v1114 = vpow.pop %v1113
        %v1115 = vmul.f32 %v1082, 1.442695
        %v1116 = vpow.pop %v1115
        %v1117 = vmul.f32 %v1083, 1.442695
        %v1118 = vpow.pop %v1117
        %v1119 = vmul.f32 %v1084, 1.442695
        %v1120 = vpow.pop %v1119
        %v1121 = vmul.f32 %v1085, 1.442695
        %v1122 = vpow.pop %v1121
        %v1123 = vmul.f32 %v1086, 1.442695
        %v1124 = vpow.pop %v1123
        %v1125 = vmul.f32 %v1087, 1.442695
        %v1126 = vpow.pop %v1125
        %v1127 = vmul.f32 %v1088, 1.442695
        %v1128 = vpow.pop %v1127
        %v1129 = vmul.f32 %v1089, 1.442695
        %v1130 = vpow.pop %v1129
        %v1131 = vmul.f32 %v1090, 1.442695
        %v1132 = vpow.pop %v1131
        %v1133 = vmul.f32 %v1091, 1.442695
        %v1134 = vpow.pop %v1133
        %v1135 = vmul.f32 %v1092, 1.442695
        %v1136 = vpow.pop %v1135
        %v1137 = vmul.f32 %v1093, 1.442695
        %v1138 = vpow.pop %v1137
        %v1139 = vmul.f32 %v1094, 1.442695
        %v1140 = vpow.pop %v1139
        %v1141 = vmul.f32 %v1095, 1.442695
        %v1142 = vpow.pop %v1141
        %v1143 = vmul.f32 %v1096, 1.442695
        %v1144 = vpow.pop %v1143
        %v1145 = vmul.f32 %v1097, 1.442695
        %v1146 = vpow.pop %v1145
        %v1147 = vmul.f32 %v1098, 1.442695
        %v1148 = vpow.pop %v1147
        %v1149 = vmul.f32 %v1099, 1.442695
        %v1150 = vpow.pop %v1149
        %v1151 = vmul.f32 %v1100, 1.442695
        %v1152 = vpow.pop %v1151
        %v1153 = vmul.f32 %v1101, 1.442695
        %v1154 = vpow.pop %v1153
        %v1155 = vmul.f32 %v1102, 1.442695
        %v1156 = vpow.pop %v1155
        %v1157 = vmul.f32 %v1103, 1.442695
        %v1158 = vpow.pop %v1157
        %v1159 = vmul.f32 %v1104, 1.442695
        %v1160 = vpow.pop %v1159
        %v1161 = vmul.f32 %v1105, 1.442695
        %v1162 = vpow.pop %v1161
        %v1163 = vmul.f32 %v1106, 1.442695
        %v1164 = vpow.pop %v1163
        %v1165 = vmul.f32 %v1107, 1.442695
        %v1166 = vpow.pop %v1165
        %v1167 = vmul.f32 %v1108, 1.442695
        %v1168 = vpow.pop %v1167
        %v1169 = vmul.f32 %v1109, 1.442695
        %v1170 = vpow.pop %v1169
        %v1171 = vmul.f32 %v1110, 1.442695
        %v1172 = vpow.pop %v1171
        %v1173 = vmul.f32 %v1111, 1.442695
        %v1174 = vpow.pop %v1173
        %v1175 = vmul.f32 %v1112, 1.442695
        %v1176 = vpow.pop %v1175
        %v1177 = vsub.f32 %v364, %v1065
        %v1178 = vsub.f32 %v365, %v1066
        %v1179 = vsub.f32 %v366, %v1067
        %v1180 = vsub.f32 %v367, %v1068
        %v1181 = vsub.f32 %v368, %v1069
        %v1182 = vsub.f32 %v369, %v1070
        %v1183 = vsub.f32 %v370, %v1071
        %v1184 = vsub.f32 %v371, %v1072
        %v1185 = vsub.f32 %v372, %v1073
        %v1186 = vsub.f32 %v373, %v1074
        %v1187 = vsub.f32 %v374, %v1075
        %v1188 = vsub.f32 %v375, %v1076
        %v1189 = vsub.f32 %v376, %v1077
        %v1190 = vsub.f32 %v377, %v1078
        %v1191 = vsub.f32 %v378, %v1079
        %v1192 = vsub.f32 %v379, %v1080
        %v1193 = vmul.f32 %v1177, 1.442695
        %v1194 = vpow.pop %v1193
        %v1195 = vmul.f32 %v1178, 1.442695
        %v1196 = vpow.pop %v1195
        %v1197 = vmul.f32 %v1179, 1.442695
        %v1198 = vpow.pop %v1197
        %v1199 = vmul.f32 %v1180, 1.442695
        %v1200 = vpow.pop %v1199
        %v1201 = vmul.f32 %v1181, 1.442695
        %v1202 = vpow.pop %v1201
        %v1203 = vmul.f32 %v1182, 1.442695
        %v1204 = vpow.pop %v1203
        %v1205 = vmul.f32 %v1183, 1.442695
        %v1206 = vpow.pop %v1205
        %v1207 = vmul.f32 %v1184, 1.442695
        %v1208 = vpow.pop %v1207
        %v1209 = vmul.f32 %v1185, 1.442695
        %v1210 = vpow.pop %v1209
        %v1211 = vmul.f32 %v1186, 1.442695
        %v1212 = vpow.pop %v1211
        %v1213 = vmul.f32 %v1187, 1.442695
        %v1214 = vpow.pop %v1213
        %v1215 = vmul.f32 %v1188, 1.442695
        %v1216 = vpow.pop %v1215
        %v1217 = vmul.f32 %v1189, 1.442695
        %v1218 = vpow.pop %v1217
        %v1219 = vmul.f32 %v1190, 1.442695
        %v1220 = vpow.pop %v1219
        %v1221 = vmul.f32 %v1191, 1.442695
        %v1222 = vpow.pop %v1221
        %v1223 = vmul.f32 %v1192, 1.442695
        %v1224 = vpow.pop %v1223
        %v1225 = vadd.f32 %v1114, %v1116
        %1226 = vadd.xlane.f32.xlu0 %v1225
        %v1227 = vpop.xlane.xlu0 %1226
        %v1228 = vadd.f32 %v1118, %v1120
        %1229 = vadd.xlane.f32.xlu0 %v1228
        %v1230 = vpop.xlane.xlu0 %1229
        %v1231 = vadd.f32 %v1122, %v1124
        %1232 = vadd.xlane.f32.xlu0 %v1231
        %v1233 = vpop.xlane.xlu0 %1232
        %v1234 = vadd.f32 %v1126, %v1128
        %1235 = vadd.xlane.f32.xlu0 %v1234
        %v1236 = vpop.xlane.xlu0 %1235
        %v1237 = vadd.f32 %v1130, %v1132
        %1238 = vadd.xlane.f32.xlu0 %v1237
        %v1239 = vpop.xlane.xlu0 %1238
        %v1240 = vadd.f32 %v1134, %v1136
        %1241 = vadd.xlane.f32.xlu0 %v1240
        %v1242 = vpop.xlane.xlu0 %1241
        %v1243 = vadd.f32 %v1138, %v1140
        %1244 = vadd.xlane.f32.xlu0 %v1243
        %v1245 = vpop.xlane.xlu0 %1244
        %v1246 = vadd.f32 %v1142, %v1144
        %1247 = vadd.xlane.f32.xlu0 %v1246
        %v1248 = vpop.xlane.xlu0 %1247
        %v1249 = vadd.f32 %v1146, %v1148
        %1250 = vadd.xlane.f32.xlu0 %v1249
        %v1251 = vpop.xlane.xlu0 %1250
        %v1252 = vadd.f32 %v1150, %v1152
        %1253 = vadd.xlane.f32.xlu0 %v1252
        %v1254 = vpop.xlane.xlu0 %1253
        %v1255 = vadd.f32 %v1154, %v1156
        %1256 = vadd.xlane.f32.xlu0 %v1255
        %v1257 = vpop.xlane.xlu0 %1256
        %v1258 = vadd.f32 %v1158, %v1160
        %1259 = vadd.xlane.f32.xlu0 %v1258
        %v1260 = vpop.xlane.xlu0 %1259
        %v1261 = vadd.f32 %v1162, %v1164
        %1262 = vadd.xlane.f32.xlu0 %v1261
        %v1263 = vpop.xlane.xlu0 %1262
        %v1264 = vadd.f32 %v1166, %v1168
        %1265 = vadd.xlane.f32.xlu0 %v1264
        %v1266 = vpop.xlane.xlu0 %1265
        %v1267 = vadd.f32 %v1170, %v1172
        %1268 = vadd.xlane.f32.xlu0 %v1267
        %v1269 = vpop.xlane.xlu0 %1268
        %v1270 = vadd.f32 %v1174, %v1176
        %1271 = vadd.xlane.f32.xlu0 %v1270
        %v1272 = vpop.xlane.xlu0 %1271
        %v1273 = vsel %vm396, %v1194, 0.0
        %1274 = vadd.xlane.f32.xlu0 %v1273
        %v1275 = vpop.xlane.xlu0 %1274
        %v1276 = vsel %vm396, %v1196, 0.0
        %1277 = vadd.xlane.f32.xlu0 %v1276
        %v1278 = vpop.xlane.xlu0 %1277
        %v1279 = vsel %vm396, %v1198, 0.0
        %1280 = vadd.xlane.f32.xlu0 %v1279
        %v1281 = vpop.xlane.xlu0 %1280
        %v1282 = vsel %vm396, %v1200, 0.0
        %1283 = vadd.xlane.f32.xlu0 %v1282
        %v1284 = vpop.xlane.xlu0 %1283
        %v1285 = vsel %vm396, %v1202, 0.0
        %1286 = vadd.xlane.f32.xlu0 %v1285
        %v1287 = vpop.xlane.xlu0 %1286
        %v1288 = vsel %vm396, %v1204, 0.0
        %1289 = vadd.xlane.f32.xlu0 %v1288
        %v1290 = vpop.xlane.xlu0 %1289
        %v1291 = vsel %vm396, %v1206, 0.0
        %1292 = vadd.xlane.f32.xlu0 %v1291
        %v1293 = vpop.xlane.xlu0 %1292
        %v1294 = vsel %vm396, %v1208, 0.0
        %1295 = vadd.xlane.f32.xlu0 %v1294
        %v1296 = vpop.xlane.xlu0 %1295
        %v1297 = vsel %vm396, %v1210, 0.0
        %1298 = vadd.xlane.f32.xlu0 %v1297
        %v1299 = vpop.xlane.xlu0 %1298
        %v1300 = vsel %vm396, %v1212, 0.0
        %1301 = vadd.xlane.f32.xlu0 %v1300
        %v1302 = vpop.xlane.xlu0 %1301
        %v1303 = vsel %vm396, %v1214, 0.0
        %1304 = vadd.xlane.f32.xlu0 %v1303
        %v1305 = vpop.xlane.xlu0 %1304
        %v1306 = vsel %vm396, %v1216, 0.0
        %1307 = vadd.xlane.f32.xlu0 %v1306
        %v1308 = vpop.xlane.xlu0 %1307
        %v1309 = vsel %vm396, %v1218, 0.0
        %1310 = vadd.xlane.f32.xlu0 %v1309
        %v1311 = vpop.xlane.xlu0 %1310
        %v1312 = vsel %vm396, %v1220, 0.0
        %1313 = vadd.xlane.f32.xlu0 %v1312
        %v1314 = vpop.xlane.xlu0 %1313
        %v1315 = vsel %vm396, %v1222, 0.0
        %1316 = vadd.xlane.f32.xlu0 %v1315
        %v1317 = vpop.xlane.xlu0 %1316
        %v1318 = vsel %vm396, %v1224, 0.0
        %1319 = vadd.xlane.f32.xlu0 %v1318
        %v1320 = vpop.xlane.xlu0 %1319
        %v1321 = vadd.f32 %v1227, %v1275
        %v1322 = vadd.f32 %v1230, %v1278
        %v1323 = vadd.f32 %v1233, %v1281
        %v1324 = vadd.f32 %v1236, %v1284
        %v1325 = vadd.f32 %v1239, %v1287
        %v1326 = vadd.f32 %v1242, %v1290
        %v1327 = vadd.f32 %v1245, %v1293
        %v1328 = vadd.f32 %v1248, %v1296
        %v1329 = vadd.f32 %v1251, %v1299
        %v1330 = vadd.f32 %v1254, %v1302
        %v1331 = vadd.f32 %v1257, %v1305
        %v1332 = vadd.f32 %v1260, %v1308
        %v1333 = vadd.f32 %v1263, %v1311
        %v1334 = vadd.f32 %v1266, %v1314
        %v1335 = vadd.f32 %v1269, %v1317
        %v1336 = vadd.f32 %v1272, %v1320
        %v1337 = vrcp.pop %v1321
        %v1338 = vrcp.pop %v1322
        %v1339 = vrcp.pop %v1323
        %v1340 = vrcp.pop %v1324
        %v1341 = vrcp.pop %v1325
        %v1342 = vrcp.pop %v1326
        %v1343 = vrcp.pop %v1327
        %v1344 = vrcp.pop %v1328
        %v1345 = vrcp.pop %v1329
        %v1346 = vrcp.pop %v1330
        %v1347 = vrcp.pop %v1331
        %v1348 = vrcp.pop %v1332
        %v1349 = vrcp.pop %v1333
        %v1350 = vrcp.pop %v1334
        %v1351 = vrcp.pop %v1335
        %v1352 = vrcp.pop %v1336
        %v1353 = vmul.f32 %v1114, %v1337
        %v1354 = vmul.f32 %v1116, %v1337
        %v1355 = vmul.f32 %v1118, %v1338
        %v1356 = vmul.f32 %v1120, %v1338
        %v1357 = vmul.f32 %v1122, %v1339
        %v1358 = vmul.f32 %v1124, %v1339
        %v1359 = vmul.f32 %v1126, %v1340
        %v1360 = vmul.f32 %v1128, %v1340
        %v1361 = vmul.f32 %v1130, %v1341
        %v1362 = vmul.f32 %v1132, %v1341
        %v1363 = vmul.f32 %v1134, %v1342
        %v1364 = vmul.f32 %v1136, %v1342
        %v1365 = vmul.f32 %v1138, %v1343
        %v1366 = vmul.f32 %v1140, %v1343
        %v1367 = vmul.f32 %v1142, %v1344
        %v1368 = vmul.f32 %v1144, %v1344
        %v1369 = vmul.f32 %v1146, %v1345
        %v1370 = vmul.f32 %v1148, %v1345
        %v1371 = vmul.f32 %v1150, %v1346
        %v1372 = vmul.f32 %v1152, %v1346
        %v1373 = vmul.f32 %v1154, %v1347
        %v1374 = vmul.f32 %v1156, %v1347
        %v1375 = vmul.f32 %v1158, %v1348
        %v1376 = vmul.f32 %v1160, %v1348
        %v1377 = vmul.f32 %v1162, %v1349
        %v1378 = vmul.f32 %v1164, %v1349
        %v1379 = vmul.f32 %v1166, %v1350
        %v1380 = vmul.f32 %v1168, %v1350
        %v1381 = vmul.f32 %v1170, %v1351
        %v1382 = vmul.f32 %v1172, %v1351
        %v1383 = vmul.f32 %v1174, %v1352
        %v1384 = vmul.f32 %v1176, %v1352
        %v1385 = vmul.f32 %v1194, %v1337
        %v1386 = vmul.f32 %v1196, %v1338
        %v1387 = vmul.f32 %v1198, %v1339
        %v1388 = vmul.f32 %v1200, %v1340
        %v1389 = vmul.f32 %v1202, %v1341
        %v1390 = vmul.f32 %v1204, %v1342
        %v1391 = vmul.f32 %v1206, %v1343
        %v1392 = vmul.f32 %v1208, %v1344
        %v1393 = vmul.f32 %v1210, %v1345
        %v1394 = vmul.f32 %v1212, %v1346
        %v1395 = vmul.f32 %v1214, %v1347
        %v1396 = vmul.f32 %v1216, %v1348
        %v1397 = vmul.f32 %v1218, %v1349
        %v1398 = vmul.f32 %v1220, %v1350
        %v1399 = vmul.f32 %v1222, %v1351
        %v1400 = vmul.f32 %v1224, %v1352
        %v1401 = vmax.f32 %v731, %v737
        %v1402 = vmax.f32 %v1401, %v743
        %v1403 = vmax.f32 %v1402, %v749
        %v1404 = vrot.slane %v1403, 4
        %v1405 = vmax.f32 %v1403, %v1404
        %v1406 = vrot.slane %v1405, 2
        %v1407 = vmax.f32 %v1405, %v1406
        %v1408 = vrot.slane %v1407, 1
        %v1409 = vmax.f32 %v1407, %v1408
        %v1410 = vmax.f32 %v733, %v739
        %v1411 = vmax.f32 %v1410, %v745
        %v1412 = vmax.f32 %v1411, %v751
        %v1413 = vrot.slane %v1412, 4
        %v1414 = vmax.f32 %v1412, %v1413
        %v1415 = vrot.slane %v1414, 2
        %v1416 = vmax.f32 %v1414, %v1415
        %v1417 = vrot.slane %v1416, 1
        %v1418 = vmax.f32 %v1416, %v1417
        %v1419 = vmax.f32 %v755, %v761
        %v1420 = vmax.f32 %v1419, %v767
        %v1421 = vmax.f32 %v1420, %v773
        %v1422 = vrot.slane %v1421, 4
        %v1423 = vmax.f32 %v1421, %v1422
        %v1424 = vrot.slane %v1423, 2
        %v1425 = vmax.f32 %v1423, %v1424
        %v1426 = vrot.slane %v1425, 1
        %v1427 = vmax.f32 %v1425, %v1426
        %v1428 = vmax.f32 %v757, %v763
        %v1429 = vmax.f32 %v1428, %v769
        %v1430 = vmax.f32 %v1429, %v775
        %v1431 = vrot.slane %v1430, 4
        %v1432 = vmax.f32 %v1430, %v1431
        %v1433 = vrot.slane %v1432, 2
        %v1434 = vmax.f32 %v1432, %v1433
        %v1435 = vrot.slane %v1434, 1
        %v1436 = vmax.f32 %v1434, %v1435
        %v1437 = vmax.f32 %v779, %v785
        %v1438 = vmax.f32 %v1437, %v791
        %v1439 = vmax.f32 %v1438, %v797
        %v1440 = vrot.slane %v1439, 4
        %v1441 = vmax.f32 %v1439, %v1440
        %v1442 = vrot.slane %v1441, 2
        %v1443 = vmax.f32 %v1441, %v1442
        %v1444 = vrot.slane %v1443, 1
        %v1445 = vmax.f32 %v1443, %v1444
        %v1446 = vmax.f32 %v781, %v787
        %v1447 = vmax.f32 %v1446, %v793
        %v1448 = vmax.f32 %v1447, %v799
        %v1449 = vrot.slane %v1448, 4
        %v1450 = vmax.f32 %v1448, %v1449
        %v1451 = vrot.slane %v1450, 2
        %v1452 = vmax.f32 %v1450, %v1451
        %v1453 = vrot.slane %v1452, 1
        %v1454 = vmax.f32 %v1452, %v1453
        %v1455 = vmax.f32 %v803, %v809
        %v1456 = vmax.f32 %v1455, %v815
        %v1457 = vmax.f32 %v1456, %v821
        %v1458 = vrot.slane %v1457, 4
        %v1459 = vmax.f32 %v1457, %v1458
        %v1460 = vrot.slane %v1459, 2
        %v1461 = vmax.f32 %v1459, %v1460
        %v1462 = vrot.slane %v1461, 1
        %v1463 = vmax.f32 %v1461, %v1462
        %v1464 = vmax.f32 %v805, %v811
        %v1465 = vmax.f32 %v1464, %v817
        %v1466 = vmax.f32 %v1465, %v823
        %v1467 = vrot.slane %v1466, 4
        %v1468 = vmax.f32 %v1466, %v1467
        %v1469 = vrot.slane %v1468, 2
        %v1470 = vmax.f32 %v1468, %v1469
        %v1471 = vrot.slane %v1470, 1
        %v1472 = vmax.f32 %v1470, %v1471
        %v1473 = vsub.f32 %v731, %v1409
        %v1474 = vsub.f32 %v733, %v1418
        %v1475 = vsub.f32 %v737, %v1409
        %v1476 = vsub.f32 %v739, %v1418
        %v1477 = vsub.f32 %v743, %v1409
        %v1478 = vsub.f32 %v745, %v1418
        %v1479 = vsub.f32 %v749, %v1409
        %v1480 = vsub.f32 %v751, %v1418
        %v1481 = vsub.f32 %v755, %v1427
        %v1482 = vsub.f32 %v757, %v1436
        %v1483 = vsub.f32 %v761, %v1427
        %v1484 = vsub.f32 %v763, %v1436
        %v1485 = vsub.f32 %v767, %v1427
        %v1486 = vsub.f32 %v769, %v1436
        %v1487 = vsub.f32 %v773, %v1427
        %v1488 = vsub.f32 %v775, %v1436
        %v1489 = vsub.f32 %v779, %v1445
        %v1490 = vsub.f32 %v781, %v1454
        %v1491 = vsub.f32 %v785, %v1445
        %v1492 = vsub.f32 %v787, %v1454
        %v1493 = vsub.f32 %v791, %v1445
        %v1494 = vsub.f32 %v793, %v1454
        %v1495 = vsub.f32 %v797, %v1445
        %v1496 = vsub.f32 %v799, %v1454
        %v1497 = vsub.f32 %v803, %v1463
        %v1498 = vsub.f32 %v805, %v1472
        %v1499 = vsub.f32 %v809, %v1463
        %v1500 = vsub.f32 %v811, %v1472
        %v1501 = vsub.f32 %v815, %v1463
        %v1502 = vsub.f32 %v817, %v1472
        %v1503 = vsub.f32 %v821, %v1463
        %v1504 = vsub.f32 %v823, %v1472
        %v1505 = vmul.f32 %v1473, 1.442695
        %v1506 = vpow.pop %v1505
        %v1507 = vmul.f32 %v1474, 1.442695
        %v1508 = vpow.pop %v1507
        %v1509 = vmul.f32 %v1475, 1.442695
        %v1510 = vpow.pop %v1509
        %v1511 = vmul.f32 %v1476, 1.442695
        %v1512 = vpow.pop %v1511
        %v1513 = vmul.f32 %v1477, 1.442695
        %v1514 = vpow.pop %v1513
        %v1515 = vmul.f32 %v1478, 1.442695
        %v1516 = vpow.pop %v1515
        %v1517 = vmul.f32 %v1479, 1.442695
        %v1518 = vpow.pop %v1517
        %v1519 = vmul.f32 %v1480, 1.442695
        %v1520 = vpow.pop %v1519
        %v1521 = vmul.f32 %v1481, 1.442695
        %v1522 = vpow.pop %v1521
        %v1523 = vmul.f32 %v1482, 1.442695
        %v1524 = vpow.pop %v1523
        %v1525 = vmul.f32 %v1483, 1.442695
        %v1526 = vpow.pop %v1525
        %v1527 = vmul.f32 %v1484, 1.442695
        %v1528 = vpow.pop %v1527
        %v1529 = vmul.f32 %v1485, 1.442695
        %v1530 = vpow.pop %v1529
        %v1531 = vmul.f32 %v1486, 1.442695
        %v1532 = vpow.pop %v1531
        %v1533 = vmul.f32 %v1487, 1.442695
        %v1534 = vpow.pop %v1533
        %v1535 = vmul.f32 %v1488, 1.442695
        %v1536 = vpow.pop %v1535
        %v1537 = vmul.f32 %v1489, 1.442695
        %v1538 = vpow.pop %v1537
        %v1539 = vmul.f32 %v1490, 1.442695
        %v1540 = vpow.pop %v1539
        %v1541 = vmul.f32 %v1491, 1.442695
        %v1542 = vpow.pop %v1541
        %v1543 = vmul.f32 %v1492, 1.442695
        %v1544 = vpow.pop %v1543
        %v1545 = vmul.f32 %v1493, 1.442695
        %v1546 = vpow.pop %v1545
        %v1547 = vmul.f32 %v1494, 1.442695
        %v1548 = vpow.pop %v1547
        %v1549 = vmul.f32 %v1495, 1.442695
        %v1550 = vpow.pop %v1549
        %v1551 = vmul.f32 %v1496, 1.442695
        %v1552 = vpow.pop %v1551
        %v1553 = vmul.f32 %v1497, 1.442695
        %v1554 = vpow.pop %v1553
        %v1555 = vmul.f32 %v1498, 1.442695
        %v1556 = vpow.pop %v1555
        %v1557 = vmul.f32 %v1499, 1.442695
        %v1558 = vpow.pop %v1557
        %v1559 = vmul.f32 %v1500, 1.442695
        %v1560 = vpow.pop %v1559
        %v1561 = vmul.f32 %v1501, 1.442695
        %v1562 = vpow.pop %v1561
        %v1563 = vmul.f32 %v1502, 1.442695
        %v1564 = vpow.pop %v1563
        %v1565 = vmul.f32 %v1503, 1.442695
        %v1566 = vpow.pop %v1565
        %v1567 = vmul.f32 %v1504, 1.442695
        %v1568 = vpow.pop %v1567
        %v1569 = vadd.f32 %v1506, %v1510
        %v1570 = vadd.f32 %v1569, %v1514
        %v1571 = vadd.f32 %v1570, %v1518
        %v1572 = vrot.slane %v1571, 4
        %v1573 = vadd.f32 %v1571, %v1572
        %v1574 = vrot.slane %v1573, 2
        %v1575 = vadd.f32 %v1573, %v1574
        %v1576 = vrot.slane %v1575, 1
        %v1577 = vadd.f32 %v1575, %v1576
        %v1578 = vadd.f32 %v1508, %v1512
        %v1579 = vadd.f32 %v1578, %v1516
        %v1580 = vadd.f32 %v1579, %v1520
        %v1581 = vrot.slane %v1580, 4
        %v1582 = vadd.f32 %v1580, %v1581
        %v1583 = vrot.slane %v1582, 2
        %v1584 = vadd.f32 %v1582, %v1583
        %v1585 = vrot.slane %v1584, 1
        %v1586 = vadd.f32 %v1584, %v1585
        %v1587 = vadd.f32 %v1522, %v1526
        %v1588 = vadd.f32 %v1587, %v1530
        %v1589 = vadd.f32 %v1588, %v1534
        %v1590 = vrot.slane %v1589, 4
        %v1591 = vadd.f32 %v1589, %v1590
        %v1592 = vrot.slane %v1591, 2
        %v1593 = vadd.f32 %v1591, %v1592
        %v1594 = vrot.slane %v1593, 1
        %v1595 = vadd.f32 %v1593, %v1594
        %v1596 = vadd.f32 %v1524, %v1528
        %v1597 = vadd.f32 %v1596, %v1532
        %v1598 = vadd.f32 %v1597, %v1536
        %v1599 = vrot.slane %v1598, 4
        %v1600 = vadd.f32 %v1598, %v1599
        %v1601 = vrot.slane %v1600, 2
        %v1602 = vadd.f32 %v1600, %v1601
        %v1603 = vrot.slane %v1602, 1
        %v1604 = vadd.f32 %v1602, %v1603
        %v1605 = vadd.f32 %v1538, %v1542
        %v1606 = vadd.f32 %v1605, %v1546
        %v1607 = vadd.f32 %v1606, %v1550
        %v1608 = vrot.slane %v1607, 4
        %v1609 = vadd.f32 %v1607, %v1608
        %v1610 = vrot.slane %v1609, 2
        %v1611 = vadd.f32 %v1609, %v1610
        %v1612 = vrot.slane %v1611, 1
        %v1613 = vadd.f32 %v1611, %v1612
        %v1614 = vadd.f32 %v1540, %v1544
        %v1615 = vadd.f32 %v1614, %v1548
        %v1616 = vadd.f32 %v1615, %v1552
        %v1617 = vrot.slane %v1616, 4
        %v1618 = vadd.f32 %v1616, %v1617
        %v1619 = vrot.slane %v1618, 2
        %v1620 = vadd.f32 %v1618, %v1619
        %v1621 = vrot.slane %v1620, 1
        %v1622 = vadd.f32 %v1620, %v1621
        %v1623 = vadd.f32 %v1554, %v1558
        %v1624 = vadd.f32 %v1623, %v1562
        %v1625 = vadd.f32 %v1624, %v1566
        %v1626 = vrot.slane %v1625, 4
        %v1627 = vadd.f32 %v1625, %v1626
        %v1628 = vrot.slane %v1627, 2
        %v1629 = vadd.f32 %v1627, %v1628
        %v1630 = vrot.slane %v1629, 1
        %v1631 = vadd.f32 %v1629, %v1630
        %v1632 = vadd.f32 %v1556, %v1560
        %v1633 = vadd.f32 %v1632, %v1564
        %v1634 = vadd.f32 %v1633, %v1568
        %v1635 = vrot.slane %v1634, 4
        %v1636 = vadd.f32 %v1634, %v1635
        %v1637 = vrot.slane %v1636, 2
        %v1638 = vadd.f32 %v1636, %v1637
        %v1639 = vrot.slane %v1638, 1
        %v1640 = vadd.f32 %v1638, %v1639
        %v1641 = vrcp.pop %v1577
        %v1642 = vrcp.pop %v1586
        %v1643 = vrcp.pop %v1595
        %v1644 = vrcp.pop %v1604
        %v1645 = vrcp.pop %v1613
        %v1646 = vrcp.pop %v1622
        %v1647 = vrcp.pop %v1631
        %v1648 = vrcp.pop %v1640
        %v1649 = vmul.f32 %v1506, %v1641
        %v1650 = vmul.f32 %v1508, %v1642
        %v1651 = vmul.f32 %v1510, %v1641
        %v1652 = vmul.f32 %v1512, %v1642
        %v1653 = vmul.f32 %v1514, %v1641
        %v1654 = vmul.f32 %v1516, %v1642
        %v1655 = vmul.f32 %v1518, %v1641
        %v1656 = vmul.f32 %v1520, %v1642
        %v1657 = vmul.f32 %v1522, %v1643
        %v1658 = vmul.f32 %v1524, %v1644
        %v1659 = vmul.f32 %v1526, %v1643
        %v1660 = vmul.f32 %v1528, %v1644
        %v1661 = vmul.f32 %v1530, %v1643
        %v1662 = vmul.f32 %v1532, %v1644
        %v1663 = vmul.f32 %v1534, %v1643
        %v1664 = vmul.f32 %v1536, %v1644
        %v1665 = vmul.f32 %v1538, %v1645
        %v1666 = vmul.f32 %v1540, %v1646
        %v1667 = vmul.f32 %v1542, %v1645
        %v1668 = vmul.f32 %v1544, %v1646
        %v1669 = vmul.f32 %v1546, %v1645
        %v1670 = vmul.f32 %v1548, %v1646
        %v1671 = vmul.f32 %v1550, %v1645
        %v1672 = vmul.f32 %v1552, %v1646
        %v1673 = vmul.f32 %v1554, %v1647
        %v1674 = vmul.f32 %v1556, %v1648
        %v1675 = vmul.f32 %v1558, %v1647
        %v1676 = vmul.f32 %v1560, %v1648
        %v1677 = vmul.f32 %v1562, %v1647
        %v1678 = vmul.f32 %v1564, %v1648
        %v1679 = vmul.f32 %v1566, %v1647
        %v1680 = vmul.f32 %v1568, %v1648
        %v1682 = vsel %vm396, %v1385, 0
        %v1685 = vsel %vm396, %v1386, 0
        %v1688 = vsel %vm396, %v1387, 0
        %v1691 = vsel %vm396, %v1388, 0
        %v1694 = vsel %vm396, %v380, 0
        %v1697 = vsel %vm396, %v381, 0
        %v1700 = vsel %vm396, %v382, 0
        %v1703 = vsel %vm396, %v383, 0
        %1705 = vmatprep.subr.mxu0 0.0
        %1706 = vmatpush1.xpose.msra.mxu0 %v1694
        %1707 = vmatprep.subr.mxu0 0.0
        %1708 = vmatpush1.xpose.msra.mxu0 %v1697
        %1709 = vmatprep.subr.mxu0 0.0
        %1710 = vmatpush1.xpose.msra.mxu0 %v1700
        %1711 = vmatprep.subr.mxu0 0.0
        %1712 = vmatpush1.xpose.msra.mxu0 %v1703
        %1713 = vmatprep.subr.mxu0 0.0
        %1714 = vmatpush1.xpose.msra.mxu0 0.0
        %1715 = vmatprep.subr.mxu0 0.0
        %1716 = vmatpush1.xpose.msra.mxu0 0.0
        %1717 = vmatprep.subr.mxu0 0.0
        %1718 = vmatpush1.xpose.msra.mxu0 0.0
        %1719 = vmatprep.subr.mxu0 0.0
        %1720 = vmatpush1.xpose.msra.mxu0 0.0
        %1721 = vmatprep.subr.mxu0 0.0
        %1722 = vmatpush1.xpose.msra.mxu0 0.0
        %1723 = vmatprep.subr.mxu0 0.0
        %1724 = vmatpush1.xpose.msra.mxu0 0.0
        %1725 = vmatprep.subr.mxu0 0.0
        %1726 = vmatpush1.xpose.msra.mxu0 0.0
        %1727 = vmatprep.subr.mxu0 0.0
        %1728 = vmatpush1.xpose.msra.mxu0 0.0
        %1729 = vmatprep.subr.mxu0 0.0
        %1730 = vmatpush1.xpose.msra.mxu0 0.0
        %1731 = vmatprep.subr.mxu0 0.0
        %1732 = vmatpush1.xpose.msra.mxu0 0.0
        %1733 = vmatprep.subr.mxu0 0.0
        %1734 = vmatpush1.xpose.msra.mxu0 0.0
        %1735 = vmatprep.subr.mxu0 0.0
        %1736 = vmatpush1.xpose.msra.mxu0 0.0
        %1737 = vmatprep.subr.mxu0 0.0
        %1738 = vmatpush1.xpose.msra.mxu0 0.0
        %1739 = vmatprep.subr.mxu0 0.0
        %1740 = vmatpush1.xpose.msra.mxu0 0.0
        %1741 = vmatprep.subr.mxu0 0.0
        %1742 = vmatpush1.xpose.msra.mxu0 0.0
        %1743 = vmatprep.subr.mxu0 0.0
        %1744 = vmatpush1.xpose.msra.mxu0 0.0
        %1745 = vmatprep.subr.mxu0 0.0
        %1746 = vmatpush1.xpose.msra.mxu0 0.0
        %1747 = vmatprep.subr.mxu0 0.0
        %1748 = vmatpush1.xpose.msra.mxu0 0.0
        %1749 = vmatprep.subr.mxu0 0.0
        %1750 = vmatpush1.xpose.msra.mxu0 0.0
        %1751 = vmatprep.subr.mxu0 0.0
        %1752 = vmatpush1.xpose.msra.mxu0 0.0
        %1753 = vmatprep.subr.mxu0 0.0
        %1754 = vmatpush1.xpose.msra.mxu0 0.0
        %1755 = vmatprep.subr.mxu0 0.0
        %1756 = vmatpush1.xpose.msra.mxu0 0.0
        %1757 = vmatprep.subr.mxu0 0.0
        %1758 = vmatpush1.xpose.msra.mxu0 0.0
        %1759 = vmatprep.subr.mxu0 0.0
        %1760 = vmatpush1.xpose.msra.mxu0 0.0
        %1761 = vmatprep.subr.mxu0 0.0
        %1762 = vmatpush1.xpose.msra.mxu0 0.0
        %1763 = vmatprep.subr.mxu0 0.0
        %1764 = vmatpush1.xpose.msra.mxu0 0.0
        %1765 = vmatprep.subr.mxu0 0.0
        %1766 = vmatpush1.xpose.msra.mxu0 0.0
        %1767 = vmatprep.subr.mxu0 0.0
        %1768 = vmatpush1.xpose.msra.mxu0 0.0
        %1769 = vmatprep.mubr.f32.mxu0 0.0
        %1770 = vmatmul.mubr.f32.gmra.mrb[0].mxu0 %v1682
        %v1771 = vpop.f32.mrb[0].mxu0
        %v1772 = vadd.f32 0.0, %v1771
        %v1773 = vpop.f32.mrb[0].mxu0
        %1774 = vmatprep.mubr.f32.mxu0 0.0
        %1775 = vmatmul.mubr.f32.gmra.mrb[0].mxu0 %v1685
        %v1776 = vpop.f32.mrb[0].mxu0
        %v1777 = vadd.f32 0.0, %v1776
        %v1778 = vpop.f32.mrb[0].mxu0
        %1779 = vmatprep.mubr.f32.mxu0 0.0
        %1780 = vmatmul.mubr.f32.gmra.mrb[0].mxu0 %v1688
        %v1781 = vpop.f32.mrb[0].mxu0
        %v1782 = vadd.f32 0.0, %v1781
        %v1783 = vpop.f32.mrb[0].mxu0
        %1784 = vmatprep.mubr.f32.mxu0 0.0
        %1785 = vmatmul.mubr.f32.gmra.mrb[0].mxu0 %v1691
        %v1786 = vpop.f32.mrb[0].mxu0
        %v1787 = vadd.f32 0.0, %v1786
        %v1788 = vpop.f32.mrb[0].mxu0
        %1789 = vdwg.mxu0
        %1790 = vmatprep.subr.mxu0 %v925
        %1791 = vmatpush1.xpose.msra.mxu0 %v923
        %1792 = vmatprep.subr.mxu0 %v931
        %1793 = vmatpush1.xpose.msra.mxu0 %v929
        %1794 = vmatprep.subr.mxu0 %v937
        %1795 = vmatpush1.xpose.msra.mxu0 %v935
        %1796 = vmatprep.subr.mxu0 %v943
        %1797 = vmatpush1.xpose.msra.mxu0 %v941
        %1798 = vmatprep.subr.mxu0 0.0
        %1799 = vmatpush1.xpose.msra.mxu0 0.0
        %1800 = vmatprep.subr.mxu0 0.0
        %1801 = vmatpush1.xpose.msra.mxu0 0.0
        %1802 = vmatprep.subr.mxu0 0.0
        %1803 = vmatpush1.xpose.msra.mxu0 0.0
        %1804 = vmatprep.subr.mxu0 0.0
        %1805 = vmatpush1.xpose.msra.mxu0 0.0
        %1806 = vmatprep.subr.mxu0 0.0
        %1807 = vmatpush1.xpose.msra.mxu0 0.0
        %1808 = vmatprep.subr.mxu0 0.0
        %1809 = vmatpush1.xpose.msra.mxu0 0.0
        %1810 = vmatprep.subr.mxu0 0.0
        %1811 = vmatpush1.xpose.msra.mxu0 0.0
        %1812 = vmatprep.subr.mxu0 0.0
        %1813 = vmatpush1.xpose.msra.mxu0 0.0
        %1814 = vmatprep.subr.mxu0 0.0
        %1815 = vmatpush1.xpose.msra.mxu0 0.0
        %1816 = vmatprep.subr.mxu0 0.0
        %1817 = vmatpush1.xpose.msra.mxu0 0.0
        %1818 = vmatprep.subr.mxu0 0.0
        %1819 = vmatpush1.xpose.msra.mxu0 0.0
        %1820 = vmatprep.subr.mxu0 0.0
        %1821 = vmatpush1.xpose.msra.mxu0 0.0
        %1822 = vmatprep.subr.mxu0 0.0
        %1823 = vmatpush1.xpose.msra.mxu0 0.0
        %1824 = vmatprep.subr.mxu0 0.0
        %1825 = vmatpush1.xpose.msra.mxu0 0.0
        %1826 = vmatprep.subr.mxu0 0.0
        %1827 = vmatpush1.xpose.msra.mxu0 0.0
        %1828 = vmatprep.subr.mxu0 0.0
        %1829 = vmatpush1.xpose.msra.mxu0 0.0
        %1830 = vmatprep.subr.mxu0 0.0
        %1831 = vmatpush1.xpose.msra.mxu0 0.0
        %1832 = vmatprep.subr.mxu0 0.0
        %1833 = vmatpush1.xpose.msra.mxu0 0.0
        %1834 = vmatprep.subr.mxu0 0.0
        %1835 = vmatpush1.xpose.msra.mxu0 0.0
        %1836 = vmatprep.subr.mxu0 0.0
        %1837 = vmatpush1.xpose.msra.mxu0 0.0
        %1838 = vmatprep.subr.mxu0 0.0
        %1839 = vmatpush1.xpose.msra.mxu0 0.0
        %1840 = vmatprep.subr.mxu0 0.0
        %1841 = vmatpush1.xpose.msra.mxu0 0.0
        %1842 = vmatprep.subr.mxu0 0.0
        %1843 = vmatpush1.xpose.msra.mxu0 0.0
        %1844 = vmatprep.subr.mxu0 0.0
        %1845 = vmatpush1.xpose.msra.mxu0 0.0
        %1846 = vmatprep.subr.mxu0 0.0
        %1847 = vmatpush1.xpose.msra.mxu0 0.0
        %1848 = vmatprep.subr.mxu0 0.0
        %1849 = vmatpush1.xpose.msra.mxu0 0.0
        %1850 = vmatprep.subr.mxu0 0.0
        %1851 = vmatpush1.xpose.msra.mxu0 0.0
        %1852 = vmatprep.subr.mxu0 0.0
        %1853 = vmatpush1.xpose.msra.mxu0 0.0
        %1854 = vmatprep.mubr.f32.mxu0 %v1354
        %1855 = vmatmul.mubr.f32.gmra.mrb[0].mxu0 %v1353
        %v1856 = vpop.f32.mrb[0].mxu0
        %v1857 = vadd.f32 %v1772, %v1856
        %v1858 = vpop.f32.mrb[0].mxu0
        %1859 = vmatprep.mubr.f32.mxu0 %v1356
        %1860 = vmatmul.mubr.f32.gmra.mrb[0].mxu0 %v1355
        %v1861 = vpop.f32.mrb[0].mxu0
        %v1862 = vadd.f32 %v1777, %v1861
        %v1863 = vpop.f32.mrb[0].mxu0
        %1864 = vmatprep.mubr.f32.mxu0 %v1358
        %1865 = vmatmul.mubr.f32.gmra.mrb[0].mxu0 %v1357
        %v1866 = vpop.f32.mrb[0].mxu0
        %v1867 = vadd.f32 %v1782, %v1866
        %v1868 = vpop.f32.mrb[0].mxu0
        %1869 = vmatprep.mubr.f32.mxu0 %v1360
        %1870 = vmatmul.mubr.f32.gmra.mrb[0].mxu0 %v1359
        %v1871 = vpop.f32.mrb[0].mxu0
        %v1872 = vadd.f32 %v1787, %v1871
        %v1873 = vpop.f32.mrb[0].mxu0
        %1874 = vdwg.mxu0
        %v1875 = vld [vmem:[%s5] sm:$0xff]
        %v1876 = vld [vmem:[%s5 + $0x8] sm:$0xff]
        %v1877 = vld [vmem:[%s5 + $0x10] sm:$0xff]
        %v1878 = vld [vmem:[%s5 + $0x18] sm:$0xff]
        %v1880 = vsel %vm519, %v1875, 0
        %v1883 = vsel %vm519, %v1876, 0
        %v1886 = vsel %vm519, %v1877, 0
        %v1889 = vsel %vm519, %v1878, 0
        %v1892 = vsel %vm519, %v1857, 0
        %v1895 = vsel %vm519, %v1862, 0
        %v1898 = vsel %vm519, %v1867, 0
        %v1901 = vsel %vm519, %v1872, 0
        %1903 = vmatprep.subr.mxu0 0.0
        %1904 = vmatpush1.xpose.msra.mxu0 %v1892
        %1905 = vmatprep.subr.mxu0 0.0
        %1906 = vmatpush1.xpose.msra.mxu0 %v1895
        %1907 = vmatprep.subr.mxu0 0.0
        %1908 = vmatpush1.xpose.msra.mxu0 %v1898
        %1909 = vmatprep.subr.mxu0 0.0
        %1910 = vmatpush1.xpose.msra.mxu0 %v1901
        %1911 = vmatprep.subr.mxu0 0.0
        %1912 = vmatpush1.xpose.msra.mxu0 0.0
        %1913 = vmatprep.subr.mxu0 0.0
        %1914 = vmatpush1.xpose.msra.mxu0 0.0
        %1915 = vmatprep.subr.mxu0 0.0
        %1916 = vmatpush1.xpose.msra.mxu0 0.0
        %1917 = vmatprep.subr.mxu0 0.0
        %1918 = vmatpush1.xpose.msra.mxu0 0.0
        %1919 = vmatprep.subr.mxu0 0.0
        %1920 = vmatpush1.xpose.msra.mxu0 0.0
        %1921 = vmatprep.subr.mxu0 0.0
        %1922 = vmatpush1.xpose.msra.mxu0 0.0
        %1923 = vmatprep.subr.mxu0 0.0
        %1924 = vmatpush1.xpose.msra.mxu0 0.0
        %1925 = vmatprep.subr.mxu0 0.0
        %1926 = vmatpush1.xpose.msra.mxu0 0.0
        %1927 = vmatprep.subr.mxu0 0.0
        %1928 = vmatpush1.xpose.msra.mxu0 0.0
        %1929 = vmatprep.subr.mxu0 0.0
        %1930 = vmatpush1.xpose.msra.mxu0 0.0
        %1931 = vmatprep.subr.mxu0 0.0
        %1932 = vmatpush1.xpose.msra.mxu0 0.0
        %1933 = vmatprep.subr.mxu0 0.0
        %1934 = vmatpush1.xpose.msra.mxu0 0.0
        %1935 = vmatprep.subr.mxu0 0.0
        %1936 = vmatpush1.xpose.msra.mxu0 0.0
        %1937 = vmatprep.subr.mxu0 0.0
        %1938 = vmatpush1.xpose.msra.mxu0 0.0
        %1939 = vmatprep.subr.mxu0 0.0
        %1940 = vmatpush1.xpose.msra.mxu0 0.0
        %1941 = vmatprep.subr.mxu0 0.0
        %1942 = vmatpush1.xpose.msra.mxu0 0.0
        %1943 = vmatprep.subr.mxu0 0.0
        %1944 = vmatpush1.xpose.msra.mxu0 0.0
        %1945 = vmatprep.subr.mxu0 0.0
        %1946 = vmatpush1.xpose.msra.mxu0 0.0
        %1947 = vmatprep.subr.mxu0 0.0
        %1948 = vmatpush1.xpose.msra.mxu0 0.0
        %1949 = vmatprep.subr.mxu0 0.0
        %1950 = vmatpush1.xpose.msra.mxu0 0.0
        %1951 = vmatprep.subr.mxu0 0.0
        %1952 = vmatpush1.xpose.msra.mxu0 0.0
        %1953 = vmatprep.subr.mxu0 0.0
        %1954 = vmatpush1.xpose.msra.mxu0 0.0
        %1955 = vmatprep.subr.mxu0 0.0
        %1956 = vmatpush1.xpose.msra.mxu0 0.0
        %1957 = vmatprep.subr.mxu0 0.0
        %1958 = vmatpush1.xpose.msra.mxu0 0.0
        %1959 = vmatprep.subr.mxu0 0.0
        %1960 = vmatpush1.xpose.msra.mxu0 0.0
        %1961 = vmatprep.subr.mxu0 0.0
        %1962 = vmatpush1.xpose.msra.mxu0 0.0
        %1963 = vmatprep.subr.mxu0 0.0
        %1964 = vmatpush1.xpose.msra.mxu0 0.0
        %1965 = vmatprep.subr.mxu0 0.0
        %1966 = vmatpush1.xpose.msra.mxu0 0.0
        %1967 = vmatprep.mubr.f32.mxu0 0.0
        %1968 = vmatmul.mubr.f32.gmra.mrb[0].mxu0 %v1880
        %v1969 = vpop.f32.mrb[0].mxu0
        %v1970 = vadd.f32 0.0, %v1969
        %v1971 = vpop.f32.mrb[0].mxu0
        %1972 = vmatprep.mubr.f32.mxu0 0.0
        %1973 = vmatmul.mubr.f32.gmra.mrb[0].mxu0 %v1883
        %v1974 = vpop.f32.mrb[0].mxu0
        %v1975 = vadd.f32 0.0, %v1974
        %v1976 = vpop.f32.mrb[0].mxu0
        %1977 = vmatprep.mubr.f32.mxu0 0.0
        %1978 = vmatmul.mubr.f32.gmra.mrb[0].mxu0 %v1886
        %v1979 = vpop.f32.mrb[0].mxu0
        %v1980 = vadd.f32 0.0, %v1979
        %v1981 = vpop.f32.mrb[0].mxu0
        %1982 = vmatprep.mubr.f32.mxu0 0.0
        %1983 = vmatmul.mubr.f32.gmra.mrb[0].mxu0 %v1889
        %v1984 = vpop.f32.mrb[0].mxu0
        %v1985 = vadd.f32 0.0, %v1984
        %v1986 = vpop.f32.mrb[0].mxu0
        %1987 = vdwg.mxu0
        %v1989 = vsel %vm396, %v1389, 0
        %v1992 = vsel %vm396, %v1390, 0
        %v1995 = vsel %vm396, %v1391, 0
        %v1998 = vsel %vm396, %v1392, 0
        %v2001 = vsel %vm396, %v384, 0
        %v2004 = vsel %vm396, %v385, 0
        %v2007 = vsel %vm396, %v386, 0
        %v2010 = vsel %vm396, %v387, 0
        %2012 = vmatprep.subr.mxu0 0.0
        %2013 = vmatpush1.xpose.msra.mxu0 %v2001
        %2014 = vmatprep.subr.mxu0 0.0
        %2015 = vmatpush1.xpose.msra.mxu0 %v2004
        %2016 = vmatprep.subr.mxu0 0.0
        %2017 = vmatpush1.xpose.msra.mxu0 %v2007
        %2018 = vmatprep.subr.mxu0 0.0
        %2019 = vmatpush1.xpose.msra.mxu0 %v2010
        %2020 = vmatprep.subr.mxu0 0.0
        %2021 = vmatpush1.xpose.msra.mxu0 0.0
        %2022 = vmatprep.subr.mxu0 0.0
        %2023 = vmatpush1.xpose.msra.mxu0 0.0
        %2024 = vmatprep.subr.mxu0 0.0
        %2025 = vmatpush1.xpose.msra.mxu0 0.0
        %2026 = vmatprep.subr.mxu0 0.0
        %2027 = vmatpush1.xpose.msra.mxu0 0.0
        %2028 = vmatprep.subr.mxu0 0.0
        %2029 = vmatpush1.xpose.msra.mxu0 0.0
        %2030 = vmatprep.subr.mxu0 0.0
        %2031 = vmatpush1.xpose.msra.mxu0 0.0
        %2032 = vmatprep.subr.mxu0 0.0
        %2033 = vmatpush1.xpose.msra.mxu0 0.0
        %2034 = vmatprep.subr.mxu0 0.0
        %2035 = vmatpush1.xpose.msra.mxu0 0.0
        %2036 = vmatprep.subr.mxu0 0.0
        %2037 = vmatpush1.xpose.msra.mxu0 0.0
        %2038 = vmatprep.subr.mxu0 0.0
        %2039 = vmatpush1.xpose.msra.mxu0 0.0
        %2040 = vmatprep.subr.mxu0 0.0
        %2041 = vmatpush1.xpose.msra.mxu0 0.0
        %2042 = vmatprep.subr.mxu0 0.0
        %2043 = vmatpush1.xpose.msra.mxu0 0.0
        %2044 = vmatprep.subr.mxu0 0.0
        %2045 = vmatpush1.xpose.msra.mxu0 0.0
        %2046 = vmatprep.subr.mxu0 0.0
        %2047 = vmatpush1.xpose.msra.mxu0 0.0
        %2048 = vmatprep.subr.mxu0 0.0
        %2049 = vmatpush1.xpose.msra.mxu0 0.0
        %2050 = vmatprep.subr.mxu0 0.0
        %2051 = vmatpush1.xpose.msra.mxu0 0.0
        %2052 = vmatprep.subr.mxu0 0.0
        %2053 = vmatpush1.xpose.msra.mxu0 0.0
        %2054 = vmatprep.subr.mxu0 0.0
        %2055 = vmatpush1.xpose.msra.mxu0 0.0
        %2056 = vmatprep.subr.mxu0 0.0
        %2057 = vmatpush1.xpose.msra.mxu0 0.0
        %2058 = vmatprep.subr.mxu0 0.0
        %2059 = vmatpush1.xpose.msra.mxu0 0.0
        %2060 = vmatprep.subr.mxu0 0.0
        %2061 = vmatpush1.xpose.msra.mxu0 0.0
        %2062 = vmatprep.subr.mxu0 0.0
        %2063 = vmatpush1.xpose.msra.mxu0 0.0
        %2064 = vmatprep.subr.mxu0 0.0
        %2065 = vmatpush1.xpose.msra.mxu0 0.0
        %2066 = vmatprep.subr.mxu0 0.0
        %2067 = vmatpush1.xpose.msra.mxu0 0.0
        %2068 = vmatprep.subr.mxu0 0.0
        %2069 = vmatpush1.xpose.msra.mxu0 0.0
        %2070 = vmatprep.subr.mxu0 0.0
        %2071 = vmatpush1.xpose.msra.mxu0 0.0
        %2072 = vmatprep.subr.mxu0 0.0
        %2073 = vmatpush1.xpose.msra.mxu0 0.0
        %2074 = vmatprep.subr.mxu0 0.0
        %2075 = vmatpush1.xpose.msra.mxu0 0.0
        %2076 = vmatprep.mubr.f32.mxu0 0.0
        %2077 = vmatmul.mubr.f32.gmra.mrb[0].mxu0 %v1989
        %v2078 = vpop.f32.mrb[0].mxu0
        %v2079 = vadd.f32 0.0, %v2078
        %v2080 = vpop.f32.mrb[0].mxu0
        %2081 = vmatprep.mubr.f32.mxu0 0.0
        %2082 = vmatmul.mubr.f32.gmra.mrb[0].mxu0 %v1992
        %v2083 = vpop.f32.mrb[0].mxu0
        %v2084 = vadd.f32 0.0, %v2083
        %v2085 = vpop.f32.mrb[0].mxu0
        %2086 = vmatprep.mubr.f32.mxu0 0.0
        %2087 = vmatmul.mubr.f32.gmra.mrb[0].mxu0 %v1995
        %v2088 = vpop.f32.mrb[0].mxu0
        %v2089 = vadd.f32 0.0, %v2088
        %v2090 = vpop.f32.mrb[0].mxu0
        %2091 = vmatprep.mubr.f32.mxu0 0.0
        %2092 = vmatmul.mubr.f32.gmra.mrb[0].mxu0 %v1998
        %v2093 = vpop.f32.mrb[0].mxu0
        %v2094 = vadd.f32 0.0, %v2093
        %v2095 = vpop.f32.mrb[0].mxu0
        %2096 = vdwg.mxu0
        %2097 = vmatprep.subr.mxu0 %v949
        %2098 = vmatpush1.xpose.msra.mxu0 %v947
        %2099 = vmatprep.subr.mxu0 %v955
        %2100 = vmatpush1.xpose.msra.mxu0 %v953
        %2101 = vmatprep.subr.mxu0 %v961
        %2102 = vmatpush1.xpose.msra.mxu0 %v959
        %2103 = vmatprep.subr.mxu0 %v967
        %2104 = vmatpush1.xpose.msra.mxu0 %v965
        %2105 = vmatprep.subr.mxu0 0.0
        %2106 = vmatpush1.xpose.msra.mxu0 0.0
        %2107 = vmatprep.subr.mxu0 0.0
        %2108 = vmatpush1.xpose.msra.mxu0 0.0
        %2109 = vmatprep.subr.mxu0 0.0
        %2110 = vmatpush1.xpose.msra.mxu0 0.0
        %2111 = vmatprep.subr.mxu0 0.0
        %2112 = vmatpush1.xpose.msra.mxu0 0.0
        %2113 = vmatprep.subr.mxu0 0.0
        %2114 = vmatpush1.xpose.msra.mxu0 0.0
        %2115 = vmatprep.subr.mxu0 0.0
        %2116 = vmatpush1.xpose.msra.mxu0 0.0
        %2117 = vmatprep.subr.mxu0 0.0
        %2118 = vmatpush1.xpose.msra.mxu0 0.0
        %2119 = vmatprep.subr.mxu0 0.0
        %2120 = vmatpush1.xpose.msra.mxu0 0.0
        %2121 = vmatprep.subr.mxu0 0.0
        %2122 = vmatpush1.xpose.msra.mxu0 0.0
        %2123 = vmatprep.subr.mxu0 0.0
        %2124 = vmatpush1.xpose.msra.mxu0 0.0
        %2125 = vmatprep.subr.mxu0 0.0
        %2126 = vmatpush1.xpose.msra.mxu0 0.0
        %2127 = vmatprep.subr.mxu0 0.0
        %2128 = vmatpush1.xpose.msra.mxu0 0.0
        %2129 = vmatprep.subr.mxu0 0.0
        %2130 = vmatpush1.xpose.msra.mxu0 0.0
        %2131 = vmatprep.subr.mxu0 0.0
        %2132 = vmatpush1.xpose.msra.mxu0 0.0
        %2133 = vmatprep.subr.mxu0 0.0
        %2134 = vmatpush1.xpose.msra.mxu0 0.0
        %2135 = vmatprep.subr.mxu0 0.0
        %2136 = vmatpush1.xpose.msra.mxu0 0.0
        %2137 = vmatprep.subr.mxu0 0.0
        %2138 = vmatpush1.xpose.msra.mxu0 0.0
        %2139 = vmatprep.subr.mxu0 0.0
        %2140 = vmatpush1.xpose.msra.mxu0 0.0
        %2141 = vmatprep.subr.mxu0 0.0
        %2142 = vmatpush1.xpose.msra.mxu0 0.0
        %2143 = vmatprep.subr.mxu0 0.0
        %2144 = vmatpush1.xpose.msra.mxu0 0.0
        %2145 = vmatprep.subr.mxu0 0.0
        %2146 = vmatpush1.xpose.msra.mxu0 0.0
        %2147 = vmatprep.subr.mxu0 0.0
        %2148 = vmatpush1.xpose.msra.mxu0 0.0
        %2149 = vmatprep.subr.mxu0 0.0
        %2150 = vmatpush1.xpose.msra.mxu0 0.0
        %2151 = vmatprep.subr.mxu0 0.0
        %2152 = vmatpush1.xpose.msra.mxu0 0.0
        %2153 = vmatprep.subr.mxu0 0.0
        %2154 = vmatpush1.xpose.msra.mxu0 0.0
        %2155 = vmatprep.subr.mxu0 0.0
        %2156 = vmatpush1.xpose.msra.mxu0 0.0
        %2157 = vmatprep.subr.mxu0 0.0
        %2158 = vmatpush1.xpose.msra.mxu0 0.0
        %2159 = vmatprep.subr.mxu0 0.0
        %2160 = vmatpush1.xpose.msra.mxu0 0.0
        %2161 = vmatprep.mubr.f32.mxu0 %v1362
        %2162 = vmatmul.mubr.f32.gmra.mrb[0].mxu0 %v1361
        %v2163 = vpop.f32.mrb[0].mxu0
        %v2164 = vadd.f32 %v2079, %v2163
        %v2165 = vpop.f32.mrb[0].mxu0
        %2166 = vmatprep.mubr.f32.mxu0 %v1364
        %2167 = vmatmul.mubr.f32.gmra.mrb[0].mxu0 %v1363
        %v2168 = vpop.f32.mrb[0].mxu0
        %v2169 = vadd.f32 %v2084, %v2168
        %v2170 = vpop.f32.mrb[0].mxu0
        %2171 = vmatprep.mubr.f32.mxu0 %v1366
        %2172 = vmatmul.mubr.f32.gmra.mrb[0].mxu0 %v1365
        %v2173 = vpop.f32.mrb[0].mxu0
        %v2174 = vadd.f32 %v2089, %v2173
        %v2175 = vpop.f32.mrb[0].mxu0
        %2176 = vmatprep.mubr.f32.mxu0 %v1368
        %2177 = vmatmul.mubr.f32.gmra.mrb[0].mxu0 %v1367
        %v2178 = vpop.f32.mrb[0].mxu0
        %v2179 = vadd.f32 %v2094, %v2178
        %v2180 = vpop.f32.mrb[0].mxu0
        %2181 = vdwg.mxu0
        %s2182 = scalar_lea.vmem %s5, 32
        %v2183 = vld [vmem:[%s2182] sm:$0xff]
        %v2184 = vld [vmem:[%s2182 + $0x8] sm:$0xff]
        %v2185 = vld [vmem:[%s2182 + $0x10] sm:$0xff]
        %v2186 = vld [vmem:[%s2182 + $0x18] sm:$0xff]
        %v2188 = vsel %vm519, %v2183, 0
        %v2191 = vsel %vm519, %v2184, 0
        %v2194 = vsel %vm519, %v2185, 0
        %v2197 = vsel %vm519, %v2186, 0
        %v2200 = vsel %vm519, %v2164, 0
        %v2203 = vsel %vm519, %v2169, 0
        %v2206 = vsel %vm519, %v2174, 0
        %v2209 = vsel %vm519, %v2179, 0
        %2211 = vmatprep.subr.mxu0 0.0
        %2212 = vmatpush1.xpose.msra.mxu0 %v2200
        %2213 = vmatprep.subr.mxu0 0.0
        %2214 = vmatpush1.xpose.msra.mxu0 %v2203
        %2215 = vmatprep.subr.mxu0 0.0
        %2216 = vmatpush1.xpose.msra.mxu0 %v2206
        %2217 = vmatprep.subr.mxu0 0.0
        %2218 = vmatpush1.xpose.msra.mxu0 %v2209
        %2219 = vmatprep.subr.mxu0 0.0
        %2220 = vmatpush1.xpose.msra.mxu0 0.0
        %2221 = vmatprep.subr.mxu0 0.0
        %2222 = vmatpush1.xpose.msra.mxu0 0.0
        %2223 = vmatprep.subr.mxu0 0.0
        %2224 = vmatpush1.xpose.msra.mxu0 0.0
        %2225 = vmatprep.subr.mxu0 0.0
        %2226 = vmatpush1.xpose.msra.mxu0 0.0
        %2227 = vmatprep.subr.mxu0 0.0
        %2228 = vmatpush1.xpose.msra.mxu0 0.0
        %2229 = vmatprep.subr.mxu0 0.0
        %2230 = vmatpush1.xpose.msra.mxu0 0.0
        %2231 = vmatprep.subr.mxu0 0.0
        %2232 = vmatpush1.xpose.msra.mxu0 0.0
        %2233 = vmatprep.subr.mxu0 0.0
        %2234 = vmatpush1.xpose.msra.mxu0 0.0
        %2235 = vmatprep.subr.mxu0 0.0
        %2236 = vmatpush1.xpose.msra.mxu0 0.0
        %2237 = vmatprep.subr.mxu0 0.0
        %2238 = vmatpush1.xpose.msra.mxu0 0.0
        %2239 = vmatprep.subr.mxu0 0.0
        %2240 = vmatpush1.xpose.msra.mxu0 0.0
        %2241 = vmatprep.subr.mxu0 0.0
        %2242 = vmatpush1.xpose.msra.mxu0 0.0
        %2243 = vmatprep.subr.mxu0 0.0
        %2244 = vmatpush1.xpose.msra.mxu0 0.0
        %2245 = vmatprep.subr.mxu0 0.0
        %2246 = vmatpush1.xpose.msra.mxu0 0.0
        %2247 = vmatprep.subr.mxu0 0.0
        %2248 = vmatpush1.xpose.msra.mxu0 0.0
        %2249 = vmatprep.subr.mxu0 0.0
        %2250 = vmatpush1.xpose.msra.mxu0 0.0
        %2251 = vmatprep.subr.mxu0 0.0
        %2252 = vmatpush1.xpose.msra.mxu0 0.0
        %2253 = vmatprep.subr.mxu0 0.0
        %2254 = vmatpush1.xpose.msra.mxu0 0.0
        %2255 = vmatprep.subr.mxu0 0.0
        %2256 = vmatpush1.xpose.msra.mxu0 0.0
        %2257 = vmatprep.subr.mxu0 0.0
        %2258 = vmatpush1.xpose.msra.mxu0 0.0
        %2259 = vmatprep.subr.mxu0 0.0
        %2260 = vmatpush1.xpose.msra.mxu0 0.0
        %2261 = vmatprep.subr.mxu0 0.0
        %2262 = vmatpush1.xpose.msra.mxu0 0.0
        %2263 = vmatprep.subr.mxu0 0.0
        %2264 = vmatpush1.xpose.msra.mxu0 0.0
        %2265 = vmatprep.subr.mxu0 0.0
        %2266 = vmatpush1.xpose.msra.mxu0 0.0
        %2267 = vmatprep.subr.mxu0 0.0
        %2268 = vmatpush1.xpose.msra.mxu0 0.0
        %2269 = vmatprep.subr.mxu0 0.0
        %2270 = vmatpush1.xpose.msra.mxu0 0.0
        %2271 = vmatprep.subr.mxu0 0.0
        %2272 = vmatpush1.xpose.msra.mxu0 0.0
        %2273 = vmatprep.subr.mxu0 0.0
        %2274 = vmatpush1.xpose.msra.mxu0 0.0
        %2275 = vmatprep.mubr.f32.mxu0 0.0
        %2276 = vmatmul.mubr.f32.gmra.mrb[0].mxu0 %v2188
        %v2277 = vpop.f32.mrb[0].mxu0
        %v2278 = vadd.f32 0.0, %v2277
        %v2279 = vpop.f32.mrb[0].mxu0
        %2280 = vmatprep.mubr.f32.mxu0 0.0
        %2281 = vmatmul.mubr.f32.gmra.mrb[0].mxu0 %v2191
        %v2282 = vpop.f32.mrb[0].mxu0
        %v2283 = vadd.f32 0.0, %v2282
        %v2284 = vpop.f32.mrb[0].mxu0
        %2285 = vmatprep.mubr.f32.mxu0 0.0
        %2286 = vmatmul.mubr.f32.gmra.mrb[0].mxu0 %v2194
        %v2287 = vpop.f32.mrb[0].mxu0
        %v2288 = vadd.f32 0.0, %v2287
        %v2289 = vpop.f32.mrb[0].mxu0
        %2290 = vmatprep.mubr.f32.mxu0 0.0
        %2291 = vmatmul.mubr.f32.gmra.mrb[0].mxu0 %v2197
        %v2292 = vpop.f32.mrb[0].mxu0
        %v2293 = vadd.f32 0.0, %v2292
        %v2294 = vpop.f32.mrb[0].mxu0
        %2295 = vdwg.mxu0
        %v2297 = vsel %vm396, %v1393, 0
        %v2300 = vsel %vm396, %v1394, 0
        %v2303 = vsel %vm396, %v1395, 0
        %v2306 = vsel %vm396, %v1396, 0
        %v2309 = vsel %vm396, %v388, 0
        %v2312 = vsel %vm396, %v389, 0
        %v2315 = vsel %vm396, %v390, 0
        %v2318 = vsel %vm396, %v391, 0
        %2320 = vmatprep.subr.mxu0 0.0
        %2321 = vmatpush1.xpose.msra.mxu0 %v2309
        %2322 = vmatprep.subr.mxu0 0.0
        %2323 = vmatpush1.xpose.msra.mxu0 %v2312
        %2324 = vmatprep.subr.mxu0 0.0
        %2325 = vmatpush1.xpose.msra.mxu0 %v2315
        %2326 = vmatprep.subr.mxu0 0.0
        %2327 = vmatpush1.xpose.msra.mxu0 %v2318
        %2328 = vmatprep.subr.mxu0 0.0
        %2329 = vmatpush1.xpose.msra.mxu0 0.0
        %2330 = vmatprep.subr.mxu0 0.0
        %2331 = vmatpush1.xpose.msra.mxu0 0.0
        %2332 = vmatprep.subr.mxu0 0.0
        %2333 = vmatpush1.xpose.msra.mxu0 0.0
        %2334 = vmatprep.subr.mxu0 0.0
        %2335 = vmatpush1.xpose.msra.mxu0 0.0
        %2336 = vmatprep.subr.mxu0 0.0
        %2337 = vmatpush1.xpose.msra.mxu0 0.0
        %2338 = vmatprep.subr.mxu0 0.0
        %2339 = vmatpush1.xpose.msra.mxu0 0.0
        %2340 = vmatprep.subr.mxu0 0.0
        %2341 = vmatpush1.xpose.msra.mxu0 0.0
        %2342 = vmatprep.subr.mxu0 0.0
        %2343 = vmatpush1.xpose.msra.mxu0 0.0
        %2344 = vmatprep.subr.mxu0 0.0
        %2345 = vmatpush1.xpose.msra.mxu0 0.0
        %2346 = vmatprep.subr.mxu0 0.0
        %2347 = vmatpush1.xpose.msra.mxu0 0.0
        %2348 = vmatprep.subr.mxu0 0.0
        %2349 = vmatpush1.xpose.msra.mxu0 0.0
        %2350 = vmatprep.subr.mxu0 0.0
        %2351 = vmatpush1.xpose.msra.mxu0 0.0
        %2352 = vmatprep.subr.mxu0 0.0
        %2353 = vmatpush1.xpose.msra.mxu0 0.0
        %2354 = vmatprep.subr.mxu0 0.0
        %2355 = vmatpush1.xpose.msra.mxu0 0.0
        %2356 = vmatprep.subr.mxu0 0.0
        %2357 = vmatpush1.xpose.msra.mxu0 0.0
        %2358 = vmatprep.subr.mxu0 0.0
        %2359 = vmatpush1.xpose.msra.mxu0 0.0
        %2360 = vmatprep.subr.mxu0 0.0
        %2361 = vmatpush1.xpose.msra.mxu0 0.0
        %2362 = vmatprep.subr.mxu0 0.0
        %2363 = vmatpush1.xpose.msra.mxu0 0.0
        %2364 = vmatprep.subr.mxu0 0.0
        %2365 = vmatpush1.xpose.msra.mxu0 0.0
        %2366 = vmatprep.subr.mxu0 0.0
        %2367 = vmatpush1.xpose.msra.mxu0 0.0
        %2368 = vmatprep.subr.mxu0 0.0
        %2369 = vmatpush1.xpose.msra.mxu0 0.0
        %2370 = vmatprep.subr.mxu0 0.0
        %2371 = vmatpush1.xpose.msra.mxu0 0.0
        %2372 = vmatprep.subr.mxu0 0.0
        %2373 = vmatpush1.xpose.msra.mxu0 0.0
        %2374 = vmatprep.subr.mxu0 0.0
        %2375 = vmatpush1.xpose.msra.mxu0 0.0
        %2376 = vmatprep.subr.mxu0 0.0
        %2377 = vmatpush1.xpose.msra.mxu0 0.0
        %2378 = vmatprep.subr.mxu0 0.0
        %2379 = vmatpush1.xpose.msra.mxu0 0.0
        %2380 = vmatprep.subr.mxu0 0.0
        %2381 = vmatpush1.xpose.msra.mxu0 0.0
        %2382 = vmatprep.subr.mxu0 0.0
        %2383 = vmatpush1.xpose.msra.mxu0 0.0
        %2384 = vmatprep.mubr.f32.mxu0 0.0
        %2385 = vmatmul.mubr.f32.gmra.mrb[0].mxu0 %v2297
        %v2386 = vpop.f32.mrb[0].mxu0
        %v2387 = vadd.f32 0.0, %v2386
        %v2388 = vpop.f32.mrb[0].mxu0
        %2389 = vmatprep.mubr.f32.mxu0 0.0
        %2390 = vmatmul.mubr.f32.gmra.mrb[0].mxu0 %v2300
        %v2391 = vpop.f32.mrb[0].mxu0
        %v2392 = vadd.f32 0.0, %v2391
        %v2393 = vpop.f32.mrb[0].mxu0
        %2394 = vmatprep.mubr.f32.mxu0 0.0
        %2395 = vmatmul.mubr.f32.gmra.mrb[0].mxu0 %v2303
        %v2396 = vpop.f32.mrb[0].mxu0
        %v2397 = vadd.f32 0.0, %v2396
        %v2398 = vpop.f32.mrb[0].mxu0
        %2399 = vmatprep.mubr.f32.mxu0 0.0
        %2400 = vmatmul.mubr.f32.gmra.mrb[0].mxu0 %v2306
        %v2401 = vpop.f32.mrb[0].mxu0
        %v2402 = vadd.f32 0.0, %v2401
        %v2403 = vpop.f32.mrb[0].mxu0
        %2404 = vdwg.mxu0
        %2405 = vmatprep.subr.mxu0 %v973
        %2406 = vmatpush1.xpose.msra.mxu0 %v971
        %2407 = vmatprep.subr.mxu0 %v979
        %2408 = vmatpush1.xpose.msra.mxu0 %v977
        %2409 = vmatprep.subr.mxu0 %v985
        %2410 = vmatpush1.xpose.msra.mxu0 %v983
        %2411 = vmatprep.subr.mxu0 %v991
        %2412 = vmatpush1.xpose.msra.mxu0 %v989
        %2413 = vmatprep.subr.mxu0 0.0
        %2414 = vmatpush1.xpose.msra.mxu0 0.0
        %2415 = vmatprep.subr.mxu0 0.0
        %2416 = vmatpush1.xpose.msra.mxu0 0.0
        %2417 = vmatprep.subr.mxu0 0.0
        %2418 = vmatpush1.xpose.msra.mxu0 0.0
        %2419 = vmatprep.subr.mxu0 0.0
        %2420 = vmatpush1.xpose.msra.mxu0 0.0
        %2421 = vmatprep.subr.mxu0 0.0
        %2422 = vmatpush1.xpose.msra.mxu0 0.0
        %2423 = vmatprep.subr.mxu0 0.0
        %2424 = vmatpush1.xpose.msra.mxu0 0.0
        %2425 = vmatprep.subr.mxu0 0.0
        %2426 = vmatpush1.xpose.msra.mxu0 0.0
        %2427 = vmatprep.subr.mxu0 0.0
        %2428 = vmatpush1.xpose.msra.mxu0 0.0
        %2429 = vmatprep.subr.mxu0 0.0
        %2430 = vmatpush1.xpose.msra.mxu0 0.0
        %2431 = vmatprep.subr.mxu0 0.0
        %2432 = vmatpush1.xpose.msra.mxu0 0.0
        %2433 = vmatprep.subr.mxu0 0.0
        %2434 = vmatpush1.xpose.msra.mxu0 0.0
        %2435 = vmatprep.subr.mxu0 0.0
        %2436 = vmatpush1.xpose.msra.mxu0 0.0
        %2437 = vmatprep.subr.mxu0 0.0
        %2438 = vmatpush1.xpose.msra.mxu0 0.0
        %2439 = vmatprep.subr.mxu0 0.0
        %2440 = vmatpush1.xpose.msra.mxu0 0.0
        %2441 = vmatprep.subr.mxu0 0.0
        %2442 = vmatpush1.xpose.msra.mxu0 0.0
        %2443 = vmatprep.subr.mxu0 0.0
        %2444 = vmatpush1.xpose.msra.mxu0 0.0
        %2445 = vmatprep.subr.mxu0 0.0
        %2446 = vmatpush1.xpose.msra.mxu0 0.0
        %2447 = vmatprep.subr.mxu0 0.0
        %2448 = vmatpush1.xpose.msra.mxu0 0.0
        %2449 = vmatprep.subr.mxu0 0.0
        %2450 = vmatpush1.xpose.msra.mxu0 0.0
        %2451 = vmatprep.subr.mxu0 0.0
        %2452 = vmatpush1.xpose.msra.mxu0 0.0
        %2453 = vmatprep.subr.mxu0 0.0
        %2454 = vmatpush1.xpose.msra.mxu0 0.0
        %2455 = vmatprep.subr.mxu0 0.0
        %2456 = vmatpush1.xpose.msra.mxu0 0.0
        %2457 = vmatprep.subr.mxu0 0.0
        %2458 = vmatpush1.xpose.msra.mxu0 0.0
        %2459 = vmatprep.subr.mxu0 0.0
        %2460 = vmatpush1.xpose.msra.mxu0 0.0
        %2461 = vmatprep.subr.mxu0 0.0
        %2462 = vmatpush1.xpose.msra.mxu0 0.0
        %2463 = vmatprep.subr.mxu0 0.0
        %2464 = vmatpush1.xpose.msra.mxu0 0.0
        %2465 = vmatprep.subr.mxu0 0.0
        %2466 = vmatpush1.xpose.msra.mxu0 0.0
        %2467 = vmatprep.subr.mxu0 0.0
        %2468 = vmatpush1.xpose.msra.mxu0 0.0
        %2469 = vmatprep.mubr.f32.mxu0 %v1370
        %2470 = vmatmul.mubr.f32.gmra.mrb[0].mxu0 %v1369
        %v2471 = vpop.f32.mrb[0].mxu0
        %v2472 = vadd.f32 %v2387, %v2471
        %v2473 = vpop.f32.mrb[0].mxu0
        %2474 = vmatprep.mubr.f32.mxu0 %v1372
        %2475 = vmatmul.mubr.f32.gmra.mrb[0].mxu0 %v1371
        %v2476 = vpop.f32.mrb[0].mxu0
        %v2477 = vadd.f32 %v2392, %v2476
        %v2478 = vpop.f32.mrb[0].mxu0
        %2479 = vmatprep.mubr.f32.mxu0 %v1374
        %2480 = vmatmul.mubr.f32.gmra.mrb[0].mxu0 %v1373
        %v2481 = vpop.f32.mrb[0].mxu0
        %v2482 = vadd.f32 %v2397, %v2481
        %v2483 = vpop.f32.mrb[0].mxu0
        %2484 = vmatprep.mubr.f32.mxu0 %v1376
        %2485 = vmatmul.mubr.f32.gmra.mrb[0].mxu0 %v1375
        %v2486 = vpop.f32.mrb[0].mxu0
        %v2487 = vadd.f32 %v2402, %v2486
        %v2488 = vpop.f32.mrb[0].mxu0
        %2489 = vdwg.mxu0
        %s2490 = scalar_lea.vmem %s5, 64
        %v2491 = vld [vmem:[%s2490] sm:$0xff]
        %v2492 = vld [vmem:[%s2490 + $0x8] sm:$0xff]
        %v2493 = vld [vmem:[%s2490 + $0x10] sm:$0xff]
        %v2494 = vld [vmem:[%s2490 + $0x18] sm:$0xff]
        %v2496 = vsel %vm519, %v2491, 0
        %v2499 = vsel %vm519, %v2492, 0
        %v2502 = vsel %vm519, %v2493, 0
        %v2505 = vsel %vm519, %v2494, 0
        %v2508 = vsel %vm519, %v2472, 0
        %v2511 = vsel %vm519, %v2477, 0
        %v2514 = vsel %vm519, %v2482, 0
        %v2517 = vsel %vm519, %v2487, 0
        %2519 = vmatprep.subr.mxu0 0.0
        %2520 = vmatpush1.xpose.msra.mxu0 %v2508
        %2521 = vmatprep.subr.mxu0 0.0
        %2522 = vmatpush1.xpose.msra.mxu0 %v2511
        %2523 = vmatprep.subr.mxu0 0.0
        %2524 = vmatpush1.xpose.msra.mxu0 %v2514
        %2525 = vmatprep.subr.mxu0 0.0
        %2526 = vmatpush1.xpose.msra.mxu0 %v2517
        %2527 = vmatprep.subr.mxu0 0.0
        %2528 = vmatpush1.xpose.msra.mxu0 0.0
        %2529 = vmatprep.subr.mxu0 0.0
        %2530 = vmatpush1.xpose.msra.mxu0 0.0
        %2531 = vmatprep.subr.mxu0 0.0
        %2532 = vmatpush1.xpose.msra.mxu0 0.0
        %2533 = vmatprep.subr.mxu0 0.0
        %2534 = vmatpush1.xpose.msra.mxu0 0.0
        %2535 = vmatprep.subr.mxu0 0.0
        %2536 = vmatpush1.xpose.msra.mxu0 0.0
        %2537 = vmatprep.subr.mxu0 0.0
        %2538 = vmatpush1.xpose.msra.mxu0 0.0
        %2539 = vmatprep.subr.mxu0 0.0
        %2540 = vmatpush1.xpose.msra.mxu0 0.0
        %2541 = vmatprep.subr.mxu0 0.0
        %2542 = vmatpush1.xpose.msra.mxu0 0.0
        %2543 = vmatprep.subr.mxu0 0.0
        %2544 = vmatpush1.xpose.msra.mxu0 0.0
        %2545 = vmatprep.subr.mxu0 0.0
        %2546 = vmatpush1.xpose.msra.mxu0 0.0
        %2547 = vmatprep.subr.mxu0 0.0
        %2548 = vmatpush1.xpose.msra.mxu0 0.0
        %2549 = vmatprep.subr.mxu0 0.0
        %2550 = vmatpush1.xpose.msra.mxu0 0.0
        %2551 = vmatprep.subr.mxu0 0.0
        %2552 = vmatpush1.xpose.msra.mxu0 0.0
        %2553 = vmatprep.subr.mxu0 0.0
        %2554 = vmatpush1.xpose.msra.mxu0 0.0
        %2555 = vmatprep.subr.mxu0 0.0
        %2556 = vmatpush1.xpose.msra.mxu0 0.0
        %2557 = vmatprep.subr.mxu0 0.0
        %2558 = vmatpush1.xpose.msra.mxu0 0.0
        %2559 = vmatprep.subr.mxu0 0.0
        %2560 = vmatpush1.xpose.msra.mxu0 0.0
        %2561 = vmatprep.subr.mxu0 0.0
        %2562 = vmatpush1.xpose.msra.mxu0 0.0
        %2563 = vmatprep.subr.mxu0 0.0
        %2564 = vmatpush1.xpose.msra.mxu0 0.0
        %2565 = vmatprep.subr.mxu0 0.0
        %2566 = vmatpush1.xpose.msra.mxu0 0.0
        %2567 = vmatprep.subr.mxu0 0.0
        %2568 = vmatpush1.xpose.msra.mxu0 0.0
        %2569 = vmatprep.subr.mxu0 0.0
        %2570 = vmatpush1.xpose.msra.mxu0 0.0
        %2571 = vmatprep.subr.mxu0 0.0
        %2572 = vmatpush1.xpose.msra.mxu0 0.0
        %2573 = vmatprep.subr.mxu0 0.0
        %2574 = vmatpush1.xpose.msra.mxu0 0.0
        %2575 = vmatprep.subr.mxu0 0.0
        %2576 = vmatpush1.xpose.msra.mxu0 0.0
        %2577 = vmatprep.subr.mxu0 0.0
        %2578 = vmatpush1.xpose.msra.mxu0 0.0
        %2579 = vmatprep.subr.mxu0 0.0
        %2580 = vmatpush1.xpose.msra.mxu0 0.0
        %2581 = vmatprep.subr.mxu0 0.0
        %2582 = vmatpush1.xpose.msra.mxu0 0.0
        %2583 = vmatprep.mubr.f32.mxu0 0.0
        %2584 = vmatmul.mubr.f32.gmra.mrb[0].mxu0 %v2496
        %v2585 = vpop.f32.mrb[0].mxu0
        %v2586 = vadd.f32 0.0, %v2585
        %v2587 = vpop.f32.mrb[0].mxu0
        %2588 = vmatprep.mubr.f32.mxu0 0.0
        %2589 = vmatmul.mubr.f32.gmra.mrb[0].mxu0 %v2499
        %v2590 = vpop.f32.mrb[0].mxu0
        %v2591 = vadd.f32 0.0, %v2590
        %v2592 = vpop.f32.mrb[0].mxu0
        %2593 = vmatprep.mubr.f32.mxu0 0.0
        %2594 = vmatmul.mubr.f32.gmra.mrb[0].mxu0 %v2502
        %v2595 = vpop.f32.mrb[0].mxu0
        %v2596 = vadd.f32 0.0, %v2595
        %v2597 = vpop.f32.mrb[0].mxu0
        %2598 = vmatprep.mubr.f32.mxu0 0.0
        %2599 = vmatmul.mubr.f32.gmra.mrb[0].mxu0 %v2505
        %v2600 = vpop.f32.mrb[0].mxu0
        %v2601 = vadd.f32 0.0, %v2600
        %v2602 = vpop.f32.mrb[0].mxu0
        %2603 = vdwg.mxu0
        %v2605 = vsel %vm396, %v1397, 0
        %v2608 = vsel %vm396, %v1398, 0
        %v2611 = vsel %vm396, %v1399, 0
        %v2614 = vsel %vm396, %v1400, 0
        %v2617 = vsel %vm396, %v392, 0
        %v2620 = vsel %vm396, %v393, 0
        %v2623 = vsel %vm396, %v394, 0
        %v2626 = vsel %vm396, %v395, 0
        %2628 = vmatprep.subr.mxu0 0.0
        %2629 = vmatpush1.xpose.msra.mxu0 %v2617
        %2630 = vmatprep.subr.mxu0 0.0
        %2631 = vmatpush1.xpose.msra.mxu0 %v2620
        %2632 = vmatprep.subr.mxu0 0.0
        %2633 = vmatpush1.xpose.msra.mxu0 %v2623
        %2634 = vmatprep.subr.mxu0 0.0
        %2635 = vmatpush1.xpose.msra.mxu0 %v2626
        %2636 = vmatprep.subr.mxu0 0.0
        %2637 = vmatpush1.xpose.msra.mxu0 0.0
        %2638 = vmatprep.subr.mxu0 0.0
        %2639 = vmatpush1.xpose.msra.mxu0 0.0
        %2640 = vmatprep.subr.mxu0 0.0
        %2641 = vmatpush1.xpose.msra.mxu0 0.0
        %2642 = vmatprep.subr.mxu0 0.0
        %2643 = vmatpush1.xpose.msra.mxu0 0.0
        %2644 = vmatprep.subr.mxu0 0.0
        %2645 = vmatpush1.xpose.msra.mxu0 0.0
        %2646 = vmatprep.subr.mxu0 0.0
        %2647 = vmatpush1.xpose.msra.mxu0 0.0
        %2648 = vmatprep.subr.mxu0 0.0
        %2649 = vmatpush1.xpose.msra.mxu0 0.0
        %2650 = vmatprep.subr.mxu0 0.0
        %2651 = vmatpush1.xpose.msra.mxu0 0.0
        %2652 = vmatprep.subr.mxu0 0.0
        %2653 = vmatpush1.xpose.msra.mxu0 0.0
        %2654 = vmatprep.subr.mxu0 0.0
        %2655 = vmatpush1.xpose.msra.mxu0 0.0
        %2656 = vmatprep.subr.mxu0 0.0
        %2657 = vmatpush1.xpose.msra.mxu0 0.0
        %2658 = vmatprep.subr.mxu0 0.0
        %2659 = vmatpush1.xpose.msra.mxu0 0.0
        %2660 = vmatprep.subr.mxu0 0.0
        %2661 = vmatpush1.xpose.msra.mxu0 0.0
        %2662 = vmatprep.subr.mxu0 0.0
        %2663 = vmatpush1.xpose.msra.mxu0 0.0
        %2664 = vmatprep.subr.mxu0 0.0
        %2665 = vmatpush1.xpose.msra.mxu0 0.0
        %2666 = vmatprep.subr.mxu0 0.0
        %2667 = vmatpush1.xpose.msra.mxu0 0.0
        %2668 = vmatprep.subr.mxu0 0.0
        %2669 = vmatpush1.xpose.msra.mxu0 0.0
        %2670 = vmatprep.subr.mxu0 0.0
        %2671 = vmatpush1.xpose.msra.mxu0 0.0
        %2672 = vmatprep.subr.mxu0 0.0
        %2673 = vmatpush1.xpose.msra.mxu0 0.0
        %2674 = vmatprep.subr.mxu0 0.0
        %2675 = vmatpush1.xpose.msra.mxu0 0.0
        %2676 = vmatprep.subr.mxu0 0.0
        %2677 = vmatpush1.xpose.msra.mxu0 0.0
        %2678 = vmatprep.subr.mxu0 0.0
        %2679 = vmatpush1.xpose.msra.mxu0 0.0
        %2680 = vmatprep.subr.mxu0 0.0
        %2681 = vmatpush1.xpose.msra.mxu0 0.0
        %2682 = vmatprep.subr.mxu0 0.0
        %2683 = vmatpush1.xpose.msra.mxu0 0.0
        %2684 = vmatprep.subr.mxu0 0.0
        %2685 = vmatpush1.xpose.msra.mxu0 0.0
        %2686 = vmatprep.subr.mxu0 0.0
        %2687 = vmatpush1.xpose.msra.mxu0 0.0
        %2688 = vmatprep.subr.mxu0 0.0
        %2689 = vmatpush1.xpose.msra.mxu0 0.0
        %2690 = vmatprep.subr.mxu0 0.0
        %2691 = vmatpush1.xpose.msra.mxu0 0.0
        %2692 = vmatprep.mubr.f32.mxu0 0.0
        %2693 = vmatmul.mubr.f32.gmra.mrb[0].mxu0 %v2605
        %v2694 = vpop.f32.mrb[0].mxu0
        %v2695 = vadd.f32 0.0, %v2694
        %v2696 = vpop.f32.mrb[0].mxu0
        %2697 = vmatprep.mubr.f32.mxu0 0.0
        %2698 = vmatmul.mubr.f32.gmra.mrb[0].mxu0 %v2608
        %v2699 = vpop.f32.mrb[0].mxu0
        %v2700 = vadd.f32 0.0, %v2699
        %v2701 = vpop.f32.mrb[0].mxu0
        %2702 = vmatprep.mubr.f32.mxu0 0.0
        %2703 = vmatmul.mubr.f32.gmra.mrb[0].mxu0 %v2611
        %v2704 = vpop.f32.mrb[0].mxu0
        %v2705 = vadd.f32 0.0, %v2704
        %v2706 = vpop.f32.mrb[0].mxu0
        %2707 = vmatprep.mubr.f32.mxu0 0.0
        %2708 = vmatmul.mubr.f32.gmra.mrb[0].mxu0 %v2614
        %v2709 = vpop.f32.mrb[0].mxu0
        %v2710 = vadd.f32 0.0, %v2709
        %v2711 = vpop.f32.mrb[0].mxu0
        %2712 = vdwg.mxu0
        %2713 = vmatprep.subr.mxu0 %v997
        %2714 = vmatpush1.xpose.msra.mxu0 %v995
        %2715 = vmatprep.subr.mxu0 %v1003
        %2716 = vmatpush1.xpose.msra.mxu0 %v1001
        %2717 = vmatprep.subr.mxu0 %v1009
        %2718 = vmatpush1.xpose.msra.mxu0 %v1007
        %2719 = vmatprep.subr.mxu0 %v1015
        %2720 = vmatpush1.xpose.msra.mxu0 %v1013
        %2721 = vmatprep.subr.mxu0 0.0
        %2722 = vmatpush1.xpose.msra.mxu0 0.0
        %2723 = vmatprep.subr.mxu0 0.0
        %2724 = vmatpush1.xpose.msra.mxu0 0.0
        %2725 = vmatprep.subr.mxu0 0.0
        %2726 = vmatpush1.xpose.msra.mxu0 0.0
        %2727 = vmatprep.subr.mxu0 0.0
        %2728 = vmatpush1.xpose.msra.mxu0 0.0
        %2729 = vmatprep.subr.mxu0 0.0
        %2730 = vmatpush1.xpose.msra.mxu0 0.0
        %2731 = vmatprep.subr.mxu0 0.0
        %2732 = vmatpush1.xpose.msra.mxu0 0.0
        %2733 = vmatprep.subr.mxu0 0.0
        %2734 = vmatpush1.xpose.msra.mxu0 0.0
        %2735 = vmatprep.subr.mxu0 0.0
        %2736 = vmatpush1.xpose.msra.mxu0 0.0
        %2737 = vmatprep.subr.mxu0 0.0
        %2738 = vmatpush1.xpose.msra.mxu0 0.0
        %2739 = vmatprep.subr.mxu0 0.0
        %2740 = vmatpush1.xpose.msra.mxu0 0.0
        %2741 = vmatprep.subr.mxu0 0.0
        %2742 = vmatpush1.xpose.msra.mxu0 0.0
        %2743 = vmatprep.subr.mxu0 0.0
        %2744 = vmatpush1.xpose.msra.mxu0 0.0
        %2745 = vmatprep.subr.mxu0 0.0
        %2746 = vmatpush1.xpose.msra.mxu0 0.0
        %2747 = vmatprep.subr.mxu0 0.0
        %2748 = vmatpush1.xpose.msra.mxu0 0.0
        %2749 = vmatprep.subr.mxu0 0.0
        %2750 = vmatpush1.xpose.msra.mxu0 0.0
        %2751 = vmatprep.subr.mxu0 0.0
        %2752 = vmatpush1.xpose.msra.mxu0 0.0
        %2753 = vmatprep.subr.mxu0 0.0
        %2754 = vmatpush1.xpose.msra.mxu0 0.0
        %2755 = vmatprep.subr.mxu0 0.0
        %2756 = vmatpush1.xpose.msra.mxu0 0.0
        %2757 = vmatprep.subr.mxu0 0.0
        %2758 = vmatpush1.xpose.msra.mxu0 0.0
        %2759 = vmatprep.subr.mxu0 0.0
        %2760 = vmatpush1.xpose.msra.mxu0 0.0
        %2761 = vmatprep.subr.mxu0 0.0
        %2762 = vmatpush1.xpose.msra.mxu0 0.0
        %2763 = vmatprep.subr.mxu0 0.0
        %2764 = vmatpush1.xpose.msra.mxu0 0.0
        %2765 = vmatprep.subr.mxu0 0.0
        %2766 = vmatpush1.xpose.msra.mxu0 0.0
        %2767 = vmatprep.subr.mxu0 0.0
        %2768 = vmatpush1.xpose.msra.mxu0 0.0
        %2769 = vmatprep.subr.mxu0 0.0
        %2770 = vmatpush1.xpose.msra.mxu0 0.0
        %2771 = vmatprep.subr.mxu0 0.0
        %2772 = vmatpush1.xpose.msra.mxu0 0.0
        %2773 = vmatprep.subr.mxu0 0.0
        %2774 = vmatpush1.xpose.msra.mxu0 0.0
        %2775 = vmatprep.subr.mxu0 0.0
        %2776 = vmatpush1.xpose.msra.mxu0 0.0
        %2777 = vmatprep.mubr.f32.mxu0 %v1378
        %2778 = vmatmul.mubr.f32.gmra.mrb[0].mxu0 %v1377
        %v2779 = vpop.f32.mrb[0].mxu0
        %v2780 = vadd.f32 %v2695, %v2779
        %v2781 = vpop.f32.mrb[0].mxu0
        %2782 = vmatprep.mubr.f32.mxu0 %v1380
        %2783 = vmatmul.mubr.f32.gmra.mrb[0].mxu0 %v1379
        %v2784 = vpop.f32.mrb[0].mxu0
        %v2785 = vadd.f32 %v2700, %v2784
        %v2786 = vpop.f32.mrb[0].mxu0
        %2787 = vmatprep.mubr.f32.mxu0 %v1382
        %2788 = vmatmul.mubr.f32.gmra.mrb[0].mxu0 %v1381
        %v2789 = vpop.f32.mrb[0].mxu0
        %v2790 = vadd.f32 %v2705, %v2789
        %v2791 = vpop.f32.mrb[0].mxu0
        %2792 = vmatprep.mubr.f32.mxu0 %v1384
        %2793 = vmatmul.mubr.f32.gmra.mrb[0].mxu0 %v1383
        %v2794 = vpop.f32.mrb[0].mxu0
        %v2795 = vadd.f32 %v2710, %v2794
        %v2796 = vpop.f32.mrb[0].mxu0
        %2797 = vdwg.mxu0
        %s2798 = scalar_lea.vmem %s5, 96
        %v2799 = vld [vmem:[%s2798] sm:$0xff]
        %v2800 = vld [vmem:[%s2798 + $0x8] sm:$0xff]
        %v2801 = vld [vmem:[%s2798 + $0x10] sm:$0xff]
        %v2802 = vld [vmem:[%s2798 + $0x18] sm:$0xff]
        %v2804 = vsel %vm519, %v2799, 0
        %v2807 = vsel %vm519, %v2800, 0
        %v2810 = vsel %vm519, %v2801, 0
        %v2813 = vsel %vm519, %v2802, 0
        %v2816 = vsel %vm519, %v2780, 0
        %v2819 = vsel %vm519, %v2785, 0
        %v2822 = vsel %vm519, %v2790, 0
        %v2825 = vsel %vm519, %v2795, 0
        %2827 = vmatprep.subr.mxu0 0.0
        %2828 = vmatpush1.xpose.msra.mxu0 %v2816
        %2829 = vmatprep.subr.mxu0 0.0
        %2830 = vmatpush1.xpose.msra.mxu0 %v2819
        %2831 = vmatprep.subr.mxu0 0.0
        %2832 = vmatpush1.xpose.msra.mxu0 %v2822
        %2833 = vmatprep.subr.mxu0 0.0
        %2834 = vmatpush1.xpose.msra.mxu0 %v2825
        %2835 = vmatprep.subr.mxu0 0.0
        %2836 = vmatpush1.xpose.msra.mxu0 0.0
        %2837 = vmatprep.subr.mxu0 0.0
        %2838 = vmatpush1.xpose.msra.mxu0 0.0
        %2839 = vmatprep.subr.mxu0 0.0
        %2840 = vmatpush1.xpose.msra.mxu0 0.0
        %2841 = vmatprep.subr.mxu0 0.0
        %2842 = vmatpush1.xpose.msra.mxu0 0.0
        %2843 = vmatprep.subr.mxu0 0.0
        %2844 = vmatpush1.xpose.msra.mxu0 0.0
        %2845 = vmatprep.subr.mxu0 0.0
        %2846 = vmatpush1.xpose.msra.mxu0 0.0
        %2847 = vmatprep.subr.mxu0 0.0
        %2848 = vmatpush1.xpose.msra.mxu0 0.0
        %2849 = vmatprep.subr.mxu0 0.0
        %2850 = vmatpush1.xpose.msra.mxu0 0.0
        %2851 = vmatprep.subr.mxu0 0.0
        %2852 = vmatpush1.xpose.msra.mxu0 0.0
        %2853 = vmatprep.subr.mxu0 0.0
        %2854 = vmatpush1.xpose.msra.mxu0 0.0
        %2855 = vmatprep.subr.mxu0 0.0
        %2856 = vmatpush1.xpose.msra.mxu0 0.0
        %2857 = vmatprep.subr.mxu0 0.0
        %2858 = vmatpush1.xpose.msra.mxu0 0.0
        %2859 = vmatprep.subr.mxu0 0.0
        %2860 = vmatpush1.xpose.msra.mxu0 0.0
        %2861 = vmatprep.subr.mxu0 0.0
        %2862 = vmatpush1.xpose.msra.mxu0 0.0
        %2863 = vmatprep.subr.mxu0 0.0
        %2864 = vmatpush1.xpose.msra.mxu0 0.0
        %2865 = vmatprep.subr.mxu0 0.0
        %2866 = vmatpush1.xpose.msra.mxu0 0.0
        %2867 = vmatprep.subr.mxu0 0.0
        %2868 = vmatpush1.xpose.msra.mxu0 0.0
        %2869 = vmatprep.subr.mxu0 0.0
        %2870 = vmatpush1.xpose.msra.mxu0 0.0
        %2871 = vmatprep.subr.mxu0 0.0
        %2872 = vmatpush1.xpose.msra.mxu0 0.0
        %2873 = vmatprep.subr.mxu0 0.0
        %2874 = vmatpush1.xpose.msra.mxu0 0.0
        %2875 = vmatprep.subr.mxu0 0.0
        %2876 = vmatpush1.xpose.msra.mxu0 0.0
        %2877 = vmatprep.subr.mxu0 0.0
        %2878 = vmatpush1.xpose.msra.mxu0 0.0
        %2879 = vmatprep.subr.mxu0 0.0
        %2880 = vmatpush1.xpose.msra.mxu0 0.0
        %2881 = vmatprep.subr.mxu0 0.0
        %2882 = vmatpush1.xpose.msra.mxu0 0.0
        %2883 = vmatprep.subr.mxu0 0.0
        %2884 = vmatpush1.xpose.msra.mxu0 0.0
        %2885 = vmatprep.subr.mxu0 0.0
        %2886 = vmatpush1.xpose.msra.mxu0 0.0
        %2887 = vmatprep.subr.mxu0 0.0
        %2888 = vmatpush1.xpose.msra.mxu0 0.0
        %2889 = vmatprep.subr.mxu0 0.0
        %2890 = vmatpush1.xpose.msra.mxu0 0.0
        %2891 = vmatprep.mubr.f32.mxu0 0.0
        %2892 = vmatmul.mubr.f32.gmra.mrb[0].mxu0 %v2804
        %v2893 = vpop.f32.mrb[0].mxu0
        %v2894 = vadd.f32 0.0, %v2893
        %v2895 = vpop.f32.mrb[0].mxu0
        %2896 = vmatprep.mubr.f32.mxu0 0.0
        %2897 = vmatmul.mubr.f32.gmra.mrb[0].mxu0 %v2807
        %v2898 = vpop.f32.mrb[0].mxu0
        %v2899 = vadd.f32 0.0, %v2898
        %v2900 = vpop.f32.mrb[0].mxu0
        %2901 = vmatprep.mubr.f32.mxu0 0.0
        %2902 = vmatmul.mubr.f32.gmra.mrb[0].mxu0 %v2810
        %v2903 = vpop.f32.mrb[0].mxu0
        %v2904 = vadd.f32 0.0, %v2903
        %v2905 = vpop.f32.mrb[0].mxu0
        %2906 = vmatprep.mubr.f32.mxu0 0.0
        %2907 = vmatmul.mubr.f32.gmra.mrb[0].mxu0 %v2813
        %v2908 = vpop.f32.mrb[0].mxu0
        %v2909 = vadd.f32 0.0, %v2908
        %v2910 = vpop.f32.mrb[0].mxu0
        %2911 = vdwg.mxu0
        %2916 = vrot.lane.b32.xlu0 %v2278, 32
        %v2917 = vpop.permute.xlu0 %2916
        %2918 = vrot.lane.b32.xlu0 %v2283, 32
        %v2919 = vpop.permute.xlu0 %2918
        %2920 = vrot.lane.b32.xlu0 %v2288, 32
        %v2921 = vpop.permute.xlu0 %2920
        %2922 = vrot.lane.b32.xlu0 %v2293, 32
        %v2923 = vpop.permute.xlu0 %2922
        %2932 = vrot.lane.b32.xlu0 %v2586, 64
        %v2933 = vpop.permute.xlu0 %2932
        %2934 = vrot.lane.b32.xlu0 %v2591, 64
        %v2935 = vpop.permute.xlu0 %2934
        %2936 = vrot.lane.b32.xlu0 %v2596, 64
        %v2937 = vpop.permute.xlu0 %2936
        %2938 = vrot.lane.b32.xlu0 %v2601, 64
        %v2939 = vpop.permute.xlu0 %2938
        %2948 = vrot.lane.b32.xlu0 %v2894, 96
        %v2949 = vpop.permute.xlu0 %2948
        %2950 = vrot.lane.b32.xlu0 %v2899, 96
        %v2951 = vpop.permute.xlu0 %2950
        %2952 = vrot.lane.b32.xlu0 %v2904, 96
        %v2953 = vpop.permute.xlu0 %2952
        %2954 = vrot.lane.b32.xlu0 %v2909, 96
        %v2955 = vpop.permute.xlu0 %2954
        %v2960 = vsel %vm519, %v1970, %v2917
        %v2961 = vsel %vm519, %v1975, %v2919
        %v2962 = vsel %vm519, %v1980, %v2921
        %v2963 = vsel %vm519, %v1985, %v2923
        %vm2964 = vcmask 523264
        %v2965 = vsel %vm2964, %v2960, %v2933
        %v2966 = vsel %vm2964, %v2961, %v2935
        %v2967 = vsel %vm2964, %v2962, %v2937
        %v2968 = vsel %vm2964, %v2963, %v2939
        %vm2969 = vcmask 785408
        %v2970 = vsel %vm2969, %v2965, %v2949
        %v2971 = vsel %vm2969, %v2966, %v2951
        %v2972 = vsel %vm2969, %v2967, %v2953
        %v2973 = vsel %vm2969, %v2968, %v2955
        %2975 = vset.pattern.permute.xlu0 0
        %2976 = vperm.xlu0 %2975, %v312
        %v2977 = vpop.permute.xlu0 %2976
        %2980 = vset.pattern.permute.xlu0 0
        %2981 = vperm.xlu0 %2980, %v313
        %v2982 = vpop.permute.xlu0 %2981
        %2985 = vset.pattern.permute.xlu0 0
        %2986 = vperm.xlu0 %2985, %v314
        %v2987 = vpop.permute.xlu0 %2986
        %2990 = vset.pattern.permute.xlu0 0
        %2991 = vperm.xlu0 %2990, %v315
        %v2992 = vpop.permute.xlu0 %2991
        %2994 = vmatprep.subr.mxu0 %v1650
        %2995 = vmatpush1.msra.mxu0 %v1649
        %2996 = vmatprep.subr.mxu0 %v1652
        %2997 = vmatpush1.msra.mxu0 %v1651
        %2998 = vmatprep.subr.mxu0 %v1654
        %2999 = vmatpush1.msra.mxu0 %v1653
        %3000 = vmatprep.subr.mxu0 %v1656
        %3001 = vmatpush1.msra.mxu0 %v1655
        %3002 = vmatprep.subr.mxu0 %v1658
        %3003 = vmatpush1.msra.mxu0 %v1657
        %3004 = vmatprep.subr.mxu0 %v1660
        %3005 = vmatpush1.msra.mxu0 %v1659
        %3006 = vmatprep.subr.mxu0 %v1662
        %3007 = vmatpush1.msra.mxu0 %v1661
        %3008 = vmatprep.subr.mxu0 %v1664
        %3009 = vmatpush1.msra.mxu0 %v1663
        %3010 = vmatprep.subr.mxu0 %v1666
        %3011 = vmatpush1.msra.mxu0 %v1665
        %3012 = vmatprep.subr.mxu0 %v1668
        %3013 = vmatpush1.msra.mxu0 %v1667
        %3014 = vmatprep.subr.mxu0 %v1670
        %3015 = vmatpush1.msra.mxu0 %v1669
        %3016 = vmatprep.subr.mxu0 %v1672
        %3017 = vmatpush1.msra.mxu0 %v1671
        %3018 = vmatprep.subr.mxu0 %v1674
        %3019 = vmatpush1.msra.mxu0 %v1673
        %3020 = vmatprep.subr.mxu0 %v1676
        %3021 = vmatpush1.msra.mxu0 %v1675
        %3022 = vmatprep.subr.mxu0 %v1678
        %3023 = vmatpush1.msra.mxu0 %v1677
        %3024 = vmatprep.subr.mxu0 %v1680
        %3025 = vmatpush1.msra.mxu0 %v1679
        %3026 = vmatprep.subr.mxu0 0.0
        %3027 = vmatpush1.msra.mxu0 0.0
        %3028 = vmatprep.subr.mxu0 0.0
        %3029 = vmatpush1.msra.mxu0 0.0
        %3030 = vmatprep.subr.mxu0 0.0
        %3031 = vmatpush1.msra.mxu0 0.0
        %3032 = vmatprep.subr.mxu0 0.0
        %3033 = vmatpush1.msra.mxu0 0.0
        %3034 = vmatprep.subr.mxu0 0.0
        %3035 = vmatpush1.msra.mxu0 0.0
        %3036 = vmatprep.subr.mxu0 0.0
        %3037 = vmatpush1.msra.mxu0 0.0
        %3038 = vmatprep.subr.mxu0 0.0
        %3039 = vmatpush1.msra.mxu0 0.0
        %3040 = vmatprep.subr.mxu0 0.0
        %3041 = vmatpush1.msra.mxu0 0.0
        %3042 = vmatprep.subr.mxu0 0.0
        %3043 = vmatpush1.msra.mxu0 0.0
        %3044 = vmatprep.subr.mxu0 0.0
        %3045 = vmatpush1.msra.mxu0 0.0
        %3046 = vmatprep.subr.mxu0 0.0
        %3047 = vmatpush1.msra.mxu0 0.0
        %3048 = vmatprep.subr.mxu0 0.0
        %3049 = vmatpush1.msra.mxu0 0.0
        %3050 = vmatprep.subr.mxu0 0.0
        %3051 = vmatpush1.msra.mxu0 0.0
        %3052 = vmatprep.subr.mxu0 0.0
        %3053 = vmatpush1.msra.mxu0 0.0
        %3054 = vmatprep.subr.mxu0 0.0
        %3055 = vmatpush1.msra.mxu0 0.0
        %3056 = vmatprep.subr.mxu0 0.0
        %3057 = vmatpush1.msra.mxu0 0.0
        %3058 = vmatprep.mubr.f32.mxu0 0.0
        %3059 = vmatmul.mubr.f32.gmra.mrb[0].mxu0 %v2970
        %v3060 = vpop.f32.mrb[0].mxu0
        %v3061 = vadd.f32 %v2977, %v3060
        %v3062 = vpop.f32.mrb[0].mxu0
        %v3063 = vadd.f32 %v2977, %v3062
        %3064 = vmatprep.mubr.f32.mxu0 0.0
        %3065 = vmatmul.mubr.f32.gmra.mrb[0].mxu0 %v2971
        %v3066 = vpop.f32.mrb[0].mxu0
        %v3067 = vadd.f32 %v2982, %v3066
        %v3068 = vpop.f32.mrb[0].mxu0
        %v3069 = vadd.f32 %v2982, %v3068
        %3070 = vmatprep.mubr.f32.mxu0 0.0
        %3071 = vmatmul.mubr.f32.gmra.mrb[0].mxu0 %v2972
        %v3072 = vpop.f32.mrb[0].mxu0
        %v3073 = vadd.f32 %v2987, %v3072
        %v3074 = vpop.f32.mrb[0].mxu0
        %v3075 = vadd.f32 %v2987, %v3074
        %3076 = vmatprep.mubr.f32.mxu0 0.0
        %3077 = vmatmul.mubr.f32.gmra.mrb[0].mxu0 %v2973
        %v3078 = vpop.f32.mrb[0].mxu0
        %v3079 = vadd.f32 %v2992, %v3078
        %v3080 = vpop.f32.mrb[0].mxu0
        %v3081 = vadd.f32 %v2992, %v3080
        %3082 = vdwg.mxu0
        %v3083 = vmul.f32 %v3061, %v3061
        %v3084 = vmul.f32 %v3063, %v3063
        %v3085 = vmul.f32 %v3067, %v3067
        %v3086 = vmul.f32 %v3069, %v3069
        %v3087 = vmul.f32 %v3073, %v3073
        %v3088 = vmul.f32 %v3075, %v3075
        %v3089 = vmul.f32 %v3079, %v3079
        %v3090 = vmul.f32 %v3081, %v3081
        %v3091 = vadd.f32 %v3083, %v3085
        %v3092 = vadd.f32 %v3091, %v3087
        %v3093 = vadd.f32 %v3092, %v3089
        %v3094 = vrot.slane %v3093, 4
        %v3095 = vadd.f32 %v3093, %v3094
        %v3096 = vrot.slane %v3095, 2
        %v3097 = vadd.f32 %v3095, %v3096
        %v3098 = vrot.slane %v3097, 1
        %v3099 = vadd.f32 %v3097, %v3098
        %v3100 = vadd.f32 %v3084, %v3086
        %v3101 = vadd.f32 %v3100, %v3088
        %v3102 = vadd.f32 %v3101, %v3090
        %v3103 = vrot.slane %v3102, 4
        %v3104 = vadd.f32 %v3102, %v3103
        %v3105 = vrot.slane %v3104, 2
        %v3106 = vadd.f32 %v3104, %v3105
        %v3107 = vrot.slane %v3106, 1
        %v3108 = vadd.f32 %v3106, %v3107
        %v3109 = vmax.f32 %v3099, 1e-24
        %v3110 = vmax.f32 %v3108, 1e-24
        %v3111 = vrsqrt.pop %v3109
        %v3112 = vrsqrt.pop %v3110
        %v3113 = vmul.f32 %v3061, %v3111
        %v3114 = vmul.f32 %v3063, %v3112
        %v3115 = vmul.f32 %v3067, %v3111
        %v3116 = vmul.f32 %v3069, %v3112
        %v3117 = vmul.f32 %v3073, %v3111
        %v3118 = vmul.f32 %v3075, %v3112
        %v3119 = vmul.f32 %v3079, %v3111
        %v3120 = vmul.f32 %v3081, %v3112
        %3122 = vset.pattern.permute.xlu0 0
        %3123 = vperm.xlu0 %3122, %v308
        %v3124 = vpop.permute.xlu0 %3123
        %3127 = vset.pattern.permute.xlu0 0
        %3128 = vperm.xlu0 %3127, %v309
        %v3129 = vpop.permute.xlu0 %3128
        %3132 = vset.pattern.permute.xlu0 0
        %3133 = vperm.xlu0 %3132, %v310
        %v3134 = vpop.permute.xlu0 %3133
        %3137 = vset.pattern.permute.xlu0 0
        %3138 = vperm.xlu0 %3137, %v311
        %v3139 = vpop.permute.xlu0 %3138
        %v3141 = vmul.f32 %v3113, %v3124
        %v3142 = vmul.f32 %v3114, %v3124
        %v3143 = vmul.f32 %v3115, %v3129
        %v3144 = vmul.f32 %v3116, %v3129
        %v3145 = vmul.f32 %v3117, %v3134
        %v3146 = vmul.f32 %v3118, %v3134
        %v3147 = vmul.f32 %v3119, %v3139
        %v3148 = vmul.f32 %v3120, %v3139
        %3149 = vst [vmem:[%s298] sm:$0xff] %v3141
        %3150 = vst [vmem:[%s298 + $0x8] sm:$0xff] %v3142
        %3151 = vst [vmem:[%s298 + $0x10] sm:$0xff] %v3143
        %3152 = vst [vmem:[%s298 + $0x18] sm:$0xff] %v3144
        %3153 = vst [vmem:[%s298 + $0x20] sm:$0xff] %v3145
        %3154 = vst [vmem:[%s298 + $0x28] sm:$0xff] %v3146
        %3155 = vst [vmem:[%s298 + $0x30] sm:$0xff] %v3147
        %3156 = vst [vmem:[%s298 + $0x38] sm:$0xff] %v3148
        %s3157 = sand.u32 %s203, 1
        %s3158 = scalar_lea.sflag [#allocation3], %s3157
        %s3159 = sand.u32 %s203, 1
        %s3160 = smul.addr %s3159, 64
        %s3161 = scalar_lea.vmem [#allocation2], %s3160
        // Predicated region
        $region53: #{tpu_custom_call.1} parent=51 // pred_check
          %p3162 = pneg %p213
        $region54: #{tpu_custom_call.1} parent=51 // pred_check_branch
          %3164 = sbr.rel (%p3162) target = $region56
        $region55: #{tpu_custom_call.1} parent=51 // pred_region
          %s3166 = ssub.s32 1024, 1024
          %3167 = vsyncadd %s3158, %s3166
          %s3168 = smul.addr %s22, 8
          %s3169 = smul.addr %s3168, 128
          %s3170 = scalar_lea.hbm %s8, %s3169
          %s3171 = sshll.u32 %s3161, 4
          %s3172 = int_to_ptr.vmem [resolvable:$true] %s3171
          %3177 = dma.vmem_to_hbm [thread:$0]  %s3172, 1024, %s3170, %s3158, 256, 256, 16
        $region56: #{tpu_custom_call.1} parent=51 // pred_fallthru
          _
      $region52: #{tpu_custom_call.1} parent=5 // pred_fallthru
        _
      %p3178 = scmp.le.s32.totalorder 2, %s17
      // Predicated region
      $region57: #{tpu_custom_call.1} parent=5 // pred_check
        %p3179 = pneg %p3178
      $region58: #{tpu_custom_call.1} parent=5 // pred_check_branch
        %3181 = sbr.rel (%p3179) target = $region60
      $region59: #{tpu_custom_call.1} parent=5 // pred_region
        %s3182 = ssub.s32 %s17, 2
        // Predicated region
        $region61: #{tpu_custom_call.1} parent=59 // pred_check
          %p3183 = pneg %p219
        $region62: #{tpu_custom_call.1} parent=59 // pred_check_branch
          %3185 = sbr.rel (%p3183) target = $region64
        $region63: #{tpu_custom_call.1} parent=59 // pred_region
          %s3186 = sand.u32 %s204, 1
          %s3187 = scalar_lea.sflag [#allocation3], %s3186
          %s3188 = sand.u32 %s204, 1
          %s3189 = smul.addr %s3188, 64
          %s3190 = scalar_lea.vmem [#allocation2], %s3189
          %3191 = dma.done %s3187, 1024
        $region64: #{tpu_custom_call.1} parent=59 // pred_fallthru
          _
      $region60: #{tpu_custom_call.1} parent=5 // pred_fallthru
        _
    $region6: #{tpu_custom_call.1} parent=1 // loop_footer
      %s21 = sadd.s32 1, %s17
    $region7: #{tpu_custom_call.1} parent=1 // loop_footer_branch
      %16 = sbr.rel target = $region3
    $region8: #{tpu_custom_call.1} parent=1 // loop_exit
      _
    %3192 = vsyncpa [#allocation3], 1
    %s3193 = scalar_lea.sflag [#allocation3], 1
    %3194 = vsyncpa %s3193, 1

</llo_original>
